<compile_context>
chip_gen: v7x
topology: tpu7x:2x2x1
jax: 0.10.0
libtpu: 0.0.40
codegen_flags: <defaults>
</compile_context>

<pallas_src>
import functools

import jax
import jax.numpy as jnp
from jax import lax
from jax.experimental import pallas as pl
from jax.experimental.pallas import tpu as pltpu

LANES = 128
SUBLANES = 8
ROW_CHUNK = 512                  # inner-loop chunk: 512*128*4B = 256 KiB per temp
MAX_TILE_R = 4096                # rows per grid step: 2 MiB f32 per input block
NUM_SPLITS = 2                   # leading grid axis (cheap loop on 1-TC chips)
MIN_PALLAS_ELEMS = 1 << 20       # below this, let XLA fuse the whole loss
VMEM_LIMIT_BYTES = 32 * 1024 * 1024


def _iou_partial_kernel(x_ref, t_ref, inter_ref, total_ref, *, activation,
                        chunk_rows):
    """Fold one (tile_r, 128) tile into (8, 128) vreg-shaped partial sums."""
    step = pl.program_id(1)

    @pl.when(step == 0)
    def _():
        inter_ref[...] = jnp.zeros_like(inter_ref)
        total_ref[...] = jnp.zeros_like(total_ref)

    tile_r = x_ref.shape[0]
    n_chunks = tile_r // chunk_rows

    def body(c, carry):
        inter_acc, total_acc = carry
        r0 = pl.multiple_of(c * chunk_rows, chunk_rows)
        x = x_ref[pl.ds(r0, chunk_rows), :].astype(jnp.float32)
        t = t_ref[pl.ds(r0, chunk_rows), :].astype(jnp.float32)
        if activation:
            # sigmoid(x) == 0.5 * tanh(0.5 * x) + 0.5  -> one EUP push per vreg.
            x = 0.5 * jnp.tanh(0.5 * x) + 0.5
        # (chunk, 128) -> (chunk//8, 8, 128); axis-0 sum is layout-preserving
        # pure-VALU vreg adds (no cross-lane reduce in the hot loop).
        inter_acc = inter_acc + jnp.sum(
            (x * t).reshape(chunk_rows // SUBLANES, SUBLANES, LANES), axis=0)
        total_acc = total_acc + jnp.sum(
            (x + t).reshape(chunk_rows // SUBLANES, SUBLANES, LANES), axis=0)
        return inter_acc, total_acc

    zeros = jnp.zeros((SUBLANES, LANES), jnp.float32)
    inter_acc, total_acc = lax.fori_loop(0, n_chunks, body, (zeros, zeros),
                                         unroll=True)

    inter_ref[...] += inter_acc
    total_ref[...] += total_acc


def _jax_iou_sums(x_flat, t_flat, activation):
    x = x_flat.astype(jnp.float32)
    t = t_flat.astype(jnp.float32)
    if activation:
        x = jax.nn.sigmoid(x)
    return jnp.sum(x * t), jnp.sum(x + t)


def iou_loss(inputs, targets, smooth=1.0, activation=True,
             min_pallas_elems=MIN_PALLAS_ELEMS):
    """Pallas implementation of IoULoss.forward (returns a scalar loss)."""
    assert inputs.shape == targets.shape
    n_valid = int(inputs.size)
    smooth = float(smooth)
    activation = bool(activation)

    x_flat = inputs.reshape(-1)
    t_flat = targets.reshape(-1)

    # ---- static host-side tiling arithmetic ----
    rows_full = n_valid // LANES
    half = rows_full // NUM_SPLITS
    chunks_per_split = half // ROW_CHUNK

    if n_valid < min_pallas_elems or chunks_per_split == 0:
        # Small inputs: fixed pallas_call dispatch cost dominates; one fused
        # XLA pass is faster and exact.
        intersection, total = _jax_iou_sums(x_flat, t_flat, activation)
        union = total - intersection
        return 1.0 - (intersection + smooth) / (union + smooth)

    t_chunks = min(chunks_per_split, MAX_TILE_R // ROW_CHUNK)
    steps = chunks_per_split // t_chunks
    tile_r = t_chunks * ROW_CHUNK                 # multiple of ROW_CHUNK (and 8)
    rows_bulk = NUM_SPLITS * steps * tile_r       # rows handled by the kernel
    n_bulk = rows_bulk * LANES

    if n_valid % LANES == 0:
        # Free bitcast reshape: the kernel streams the bulk straight out of the
        # original HBM buffers (no extra read/write pass).  Rows beyond
        # rows_bulk exist in the array but are never indexed by the grid.
        x2d = x_flat.reshape(rows_full, LANES)
        t2d = t_flat.reshape(rows_full, LANES)
    else:
        # Rare case (numel not a multiple of 128): no copy-free lane-aligned
        # 2-D view exists, so slice just the bulk prefix.
        x2d = x_flat[:n_bulk].reshape(rows_bulk, LANES)
        t2d = t_flat[:n_bulk].reshape(rows_bulk, LANES)

    kernel = functools.partial(_iou_partial_kernel, activation=activation,
                               chunk_rows=ROW_CHUNK)

    in_map = lambda p, i: (p * steps + i, 0)
    out_map = lambda p, i: (p, 0, 0)

    inter_part, total_part = pl.pallas_call(
        kernel,
        out_shape=(
            jax.ShapeDtypeStruct((NUM_SPLITS, SUBLANES, LANES), jnp.float32),
            jax.ShapeDtypeStruct((NUM_SPLITS, SUBLANES, LANES), jnp.float32),
        ),
        grid_spec=pltpu.PrefetchScalarGridSpec(
            num_scalar_prefetch=0,
            grid=(NUM_SPLITS, steps),
            in_specs=[
                pl.BlockSpec((tile_r, LANES), in_map),
                pl.BlockSpec((tile_r, LANES), in_map),
            ],
            out_specs=[
                pl.BlockSpec((None, SUBLANES, LANES), out_map),
                pl.BlockSpec((None, SUBLANES, LANES), out_map),
            ],
        ),
        compiler_params=pltpu.CompilerParams(
            dimension_semantics=("parallel", "arbitrary"),
            vmem_limit_bytes=VMEM_LIMIT_BYTES,
        ),
    )(x2d, t2d)

    # Tiny final reduction + scalar epilogue in plain JAX.
    intersection = jnp.sum(inter_part)
    total = jnp.sum(total_part)

    tail_n = n_valid - n_bulk
    if tail_n:
        # Ragged tail (bounded by ~NUM_SPLITS*MAX_TILE_R*128 elements): tiny
        # fused XLA reduction — no padding, no cancellation correction.
        inter_tail, total_tail = _jax_iou_sums(x_flat[n_bulk:],
                                               t_flat[n_bulk:], activation)
        intersection = intersection + inter_tail
        total = total + total_tail

    union = total - intersection
    return 1.0 - (intersection + smooth) / (union + smooth)


def _reference_iou_loss(inputs, targets, smooth=1.0, activation=True):
    x = jax.nn.sigmoid(inputs) if activation else inputs
    x = x.reshape(-1).astype(jnp.float32)
    t = targets.reshape(-1).astype(jnp.float32)
    intersection = jnp.sum(x * t)
    total = jnp.sum(x + t)
    union = total - intersection
    return 1.0 - (intersection + smooth) / (union + smooth)


if __name__ == "__main__":
    key = jax.random.PRNGKey(0)
    k1, k2, k3, k4, k5, k6 = jax.random.split(key, 6)

    def check(x, t, activation, **kw):
        got = jax.block_until_ready(
            iou_loss(x, t, smooth=1.0, activation=activation, **kw))
        want = _reference_iou_loss(x, t, smooth=1.0, activation=activation)
        assert jnp.allclose(got, want, atol=5e-5, rtol=5e-5), (activation, got, want)
        return got

    # 1) Module-typical small shape (N=2, C=4, 16x16 logits): small-input
    #    fallback path (one fused XLA pass).
    xs = jax.random.normal(k1, (2, 4, 16, 16), dtype=jnp.float32)
    ts = (jax.random.uniform(k2, (2, 4, 16, 16)) > 0.5).astype(jnp.float32)
    check(xs, ts, True)
    check(xs, ts, False)

    # 2) Pallas path (default threshold), tile-aligned, full 4096-row tiles:
    #    1,048,576 elements = 4 MiB f32 per input, no tail, no copies.
    xm = jax.random.normal(k3, (4, 4, 256, 256), dtype=jnp.float32)
    tm = (jax.random.uniform(k4, (4, 4, 256, 256)) > 0.5).astype(jnp.float32)
    check(xm, tm, True)
    check(xm, tm, False)

    # 3) Pallas path, ragged size (numel not a multiple of 128): kernel bulk +
    #    plain-JAX tail reduction.
    xr = jax.random.normal(k5, (2, 3, 181, 131), dtype=jnp.float32)
    tr = (jax.random.uniform(k6, (2, 3, 181, 131)) > 0.5).astype(jnp.float32)
    check(xr, tr, True, min_pallas_elems=0)

    print("KERNEL_OK")
</pallas_src>

<mosaic_0001>
module attributes {stable_mosaic.version = 11 : i64} {
  func.func @_iou_partial_kernel(%arg0: i32, %arg1: i32, %arg2: memref<4096x128xf32, #tpu.memory_space<vmem>>, %arg3: memref<4096x128xf32, #tpu.memory_space<vmem>>, %arg4: memref<1x8x128xf32, #tpu.memory_space<vmem>>, %arg5: memref<1x8x128xf32, #tpu.memory_space<vmem>>) attributes {dimension_semantics = [#tpu.dimension_semantics<parallel>, #tpu.dimension_semantics<arbitrary>], iteration_bounds = array<i64: 2, 1>, scalar_prefetch = 0 : i64, scratch_operands = 0 : i64, tpu.core_type = #tpu.core_type<tc>, window_params = [{transform_indices = @transform_0, window_bounds = array<i64: 4096, 128>}, {transform_indices = @transform_1, window_bounds = array<i64: 4096, 128>}, {transform_indices = @transform_2, window_bounds = array<i64: 1, 8, 128>}, {transform_indices = @transform_3, window_bounds = array<i64: 1, 8, 128>}]} {
    %c0_i32 = arith.constant 0 : i32
    %0 = arith.cmpi eq, %arg1, %c0_i32 : i32
    %1 = arith.extui %0 : i1 to i32
    %c0_i32_0 = arith.constant 0 : i32
    %2 = arith.cmpi ne, %1, %c0_i32_0 : i32
    scf.if %2 {
      %cst_76 = arith.constant 0.000000e+00 : f32
      %184 = vector.broadcast %cst_76 : f32 to vector<8x128xf32>
      %c0_77 = arith.constant 0 : index
      %c0_78 = arith.constant 0 : index
      %c0_79 = arith.constant 0 : index
      %185 = vector.load %arg4[%c0_77, %c0_78, %c0_79] : memref<1x8x128xf32, #tpu.memory_space<vmem>>, vector<1x8x128xf32>
      %186 = vector.shape_cast %185 : vector<1x8x128xf32> to vector<8x128xf32>
      %187 = vector.shape_cast %184 : vector<8x128xf32> to vector<1x8x128xf32>
      tpu.vector_store %arg4[%c0_77, %c0_78, %c0_79], %187 {strides = array<i32>} : memref<1x8x128xf32, #tpu.memory_space<vmem>>, vector<1x8x128xf32>,
      %cst_80 = arith.constant 0.000000e+00 : f32
      %188 = vector.broadcast %cst_80 : f32 to vector<8x128xf32>
      %c0_81 = arith.constant 0 : index
      %c0_82 = arith.constant 0 : index
      %c0_83 = arith.constant 0 : index
      %189 = vector.load %arg5[%c0_81, %c0_82, %c0_83] : memref<1x8x128xf32, #tpu.memory_space<vmem>>, vector<1x8x128xf32>
      %190 = vector.shape_cast %189 : vector<1x8x128xf32> to vector<8x128xf32>
      %191 = vector.shape_cast %188 : vector<8x128xf32> to vector<1x8x128xf32>
      tpu.vector_store %arg5[%c0_81, %c0_82, %c0_83], %191 {strides = array<i32>} : memref<1x8x128xf32, #tpu.memory_space<vmem>>, vector<1x8x128xf32>,
    } else {
    }
    %cst = arith.constant 0.000000e+00 : f32
    %3 = vector.broadcast %cst : f32 to vector<8x128xf32>
    %c0_i32_1 = arith.constant 0 : i32
    %c512_i32 = arith.constant 512 : i32
    %4 = arith.muli %c0_i32_1, %c512_i32 : i32
    %5 = tpu.assume_multiple %4, 512 : i32
    %6 = arith.index_cast %5 : i32 to index
    %c0 = arith.constant 0 : index
    %7 = vector.load %arg2[%6, %c0] : memref<4096x128xf32, #tpu.memory_space<vmem>>, vector<512x128xf32>
    %8 = arith.index_cast %5 : i32 to index
    %c0_2 = arith.constant 0 : index
    %9 = vector.load %arg3[%8, %c0_2] : memref<4096x128xf32, #tpu.memory_space<vmem>>, vector<512x128xf32>
    %cst_3 = arith.constant 5.000000e-01 : f32
    %10 = vector.broadcast %cst_3 : f32 to vector<512x128xf32>
    %11 = arith.mulf %10, %7 : vector<512x128xf32>
    %12 = math.tanh %11 : vector<512x128xf32>
    %cst_4 = arith.constant 5.000000e-01 : f32
    %13 = vector.broadcast %cst_4 : f32 to vector<512x128xf32>
    %14 = arith.mulf %13, %12 : vector<512x128xf32>
    %cst_5 = arith.constant 5.000000e-01 : f32
    %15 = vector.broadcast %cst_5 : f32 to vector<512x128xf32>
    %16 = arith.addf %14, %15 : vector<512x128xf32>
    %17 = arith.mulf %16, %9 : vector<512x128xf32>
    %18 = vector.shape_cast %17 : vector<512x128xf32> to vector<64x8x128xf32>
    %cst_6 = arith.constant dense<0.000000e+00> : vector<8x128xf32>
    %19 = vector.multi_reduction <add>, %18, %cst_6 [0] : vector<64x8x128xf32> to vector<8x128xf32>
    %20 = arith.addf %3, %19 : vector<8x128xf32>
    %21 = arith.addf %16, %9 : vector<512x128xf32>
    %22 = vector.shape_cast %21 : vector<512x128xf32> to vector<64x8x128xf32>
    %cst_7 = arith.constant dense<0.000000e+00> : vector<8x128xf32>
    %23 = vector.multi_reduction <add>, %22, %cst_7 [0] : vector<64x8x128xf32> to vector<8x128xf32>
    %24 = arith.addf %3, %23 : vector<8x128xf32>
    %c1_i32 = arith.constant 1 : i32
    %c512_i32_8 = arith.constant 512 : i32
    %25 = arith.muli %c1_i32, %c512_i32_8 : i32
    %26 = tpu.assume_multiple %25, 512 : i32
    %27 = arith.index_cast %26 : i32 to index
    %c0_9 = arith.constant 0 : index
    %28 = vector.load %arg2[%27, %c0_9] : memref<4096x128xf32, #tpu.memory_space<vmem>>, vector<512x128xf32>
    %29 = arith.index_cast %26 : i32 to index
    %c0_10 = arith.constant 0 : index
    %30 = vector.load %arg3[%29, %c0_10] : memref<4096x128xf32, #tpu.memory_space<vmem>>, vector<512x128xf32>
    %cst_11 = arith.constant 5.000000e-01 : f32
    %31 = vector.broadcast %cst_11 : f32 to vector<512x128xf32>
    %32 = arith.mulf %31, %28 : vector<512x128xf32>
    %33 = math.tanh %32 : vector<512x128xf32>
    %cst_12 = arith.constant 5.000000e-01 : f32
    %34 = vector.broadcast %cst_12 : f32 to vector<512x128xf32>
    %35 = arith.mulf %34, %33 : vector<512x128xf32>
    %cst_13 = arith.constant 5.000000e-01 : f32
    %36 = vector.broadcast %cst_13 : f32 to vector<512x128xf32>
    %37 = arith.addf %35, %36 : vector<512x128xf32>
    %38 = arith.mulf %37, %30 : vector<512x128xf32>
    %39 = vector.shape_cast %38 : vector<512x128xf32> to vector<64x8x128xf32>
    %cst_14 = arith.constant dense<0.000000e+00> : vector<8x128xf32>
    %40 = vector.multi_reduction <add>, %39, %cst_14 [0] : vector<64x8x128xf32> to vector<8x128xf32>
    %41 = arith.addf %20, %40 : vector<8x128xf32>
    %42 = arith.addf %37, %30 : vector<512x128xf32>
    %43 = vector.shape_cast %42 : vector<512x128xf32> to vector<64x8x128xf32>
    %cst_15 = arith.constant dense<0.000000e+00> : vector<8x128xf32>
    %44 = vector.multi_reduction <add>, %43, %cst_15 [0] : vector<64x8x128xf32> to vector<8x128xf32>
    %45 = arith.addf %24, %44 : vector<8x128xf32>
    %c2_i32 = arith.constant 2 : i32
    %c512_i32_16 = arith.constant 512 : i32
    %46 = arith.muli %c2_i32, %c512_i32_16 : i32
    %47 = tpu.assume_multiple %46, 512 : i32
    %48 = arith.index_cast %47 : i32 to index
    %c0_17 = arith.constant 0 : index
    %49 = vector.load %arg2[%48, %c0_17] : memref<4096x128xf32, #tpu.memory_space<vmem>>, vector<512x128xf32>
    %50 = arith.index_cast %47 : i32 to index
    %c0_18 = arith.constant 0 : index
    %51 = vector.load %arg3[%50, %c0_18] : memref<4096x128xf32, #tpu.memory_space<vmem>>, vector<512x128xf32>
    %cst_19 = arith.constant 5.000000e-01 : f32
    %52 = vector.broadcast %cst_19 : f32 to vector<512x128xf32>
    %53 = arith.mulf %52, %49 : vector<512x128xf32>
    %54 = math.tanh %53 : vector<512x128xf32>
    %cst_20 = arith.constant 5.000000e-01 : f32
    %55 = vector.broadcast %cst_20 : f32 to vector<512x128xf32>
    %56 = arith.mulf %55, %54 : vector<512x128xf32>
    %cst_21 = arith.constant 5.000000e-01 : f32
    %57 = vector.broadcast %cst_21 : f32 to vector<512x128xf32>
    %58 = arith.addf %56, %57 : vector<512x128xf32>
    %59 = arith.mulf %58, %51 : vector<512x128xf32>
    %60 = vector.shape_cast %59 : vector<512x128xf32> to vector<64x8x128xf32>
    %cst_22 = arith.constant dense<0.000000e+00> : vector<8x128xf32>
    %61 = vector.multi_reduction <add>, %60, %cst_22 [0] : vector<64x8x128xf32> to vector<8x128xf32>
    %62 = arith.addf %41, %61 : vector<8x128xf32>
    %63 = arith.addf %58, %51 : vector<512x128xf32>
    %64 = vector.shape_cast %63 : vector<512x128xf32> to vector<64x8x128xf32>
    %cst_23 = arith.constant dense<0.000000e+00> : vector<8x128xf32>
    %65 = vector.multi_reduction <add>, %64, %cst_23 [0] : vector<64x8x128xf32> to vector<8x128xf32>
    %66 = arith.addf %45, %65 : vector<8x128xf32>
    %c3_i32 = arith.constant 3 : i32
    %c512_i32_24 = arith.constant 512 : i32
    %67 = arith.muli %c3_i32, %c512_i32_24 : i32
    %68 = tpu.assume_multiple %67, 512 : i32
    %69 = arith.index_cast %68 : i32 to index
    %c0_25 = arith.constant 0 : index
    %70 = vector.load %arg2[%69, %c0_25] : memref<4096x128xf32, #tpu.memory_space<vmem>>, vector<512x128xf32>
    %71 = arith.index_cast %68 : i32 to index
    %c0_26 = arith.constant 0 : index
    %72 = vector.load %arg3[%71, %c0_26] : memref<4096x128xf32, #tpu.memory_space<vmem>>, vector<512x128xf32>
    %cst_27 = arith.constant 5.000000e-01 : f32
    %73 = vector.broadcast %cst_27 : f32 to vector<512x128xf32>
    %74 = arith.mulf %73, %70 : vector<512x128xf32>
    %75 = math.tanh %74 : vector<512x128xf32>
    %cst_28 = arith.constant 5.000000e-01 : f32
    %76 = vector.broadcast %cst_28 : f32 to vector<512x128xf32>
    %77 = arith.mulf %76, %75 : vector<512x128xf32>
    %cst_29 = arith.constant 5.000000e-01 : f32
    %78 = vector.broadcast %cst_29 : f32 to vector<512x128xf32>
    %79 = arith.addf %77, %78 : vector<512x128xf32>
    %80 = arith.mulf %79, %72 : vector<512x128xf32>
    %81 = vector.shape_cast %80 : vector<512x128xf32> to vector<64x8x128xf32>
    %cst_30 = arith.constant dense<0.000000e+00> : vector<8x128xf32>
    %82 = vector.multi_reduction <add>, %81, %cst_30 [0] : vector<64x8x128xf32> to vector<8x128xf32>
    %83 = arith.addf %62, %82 : vector<8x128xf32>
    %84 = arith.addf %79, %72 : vector<512x128xf32>
    %85 = vector.shape_cast %84 : vector<512x128xf32> to vector<64x8x128xf32>
    %cst_31 = arith.constant dense<0.000000e+00> : vector<8x128xf32>
    %86 = vector.multi_reduction <add>, %85, %cst_31 [0] : vector<64x8x128xf32> to vector<8x128xf32>
    %87 = arith.addf %66, %86 : vector<8x128xf32>
    %c4_i32 = arith.constant 4 : i32
    %c512_i32_32 = arith.constant 512 : i32
    %88 = arith.muli %c4_i32, %c512_i32_32 : i32
    %89 = tpu.assume_multiple %88, 512 : i32
    %90 = arith.index_cast %89 : i32 to index
    %c0_33 = arith.constant 0 : index
    %91 = vector.load %arg2[%90, %c0_33] : memref<4096x128xf32, #tpu.memory_space<vmem>>, vector<512x128xf32>
    %92 = arith.index_cast %89 : i32 to index
    %c0_34 = arith.constant 0 : index
    %93 = vector.load %arg3[%92, %c0_34] : memref<4096x128xf32, #tpu.memory_space<vmem>>, vector<512x128xf32>
    %cst_35 = arith.constant 5.000000e-01 : f32
    %94 = vector.broadcast %cst_35 : f32 to vector<512x128xf32>
    %95 = arith.mulf %94, %91 : vector<512x128xf32>
    %96 = math.tanh %95 : vector<512x128xf32>
    %cst_36 = arith.constant 5.000000e-01 : f32
    %97 = vector.broadcast %cst_36 : f32 to vector<512x128xf32>
    %98 = arith.mulf %97, %96 : vector<512x128xf32>
    %cst_37 = arith.constant 5.000000e-01 : f32
    %99 = vector.broadcast %cst_37 : f32 to vector<512x128xf32>
    %100 = arith.addf %98, %99 : vector<512x128xf32>
    %101 = arith.mulf %100, %93 : vector<512x128xf32>
    %102 = vector.shape_cast %101 : vector<512x128xf32> to vector<64x8x128xf32>
    %cst_38 = arith.constant dense<0.000000e+00> : vector<8x128xf32>
    %103 = vector.multi_reduction <add>, %102, %cst_38 [0] : vector<64x8x128xf32> to vector<8x128xf32>
    %104 = arith.addf %83, %103 : vector<8x128xf32>
    %105 = arith.addf %100, %93 : vector<512x128xf32>
    %106 = vector.shape_cast %105 : vector<512x128xf32> to vector<64x8x128xf32>
    %cst_39 = arith.constant dense<0.000000e+00> : vector<8x128xf32>
    %107 = vector.multi_reduction <add>, %106, %cst_39 [0] : vector<64x8x128xf32> to vector<8x128xf32>
    %108 = arith.addf %87, %107 : vector<8x128xf32>
    %c5_i32 = arith.constant 5 : i32
    %c512_i32_40 = arith.constant 512 : i32
    %109 = arith.muli %c5_i32, %c512_i32_40 : i32
    %110 = tpu.assume_multiple %109, 512 : i32
    %111 = arith.index_cast %110 : i32 to index
    %c0_41 = arith.constant 0 : index
    %112 = vector.load %arg2[%111, %c0_41] : memref<4096x128xf32, #tpu.memory_space<vmem>>, vector<512x128xf32>
    %113 = arith.index_cast %110 : i32 to index
    %c0_42 = arith.constant 0 : index
    %114 = vector.load %arg3[%113, %c0_42] : memref<4096x128xf32, #tpu.memory_space<vmem>>, vector<512x128xf32>
    %cst_43 = arith.constant 5.000000e-01 : f32
    %115 = vector.broadcast %cst_43 : f32 to vector<512x128xf32>
    %116 = arith.mulf %115, %112 : vector<512x128xf32>
    %117 = math.tanh %116 : vector<512x128xf32>
    %cst_44 = arith.constant 5.000000e-01 : f32
    %118 = vector.broadcast %cst_44 : f32 to vector<512x128xf32>
    %119 = arith.mulf %118, %117 : vector<512x128xf32>
    %cst_45 = arith.constant 5.000000e-01 : f32
    %120 = vector.broadcast %cst_45 : f32 to vector<512x128xf32>
    %121 = arith.addf %119, %120 : vector<512x128xf32>
    %122 = arith.mulf %121, %114 : vector<512x128xf32>
    %123 = vector.shape_cast %122 : vector<512x128xf32> to vector<64x8x128xf32>
    %cst_46 = arith.constant dense<0.000000e+00> : vector<8x128xf32>
    %124 = vector.multi_reduction <add>, %123, %cst_46 [0] : vector<64x8x128xf32> to vector<8x128xf32>
    %125 = arith.addf %104, %124 : vector<8x128xf32>
    %126 = arith.addf %121, %114 : vector<512x128xf32>
    %127 = vector.shape_cast %126 : vector<512x128xf32> to vector<64x8x128xf32>
    %cst_47 = arith.constant dense<0.000000e+00> : vector<8x128xf32>
    %128 = vector.multi_reduction <add>, %127, %cst_47 [0] : vector<64x8x128xf32> to vector<8x128xf32>
    %129 = arith.addf %108, %128 : vector<8x128xf32>
    %c6_i32 = arith.constant 6 : i32
    %c512_i32_48 = arith.constant 512 : i32
    %130 = arith.muli %c6_i32, %c512_i32_48 : i32
    %131 = tpu.assume_multiple %130, 512 : i32
    %132 = arith.index_cast %131 : i32 to index
    %c0_49 = arith.constant 0 : index
    %133 = vector.load %arg2[%132, %c0_49] : memref<4096x128xf32, #tpu.memory_space<vmem>>, vector<512x128xf32>
    %134 = arith.index_cast %131 : i32 to index
    %c0_50 = arith.constant 0 : index
    %135 = vector.load %arg3[%134, %c0_50] : memref<4096x128xf32, #tpu.memory_space<vmem>>, vector<512x128xf32>
    %cst_51 = arith.constant 5.000000e-01 : f32
    %136 = vector.broadcast %cst_51 : f32 to vector<512x128xf32>
    %137 = arith.mulf %136, %133 : vector<512x128xf32>
    %138 = math.tanh %137 : vector<512x128xf32>
    %cst_52 = arith.constant 5.000000e-01 : f32
    %139 = vector.broadcast %cst_52 : f32 to vector<512x128xf32>
    %140 = arith.mulf %139, %138 : vector<512x128xf32>
    %cst_53 = arith.constant 5.000000e-01 : f32
    %141 = vector.broadcast %cst_53 : f32 to vector<512x128xf32>
    %142 = arith.addf %140, %141 : vector<512x128xf32>
    %143 = arith.mulf %142, %135 : vector<512x128xf32>
    %144 = vector.shape_cast %143 : vector<512x128xf32> to vector<64x8x128xf32>
    %cst_54 = arith.constant dense<0.000000e+00> : vector<8x128xf32>
    %145 = vector.multi_reduction <add>, %144, %cst_54 [0] : vector<64x8x128xf32> to vector<8x128xf32>
    %146 = arith.addf %125, %145 : vector<8x128xf32>
    %147 = arith.addf %142, %135 : vector<512x128xf32>
    %148 = vector.shape_cast %147 : vector<512x128xf32> to vector<64x8x128xf32>
    %cst_55 = arith.constant dense<0.000000e+00> : vector<8x128xf32>
    %149 = vector.multi_reduction <add>, %148, %cst_55 [0] : vector<64x8x128xf32> to vector<8x128xf32>
    %150 = arith.addf %129, %149 : vector<8x128xf32>
    %c7_i32 = arith.constant 7 : i32
    %c512_i32_56 = arith.constant 512 : i32
    %151 = arith.muli %c7_i32, %c512_i32_56 : i32
    %152 = tpu.assume_multiple %151, 512 : i32
    %153 = arith.index_cast %152 : i32 to index
    %c0_57 = arith.constant 0 : index
    %154 = vector.load %arg2[%153, %c0_57] : memref<4096x128xf32, #tpu.memory_space<vmem>>, vector<512x128xf32>
    %155 = arith.index_cast %152 : i32 to index
    %c0_58 = arith.constant 0 : index
    %156 = vector.load %arg3[%155, %c0_58] : memref<4096x128xf32, #tpu.memory_space<vmem>>, vector<512x128xf32>
    %cst_59 = arith.constant 5.000000e-01 : f32
    %157 = vector.broadcast %cst_59 : f32 to vector<512x128xf32>
    %158 = arith.mulf %157, %154 : vector<512x128xf32>
    %159 = math.tanh %158 : vector<512x128xf32>
    %cst_60 = arith.constant 5.000000e-01 : f32
    %160 = vector.broadcast %cst_60 : f32 to vector<512x128xf32>
    %161 = arith.mulf %160, %159 : vector<512x128xf32>
    %cst_61 = arith.constant 5.000000e-01 : f32
    %162 = vector.broadcast %cst_61 : f32 to vector<512x128xf32>
    %163 = arith.addf %161, %162 : vector<512x128xf32>
    %164 = arith.mulf %163, %156 : vector<512x128xf32>
    %165 = vector.shape_cast %164 : vector<512x128xf32> to vector<64x8x128xf32>
    %cst_62 = arith.constant dense<0.000000e+00> : vector<8x128xf32>
    %166 = vector.multi_reduction <add>, %165, %cst_62 [0] : vector<64x8x128xf32> to vector<8x128xf32>
    %167 = arith.addf %146, %166 : vector<8x128xf32>
    %168 = arith.addf %163, %156 : vector<512x128xf32>
    %169 = vector.shape_cast %168 : vector<512x128xf32> to vector<64x8x128xf32>
    %cst_63 = arith.constant dense<0.000000e+00> : vector<8x128xf32>
    %170 = vector.multi_reduction <add>, %169, %cst_63 [0] : vector<64x8x128xf32> to vector<8x128xf32>
    %171 = arith.addf %150, %170 : vector<8x128xf32>
    %c8_i32 = arith.constant 8 : i32
    %c0_64 = arith.constant 0 : index
    %c0_65 = arith.constant 0 : index
    %c0_66 = arith.constant 0 : index
    %172 = vector.load %arg4[%c0_64, %c0_65, %c0_66] : memref<1x8x128xf32, #tpu.memory_space<vmem>>, vector<1x8x128xf32>
    %173 = vector.shape_cast %172 : vector<1x8x128xf32> to vector<8x128xf32>
    %174 = arith.addf %173, %167 : vector<8x128xf32>
    %c0_67 = arith.constant 0 : index
    %c0_68 = arith.constant 0 : index
    %c0_69 = arith.constant 0 : index
    %175 = vector.load %arg4[%c0_67, %c0_68, %c0_69] : memref<1x8x128xf32, #tpu.memory_space<vmem>>, vector<1x8x128xf32>
    %176 = vector.shape_cast %175 : vector<1x8x128xf32> to vector<8x128xf32>
    %177 = vector.shape_cast %174 : vector<8x128xf32> to vector<1x8x128xf32>
    tpu.vector_store %arg4[%c0_67, %c0_68, %c0_69], %177 {strides = array<i32>} : memref<1x8x128xf32, #tpu.memory_space<vmem>>, vector<1x8x128xf32>,
    %c0_70 = arith.constant 0 : index
    %c0_71 = arith.constant 0 : index
    %c0_72 = arith.constant 0 : index
    %178 = vector.load %arg5[%c0_70, %c0_71, %c0_72] : memref<1x8x128xf32, #tpu.memory_space<vmem>>, vector<1x8x128xf32>
    %179 = vector.shape_cast %178 : vector<1x8x128xf32> to vector<8x128xf32>
    %180 = arith.addf %179, %171 : vector<8x128xf32>
    %c0_73 = arith.constant 0 : index
    %c0_74 = arith.constant 0 : index
    %c0_75 = arith.constant 0 : index
    %181 = vector.load %arg5[%c0_73, %c0_74, %c0_75] : memref<1x8x128xf32, #tpu.memory_space<vmem>>, vector<1x8x128xf32>
    %182 = vector.shape_cast %181 : vector<1x8x128xf32> to vector<8x128xf32>
    %183 = vector.shape_cast %180 : vector<8x128xf32> to vector<1x8x128xf32>
    tpu.vector_store %arg5[%c0_73, %c0_74, %c0_75], %183 {strides = array<i32>} : memref<1x8x128xf32, #tpu.memory_space<vmem>>, vector<1x8x128xf32>,
    return
  }
  func.func @transform_0(%arg0: i32, %arg1: i32) -> (i32, i32) {
    %c1_i32 = arith.constant 1 : i32
    %0 = arith.muli %arg0, %c1_i32 : i32
    %1 = arith.addi %0, %arg1 : i32
    %c0_i32 = arith.constant 0 : i32
    %c0_i32_0 = arith.constant 0 : i32
    return %1, %c0_i32 : i32, i32
  }
  func.func @transform_1(%arg0: i32, %arg1: i32) -> (i32, i32) {
    %c1_i32 = arith.constant 1 : i32
    %0 = arith.muli %arg0, %c1_i32 : i32
    %1 = arith.addi %0, %arg1 : i32
    %c0_i32 = arith.constant 0 : i32
    %c0_i32_0 = arith.constant 0 : i32
    return %1, %c0_i32 : i32, i32
  }
  func.func @transform_2(%arg0: i32, %arg1: i32) -> (i32, i32, i32) {
    %c0_i32 = arith.constant 0 : i32
    %c0_i32_0 = arith.constant 0 : i32
    %c0_i32_1 = arith.constant 0 : i32
    return %arg0, %c0_i32, %c0_i32_0 : i32, i32, i32
  }
  func.func @transform_3(%arg0: i32, %arg1: i32) -> (i32, i32, i32) {
    %c0_i32 = arith.constant 0 : i32
    %c0_i32_0 = arith.constant 0 : i32
    %c0_i32_1 = arith.constant 0 : i32
    return %arg0, %c0_i32, %c0_i32_0 : i32, i32, i32
  }
}

</mosaic_0001>

<llo_original>
// kernel: tpu_custom_call.1
$region0: #{tpu_custom_call.1}
  #allocation0 [shape = 'u32[]', space=smem, size = 0x4, offset = 0x4, fixed_abs, tag = 'smem constant byte address 0x4 - core index']
  #allocation1 [shape = 'u32[144,128]{1,0:T(1,128)}', space=vmem, size = 0x12000, scoped, tag = 'internal scratch']
  %s0 = inlined_call_operand.hbm [shape: f32[8192,128], index: 0, kind: input, shape index: {}]
  %s1 = inlined_call_operand.hbm [shape: f32[8192,128], index: 1, kind: input, shape index: {}]
  %s2 = inlined_call_operand.hbm [shape: f32[2,8,128], index: 2, kind: output, shape index: {0}]
  %s3 = inlined_call_operand.hbm [shape: f32[2,8,128], index: 3, kind: output, shape index: {1}]
  %4 = xla_tuple %s2, %s3
  %s5 = sld [smem:[#allocation0]]
  $region61: #{tpu_custom_call.1} parent=0
    _
  %s7 = ssub.s32 1, %s5
  %s8 = scalar_select 0, %s7, %s5
  $region1: #{tpu_custom_call.1} parent=0
    #allocation2 [shape = 'u8[4194304]{0}', space=vmem, size = 0x400000, scoped, tag = 'input window, operand 0']
    #allocation3 [shape = 's32[2]{0}', space=sflag, size = 0x8, scoped, tag = 'scoped memory for tpu_custom_call.1']
    #allocation4 [shape = 's32[2]{0}', space=sflag, size = 0x8, scoped, tag = 'scoped memory for tpu_custom_call.1']
    #allocation5 [shape = 'u8[4194304]{0}', space=vmem, size = 0x400000, scoped, tag = 'input window, operand 1']
    #allocation6 [shape = 's32[2]{0}', space=sflag, size = 0x8, scoped, tag = 'scoped memory for tpu_custom_call.1']
    #allocation7 [shape = 'u8[8192]{0}', space=vmem, size = 0x2000, scoped, tag = 'output window, operand 0']
    #allocation8 [shape = 'u8[8192]{0}', space=vmem, size = 0x2000, scoped, tag = 'output window, operand 1']
    #allocation9 [shape = 's32[2]{0}', space=sflag, size = 0x8, scoped, tag = 'scoped memory for tpu_custom_call.1']
    %9 = vsyncpa [#allocation3], 0
    %s10 = scalar_lea.sflag [#allocation3], 1
    %11 = vsyncpa %s10, 0
    %12 = vsyncpa [#allocation6], 0
    %s13 = scalar_lea.sflag [#allocation6], 1
    %14 = vsyncpa %s13, 0
    %15 = vsyncpa [#allocation4], 0
    %s16 = scalar_lea.sflag [#allocation4], 1
    %17 = vsyncpa %s16, 0
    %18 = vsyncpa [#allocation9], 0
    %s19 = scalar_lea.sflag [#allocation9], 1
    %20 = vsyncpa %s19, 0
    loop: start=0, step=1, limit=4
    $region2: #{tpu_custom_call.1} parent=1 // loop_pre_header
      _
    $region3: #{tpu_custom_call.1} parent=1 // loop_header
      %s22 = sphi 0, %s26
      %p23 = scmp.ge.s32.totalorder %s22, 4
      %s29 = sphi 0, %s41
      %s30 = sphi 0, %s37
      %s31 = sphi 0, %s29
      %s32 = sphi 0, %s30
      %s33 = sphi 0, %s31
      %s34 = sphi 0, %s32
      %s46 = sphi 0, %s48
      %s49 = sphi 0, %s46
      %s50 = sphi 0, %s49
      %s66 = sphi 0, %s50
      %s74 = sphi 0, %s76
      %s77 = sphi 0, %s74
      %s78 = sphi 0, %s77
      %s94 = sphi 0, %s78
      %s100 = sphi 0, %s102
      %s103 = sphi 0, %s100
      %s104 = sphi 0, %s103
      %s120 = sphi 0, %s104
      %s126 = sphi 0, %s128
      %s129 = sphi 0, %s126
      %s130 = sphi 0, %s129
      %s146 = sphi 0, %s130
    $region4: #{tpu_custom_call.1} parent=1 // loop_header_branch
      %25 = sbr.rel (%p23) target = $region8
    $region5: #{tpu_custom_call.1} parent=1 // loop_body
      %s27 = ssub.s32 %s22, 1
      %s28 = ssub.s32 %s22, 2
      %s35 = sadd.s32 1, %s30
      %p36 = scmp.ge.s32.totalorder %s35, 1
      %s37 = scalar_select %p36, 0, %s35
      %s38 = sadd.s32 1, %s29
      %s39 = scalar_select %p36, %s38, %s29
      %p40 = scmp.ge.s32.totalorder %s39, 2
      %s41 = scalar_select %p40, 0, %s39
      %s42 = sadd.s32 %s29, %s30
      %s43 = sadd.s32 %s41, %s37
      %s44 = ssub.s32 %s42, %s43
      %p45 = scmp.eq.s32.totalorder %s44, 0
      %s47 = sadd.s32 %s46, 1
      %s48 = scalar_select %p45, %s46, %s47
      %p51 = pneg %p45
      %p52 = scmp.eq.s32.totalorder %s22, 1
      %p53 = por %p51, %p52
      %p54 = scmp.ne.s32.totalorder %s46, %s49
      %p55 = scmp.eq.s32.totalorder %s22, 0
      %p56 = por %p54, %p55
      %p57 = scmp.ne.s32.totalorder %s46, %s49
      %p58 = scmp.eq.s32.totalorder %s27, 1
      %p59 = por %p57, %p58
      %p60 = scmp.ne.s32.totalorder %s49, %s50
      %p61 = scmp.eq.s32.totalorder %s27, 0
      %p62 = por %p60, %p61
      %p63 = scmp.ne.s32.totalorder %s49, %s50
      %p64 = scmp.eq.s32.totalorder %s28, 1
      %p65 = por %p63, %p64
      %p67 = scmp.ne.s32.totalorder %s50, %s66
      %p68 = scmp.eq.s32.totalorder %s28, 0
      %p69 = por %p67, %p68
      %s70 = sadd.s32 %s29, %s30
      %s71 = sadd.s32 %s41, %s37
      %s72 = ssub.s32 %s70, %s71
      %p73 = scmp.eq.s32.totalorder %s72, 0
      %s75 = sadd.s32 %s74, 1
      %s76 = scalar_select %p73, %s74, %s75
      %p79 = pneg %p73
      %p80 = scmp.eq.s32.totalorder %s22, 1
      %p81 = por %p79, %p80
      %p82 = scmp.ne.s32.totalorder %s74, %s77
      %p83 = scmp.eq.s32.totalorder %s22, 0
      %p84 = por %p82, %p83
      %p85 = scmp.ne.s32.totalorder %s74, %s77
      %p86 = scmp.eq.s32.totalorder %s27, 1
      %p87 = por %p85, %p86
      %p88 = scmp.ne.s32.totalorder %s77, %s78
      %p89 = scmp.eq.s32.totalorder %s27, 0
      %p90 = por %p88, %p89
      %p91 = scmp.ne.s32.totalorder %s77, %s78
      %p92 = scmp.eq.s32.totalorder %s28, 1
      %p93 = por %p91, %p92
      %p95 = scmp.ne.s32.totalorder %s78, %s94
      %p96 = scmp.eq.s32.totalorder %s28, 0
      %p97 = por %p95, %p96
      %s98 = ssub.s32 %s29, %s41
      %p99 = scmp.eq.s32.totalorder %s98, 0
      %s101 = sadd.s32 %s100, 1
      %s102 = scalar_select %p99, %s100, %s101
      %p105 = pneg %p99
      %p106 = scmp.eq.s32.totalorder %s22, 1
      %p107 = por %p105, %p106
      %p108 = scmp.ne.s32.totalorder %s100, %s103
      %p109 = scmp.eq.s32.totalorder %s22, 0
      %p110 = por %p108, %p109
      %p111 = scmp.ne.s32.totalorder %s100, %s103
      %p112 = scmp.eq.s32.totalorder %s27, 1
      %p113 = por %p111, %p112
      %p114 = scmp.ne.s32.totalorder %s103, %s104
      %p115 = scmp.eq.s32.totalorder %s27, 0
      %p116 = por %p114, %p115
      %p117 = scmp.ne.s32.totalorder %s103, %s104
      %p118 = scmp.eq.s32.totalorder %s28, 1
      %p119 = por %p117, %p118
      %p121 = scmp.ne.s32.totalorder %s104, %s120
      %p122 = scmp.eq.s32.totalorder %s28, 0
      %p123 = por %p121, %p122
      %s124 = ssub.s32 %s29, %s41
      %p125 = scmp.eq.s32.totalorder %s124, 0
      %s127 = sadd.s32 %s126, 1
      %s128 = scalar_select %p125, %s126, %s127
      %p131 = pneg %p125
      %p132 = scmp.eq.s32.totalorder %s22, 1
      %p133 = por %p131, %p132
      %p134 = scmp.ne.s32.totalorder %s126, %s129
      %p135 = scmp.eq.s32.totalorder %s22, 0
      %p136 = por %p134, %p135
      %p137 = scmp.ne.s32.totalorder %s126, %s129
      %p138 = scmp.eq.s32.totalorder %s27, 1
      %p139 = por %p137, %p138
      %p140 = scmp.ne.s32.totalorder %s129, %s130
      %p141 = scmp.eq.s32.totalorder %s27, 0
      %p142 = por %p140, %p141
      %p143 = scmp.ne.s32.totalorder %s129, %s130
      %p144 = scmp.eq.s32.totalorder %s28, 1
      %p145 = por %p143, %p144
      %p147 = scmp.ne.s32.totalorder %s130, %s146
      %p148 = scmp.eq.s32.totalorder %s28, 0
      %p149 = por %p147, %p148
      %p150 = scmp.le.s32.totalorder 1, %s22
      %p151 = scmp.lt.s32.totalorder %s22, 3
      %p152 = pnand %p150, %p151
      %p153 = pneg %p152
      // Predicated region
      $region9: #{tpu_custom_call.1} parent=5 // pred_check
        _
      $region10: #{tpu_custom_call.1} parent=5 // pred_check_branch
        %155 = sbr.rel (%p152) target = $region12
      $region11: #{tpu_custom_call.1} parent=5 // pred_region
        %s156 = ssub.s32 %s22, 1
      $region12: #{tpu_custom_call.1} parent=5 // pred_fallthru
        _
      %p157 = scmp.lt.s32.totalorder %s22, 2
      // Predicated region
      $region13: #{tpu_custom_call.1} parent=5 // pred_check
        %p158 = pneg %p157
      $region14: #{tpu_custom_call.1} parent=5 // pred_check_branch
        %160 = sbr.rel (%p158) target = $region16
      $region15: #{tpu_custom_call.1} parent=5 // pred_region
        // Predicated region
        $region17: #{tpu_custom_call.1} parent=15 // pred_check
          %p161 = pneg %p56
        $region18: #{tpu_custom_call.1} parent=15 // pred_check_branch
          %163 = sbr.rel (%p161) target = $region20
        $region19: #{tpu_custom_call.1} parent=15 // pred_region
          %s164 = sand.u32 %s46, 1
          %s165 = scalar_lea.sflag [#allocation3], %s164
          %s166 = sand.u32 %s46, 1
          %s167 = smul.addr %s166, 4096
          %s168 = scalar_lea.vmem [#allocation2], %s167
          %s169 = sadd.s32 %s29, %s30
          %s170 = smul.u32 512, %s169
          %s172 = ssub.s32 65536, 65536
          %173 = vsyncadd %s165, %s172
          %s174 = smul.addr %s170, 128
          %s175 = scalar_lea.hbm %s0, %s174
          %s176 = sshll.u32 %s168, 4
          %s177 = int_to_ptr.vmem [resolvable:$true] %s176
          %182 = dma.hbm_to_vmem [thread:$0]  %s175, 65536, %s177, %s165, 128, 128, 8
        $region20: #{tpu_custom_call.1} parent=15 // pred_fallthru
          _
        // Predicated region
        $region21: #{tpu_custom_call.1} parent=15 // pred_check
          %p183 = pneg %p84
        $region22: #{tpu_custom_call.1} parent=15 // pred_check_branch
          %185 = sbr.rel (%p183) target = $region24
        $region23: #{tpu_custom_call.1} parent=15 // pred_region
          %s186 = sand.u32 %s74, 1
          %s187 = scalar_lea.sflag [#allocation6], %s186
          %s188 = sand.u32 %s74, 1
          %s189 = smul.addr %s188, 4096
          %s190 = scalar_lea.vmem [#allocation5], %s189
          %s191 = sadd.s32 %s29, %s30
          %s192 = smul.u32 512, %s191
          %s194 = ssub.s32 65536, 65536
          %195 = vsyncadd %s187, %s194
          %s196 = smul.addr %s192, 128
          %s197 = scalar_lea.hbm %s1, %s196
          %s198 = sshll.u32 %s190, 4
          %s199 = int_to_ptr.vmem [resolvable:$true] %s198
          %204 = dma.hbm_to_vmem [thread:$0]  %s197, 65536, %s199, %s187, 128, 128, 8
        $region24: #{tpu_custom_call.1} parent=15 // pred_fallthru
          _
      $region16: #{tpu_custom_call.1} parent=5 // pred_fallthru
        _
      %p205 = scmp.le.s32.totalorder 1, %s22
      %p206 = scmp.lt.s32.totalorder %s22, 3
      %p207 = pnand %p205, %p206
      %p208 = pneg %p207
      // Predicated region
      $region25: #{tpu_custom_call.1} parent=5 // pred_check
        _
      $region26: #{tpu_custom_call.1} parent=5 // pred_check_branch
        %210 = sbr.rel (%p207) target = $region28
      $region27: #{tpu_custom_call.1} parent=5 // pred_region
        %s211 = ssub.s32 %s22, 1
        %s212 = sand.u32 %s49, 1
        %s213 = scalar_lea.sflag [#allocation3], %s212
        %s214 = sand.u32 %s49, 1
        %s215 = smul.addr %s214, 4096
        %s216 = scalar_lea.vmem [#allocation2], %s215
        // Predicated region
        $region29: #{tpu_custom_call.1} parent=27 // pred_check
          %p217 = pneg %p62
        $region30: #{tpu_custom_call.1} parent=27 // pred_check_branch
          %219 = sbr.rel (%p217) target = $region32
        $region31: #{tpu_custom_call.1} parent=27 // pred_region
          %220 = dma.done %s213, 65536
        $region32: #{tpu_custom_call.1} parent=27 // pred_fallthru
          _
        %s221 = sand.u32 %s77, 1
        %s222 = scalar_lea.sflag [#allocation6], %s221
        %s223 = sand.u32 %s77, 1
        %s224 = smul.addr %s223, 4096
        %s225 = scalar_lea.vmem [#allocation5], %s224
        // Predicated region
        $region33: #{tpu_custom_call.1} parent=27 // pred_check
          %p226 = pneg %p90
        $region34: #{tpu_custom_call.1} parent=27 // pred_check_branch
          %228 = sbr.rel (%p226) target = $region36
        $region35: #{tpu_custom_call.1} parent=27 // pred_region
          %229 = dma.done %s222, 65536
        $region36: #{tpu_custom_call.1} parent=27 // pred_fallthru
          _
        %s230 = sand.u32 %s49, 1
        %s231 = scalar_lea.sflag [#allocation3], %s230
        %s232 = sand.u32 %s49, 1
        %s233 = smul.addr %s232, 4096
        %s234 = scalar_lea.vmem [#allocation2], %s233
        %p235 = pneg %p62
        %p236 = pneg %p59
        %s237 = sand.u32 %s77, 1
        %s238 = scalar_lea.sflag [#allocation6], %s237
        %s239 = sand.u32 %s77, 1
        %s240 = smul.addr %s239, 4096
        %s241 = scalar_lea.vmem [#allocation5], %s240
        %p242 = pneg %p90
        %p243 = pneg %p87
        %p244 = pneg %p116
        %p245 = pneg %p113
        %s246 = sand.u32 %s103, 1
        %s247 = scalar_lea.sflag [#allocation4], %s246
        %s248 = sand.u32 %s103, 1
        %s249 = smul.addr %s248, 8
        %s250 = scalar_lea.vmem [#allocation7], %s249
        %p251 = pneg %p142
        %p252 = pneg %p139
        %s253 = sand.u32 %s129, 1
        %s254 = scalar_lea.sflag [#allocation9], %s253
        %s255 = sand.u32 %s129, 1
        %s256 = smul.addr %s255, 8
        %s257 = scalar_lea.vmem [#allocation8], %s256
        %s258 = sadd.s32 %s31, %s32
        %s259 = smul.u32 512, %s258
        %s260 = sadd.s32 %s31, %s32
        %s261 = smul.u32 512, %s260
        %p262 = scmp.eq.s32.totalorder %s32, 0
        // Predicated region
        $region37: #{tpu_custom_call.1} parent=27 // pred_check
          %p263 = pneg %p262
        $region38: #{tpu_custom_call.1} parent=27 // pred_check_branch
          %265 = sbr.rel (%p263) target = $region40
        $region39: #{tpu_custom_call.1} parent=27 // pred_region
          %266 = vst [vmem:[%s250] sm:$0xff] 0.0
          %267 = vst [vmem:[%s257] sm:$0xff] 0.0
        $region40: #{tpu_custom_call.1} parent=27 // pred_fallthru
          _
        %v268 = vld [vmem:[%s216] sm:$0xff]
        %v269 = vld [vmem:[%s216 + $0x8] sm:$0xff]
        %v270 = vld [vmem:[%s216 + $0x10] sm:$0xff]
        %v271 = vld [vmem:[%s216 + $0x18] sm:$0xff]
        %v272 = vld [vmem:[%s216 + $0x20] sm:$0xff]
        %v273 = vld [vmem:[%s216 + $0x28] sm:$0xff]
        %v274 = vld [vmem:[%s216 + $0x30] sm:$0xff]
        %v275 = vld [vmem:[%s216 + $0x38] sm:$0xff]
        %v276 = vld [vmem:[%s216 + $0x40] sm:$0xff]
        %v277 = vld [vmem:[%s216 + $0x48] sm:$0xff]
        %v278 = vld [vmem:[%s216 + $0x50] sm:$0xff]
        %v279 = vld [vmem:[%s216 + $0x58] sm:$0xff]
        %v280 = vld [vmem:[%s216 + $0x60] sm:$0xff]
        %v281 = vld [vmem:[%s216 + $0x68] sm:$0xff]
        %v282 = vld [vmem:[%s216 + $0x70] sm:$0xff]
        %v283 = vld [vmem:[%s216 + $0x78] sm:$0xff]
        %v284 = vld [vmem:[%s216 + $0x80] sm:$0xff]
        %v285 = vld [vmem:[%s216 + $0x88] sm:$0xff]
        %v286 = vld [vmem:[%s216 + $0x90] sm:$0xff]
        %v287 = vld [vmem:[%s216 + $0x98] sm:$0xff]
        %v288 = vld [vmem:[%s216 + $0xa0] sm:$0xff]
        %v289 = vld [vmem:[%s216 + $0xa8] sm:$0xff]
        %v290 = vld [vmem:[%s216 + $0xb0] sm:$0xff]
        %v291 = vld [vmem:[%s216 + $0xb8] sm:$0xff]
        %v292 = vld [vmem:[%s216 + $0xc0] sm:$0xff]
        %v293 = vld [vmem:[%s216 + $0xc8] sm:$0xff]
        %v294 = vld [vmem:[%s216 + $0xd0] sm:$0xff]
        %v295 = vld [vmem:[%s216 + $0xd8] sm:$0xff]
        %v296 = vld [vmem:[%s216 + $0xe0] sm:$0xff]
        %v297 = vld [vmem:[%s216 + $0xe8] sm:$0xff]
        %v298 = vld [vmem:[%s216 + $0xf0] sm:$0xff]
        %v299 = vld [vmem:[%s216 + $0xf8] sm:$0xff]
        %v300 = vld [vmem:[%s216 + $0x100] sm:$0xff]
        %v301 = vld [vmem:[%s216 + $0x108] sm:$0xff]
        %v302 = vld [vmem:[%s216 + $0x110] sm:$0xff]
        %v303 = vld [vmem:[%s216 + $0x118] sm:$0xff]
        %v304 = vld [vmem:[%s216 + $0x120] sm:$0xff]
        %v305 = vld [vmem:[%s216 + $0x128] sm:$0xff]
        %v306 = vld [vmem:[%s216 + $0x130] sm:$0xff]
        %v307 = vld [vmem:[%s216 + $0x138] sm:$0xff]
        %v308 = vld [vmem:[%s216 + $0x140] sm:$0xff]
        %v309 = vld [vmem:[%s216 + $0x148] sm:$0xff]
        %v310 = vld [vmem:[%s216 + $0x150] sm:$0xff]
        %v311 = vld [vmem:[%s216 + $0x158] sm:$0xff]
        %v312 = vld [vmem:[%s216 + $0x160] sm:$0xff]
        %v313 = vld [vmem:[%s216 + $0x168] sm:$0xff]
        %v314 = vld [vmem:[%s216 + $0x170] sm:$0xff]
        %v315 = vld [vmem:[%s216 + $0x178] sm:$0xff]
        %v316 = vld [vmem:[%s216 + $0x180] sm:$0xff]
        %v317 = vld [vmem:[%s216 + $0x188] sm:$0xff]
        %v318 = vld [vmem:[%s216 + $0x190] sm:$0xff]
        %v319 = vld [vmem:[%s216 + $0x198] sm:$0xff]
        %v320 = vld [vmem:[%s216 + $0x1a0] sm:$0xff]
        %v321 = vld [vmem:[%s216 + $0x1a8] sm:$0xff]
        %v322 = vld [vmem:[%s216 + $0x1b0] sm:$0xff]
        %v323 = vld [vmem:[%s216 + $0x1b8] sm:$0xff]
        %v324 = vld [vmem:[%s216 + $0x1c0] sm:$0xff]
        %v325 = vld [vmem:[%s216 + $0x1c8] sm:$0xff]
        %v326 = vld [vmem:[%s216 + $0x1d0] sm:$0xff]
        %v327 = vld [vmem:[%s216 + $0x1d8] sm:$0xff]
        %v328 = vld [vmem:[%s216 + $0x1e0] sm:$0xff]
        %v329 = vld [vmem:[%s216 + $0x1e8] sm:$0xff]
        %v330 = vld [vmem:[%s216 + $0x1f0] sm:$0xff]
        %v331 = vld [vmem:[%s216 + $0x1f8] sm:$0xff]
        %v332 = vld [vmem:[%s225] sm:$0xff]
        %v333 = vld [vmem:[%s225 + $0x8] sm:$0xff]
        %v334 = vld [vmem:[%s225 + $0x10] sm:$0xff]
        %v335 = vld [vmem:[%s225 + $0x18] sm:$0xff]
        %v336 = vld [vmem:[%s225 + $0x20] sm:$0xff]
        %v337 = vld [vmem:[%s225 + $0x28] sm:$0xff]
        %v338 = vld [vmem:[%s225 + $0x30] sm:$0xff]
        %v339 = vld [vmem:[%s225 + $0x38] sm:$0xff]
        %v340 = vld [vmem:[%s225 + $0x40] sm:$0xff]
        %v341 = vld [vmem:[%s225 + $0x48] sm:$0xff]
        %v342 = vld [vmem:[%s225 + $0x50] sm:$0xff]
        %v343 = vld [vmem:[%s225 + $0x58] sm:$0xff]
        %v344 = vld [vmem:[%s225 + $0x60] sm:$0xff]
        %v345 = vld [vmem:[%s225 + $0x68] sm:$0xff]
        %v346 = vld [vmem:[%s225 + $0x70] sm:$0xff]
        %v347 = vld [vmem:[%s225 + $0x78] sm:$0xff]
        %v348 = vld [vmem:[%s225 + $0x80] sm:$0xff]
        %v349 = vld [vmem:[%s225 + $0x88] sm:$0xff]
        %v350 = vld [vmem:[%s225 + $0x90] sm:$0xff]
        %v351 = vld [vmem:[%s225 + $0x98] sm:$0xff]
        %v352 = vld [vmem:[%s225 + $0xa0] sm:$0xff]
        %v353 = vld [vmem:[%s225 + $0xa8] sm:$0xff]
        %v354 = vld [vmem:[%s225 + $0xb0] sm:$0xff]
        %v355 = vld [vmem:[%s225 + $0xb8] sm:$0xff]
        %v356 = vld [vmem:[%s225 + $0xc0] sm:$0xff]
        %v357 = vld [vmem:[%s225 + $0xc8] sm:$0xff]
        %v358 = vld [vmem:[%s225 + $0xd0] sm:$0xff]
        %v359 = vld [vmem:[%s225 + $0xd8] sm:$0xff]
        %v360 = vld [vmem:[%s225 + $0xe0] sm:$0xff]
        %v361 = vld [vmem:[%s225 + $0xe8] sm:$0xff]
        %v362 = vld [vmem:[%s225 + $0xf0] sm:$0xff]
        %v363 = vld [vmem:[%s225 + $0xf8] sm:$0xff]
        %v364 = vld [vmem:[%s225 + $0x100] sm:$0xff]
        %v365 = vld [vmem:[%s225 + $0x108] sm:$0xff]
        %v366 = vld [vmem:[%s225 + $0x110] sm:$0xff]
        %v367 = vld [vmem:[%s225 + $0x118] sm:$0xff]
        %v368 = vld [vmem:[%s225 + $0x120] sm:$0xff]
        %v369 = vld [vmem:[%s225 + $0x128] sm:$0xff]
        %v370 = vld [vmem:[%s225 + $0x130] sm:$0xff]
        %v371 = vld [vmem:[%s225 + $0x138] sm:$0xff]
        %v372 = vld [vmem:[%s225 + $0x140] sm:$0xff]
        %v373 = vld [vmem:[%s225 + $0x148] sm:$0xff]
        %v374 = vld [vmem:[%s225 + $0x150] sm:$0xff]
        %v375 = vld [vmem:[%s225 + $0x158] sm:$0xff]
        %v376 = vld [vmem:[%s225 + $0x160] sm:$0xff]
        %v377 = vld [vmem:[%s225 + $0x168] sm:$0xff]
        %v378 = vld [vmem:[%s225 + $0x170] sm:$0xff]
        %v379 = vld [vmem:[%s225 + $0x178] sm:$0xff]
        %v380 = vld [vmem:[%s225 + $0x180] sm:$0xff]
        %v381 = vld [vmem:[%s225 + $0x188] sm:$0xff]
        %v382 = vld [vmem:[%s225 + $0x190] sm:$0xff]
        %v383 = vld [vmem:[%s225 + $0x198] sm:$0xff]
        %v384 = vld [vmem:[%s225 + $0x1a0] sm:$0xff]
        %v385 = vld [vmem:[%s225 + $0x1a8] sm:$0xff]
        %v386 = vld [vmem:[%s225 + $0x1b0] sm:$0xff]
        %v387 = vld [vmem:[%s225 + $0x1b8] sm:$0xff]
        %v388 = vld [vmem:[%s225 + $0x1c0] sm:$0xff]
        %v389 = vld [vmem:[%s225 + $0x1c8] sm:$0xff]
        %v390 = vld [vmem:[%s225 + $0x1d0] sm:$0xff]
        %v391 = vld [vmem:[%s225 + $0x1d8] sm:$0xff]
        %v392 = vld [vmem:[%s225 + $0x1e0] sm:$0xff]
        %v393 = vld [vmem:[%s225 + $0x1e8] sm:$0xff]
        %v394 = vld [vmem:[%s225 + $0x1f0] sm:$0xff]
        %v395 = vld [vmem:[%s225 + $0x1f8] sm:$0xff]
        %v396 = vmul.f32 %v268, 0.5
        %v397 = vmul.f32 %v269, 0.5
        %v398 = vmul.f32 %v270, 0.5
        %v399 = vmul.f32 %v271, 0.5
        %v400 = vmul.f32 %v272, 0.5
        %v401 = vmul.f32 %v273, 0.5
        %v402 = vmul.f32 %v274, 0.5
        %v403 = vmul.f32 %v275, 0.5
        %v404 = vmul.f32 %v276, 0.5
        %v405 = vmul.f32 %v277, 0.5
        %v406 = vmul.f32 %v278, 0.5
        %v407 = vmul.f32 %v279, 0.5
        %v408 = vmul.f32 %v280, 0.5
        %v409 = vmul.f32 %v281, 0.5
        %v410 = vmul.f32 %v282, 0.5
        %v411 = vmul.f32 %v283, 0.5
        %v412 = vmul.f32 %v284, 0.5
        %v413 = vmul.f32 %v285, 0.5
        %v414 = vmul.f32 %v286, 0.5
        %v415 = vmul.f32 %v287, 0.5
        %v416 = vmul.f32 %v288, 0.5
        %v417 = vmul.f32 %v289, 0.5
        %v418 = vmul.f32 %v290, 0.5
        %v419 = vmul.f32 %v291, 0.5
        %v420 = vmul.f32 %v292, 0.5
        %v421 = vmul.f32 %v293, 0.5
        %v422 = vmul.f32 %v294, 0.5
        %v423 = vmul.f32 %v295, 0.5
        %v424 = vmul.f32 %v296, 0.5
        %v425 = vmul.f32 %v297, 0.5
        %v426 = vmul.f32 %v298, 0.5
        %v427 = vmul.f32 %v299, 0.5
        %v428 = vmul.f32 %v300, 0.5
        %v429 = vmul.f32 %v301, 0.5
        %v430 = vmul.f32 %v302, 0.5
        %v431 = vmul.f32 %v303, 0.5
        %v432 = vmul.f32 %v304, 0.5
        %v433 = vmul.f32 %v305, 0.5
        %v434 = vmul.f32 %v306, 0.5
        %v435 = vmul.f32 %v307, 0.5
        %v436 = vmul.f32 %v308, 0.5
        %v437 = vmul.f32 %v309, 0.5
        %v438 = vmul.f32 %v310, 0.5
        %v439 = vmul.f32 %v311, 0.5
        %v440 = vmul.f32 %v312, 0.5
        %v441 = vmul.f32 %v313, 0.5
        %v442 = vmul.f32 %v314, 0.5
        %v443 = vmul.f32 %v315, 0.5
        %v444 = vmul.f32 %v316, 0.5
        %v445 = vmul.f32 %v317, 0.5
        %v446 = vmul.f32 %v318, 0.5
        %v447 = vmul.f32 %v319, 0.5
        %v448 = vmul.f32 %v320, 0.5
        %v449 = vmul.f32 %v321, 0.5
        %v450 = vmul.f32 %v322, 0.5
        %v451 = vmul.f32 %v323, 0.5
        %v452 = vmul.f32 %v324, 0.5
        %v453 = vmul.f32 %v325, 0.5
        %v454 = vmul.f32 %v326, 0.5
        %v455 = vmul.f32 %v327, 0.5
        %v456 = vmul.f32 %v328, 0.5
        %v457 = vmul.f32 %v329, 0.5
        %v458 = vmul.f32 %v330, 0.5
        %v459 = vmul.f32 %v331, 0.5
        %v460 = vtanh.pop %v396
        %v461 = vtanh.pop %v397
        %v462 = vtanh.pop %v398
        %v463 = vtanh.pop %v399
        %v464 = vtanh.pop %v400
        %v465 = vtanh.pop %v401
        %v466 = vtanh.pop %v402
        %v467 = vtanh.pop %v403
        %v468 = vtanh.pop %v404
        %v469 = vtanh.pop %v405
        %v470 = vtanh.pop %v406
        %v471 = vtanh.pop %v407
        %v472 = vtanh.pop %v408
        %v473 = vtanh.pop %v409
        %v474 = vtanh.pop %v410
        %v475 = vtanh.pop %v411
        %v476 = vtanh.pop %v412
        %v477 = vtanh.pop %v413
        %v478 = vtanh.pop %v414
        %v479 = vtanh.pop %v415
        %v480 = vtanh.pop %v416
        %v481 = vtanh.pop %v417
        %v482 = vtanh.pop %v418
        %v483 = vtanh.pop %v419
        %v484 = vtanh.pop %v420
        %v485 = vtanh.pop %v421
        %v486 = vtanh.pop %v422
        %v487 = vtanh.pop %v423
        %v488 = vtanh.pop %v424
        %v489 = vtanh.pop %v425
        %v490 = vtanh.pop %v426
        %v491 = vtanh.pop %v427
        %v492 = vtanh.pop %v428
        %v493 = vtanh.pop %v429
        %v494 = vtanh.pop %v430
        %v495 = vtanh.pop %v431
        %v496 = vtanh.pop %v432
        %v497 = vtanh.pop %v433
        %v498 = vtanh.pop %v434
        %v499 = vtanh.pop %v435
        %v500 = vtanh.pop %v436
        %v501 = vtanh.pop %v437
        %v502 = vtanh.pop %v438
        %v503 = vtanh.pop %v439
        %v504 = vtanh.pop %v440
        %v505 = vtanh.pop %v441
        %v506 = vtanh.pop %v442
        %v507 = vtanh.pop %v443
        %v508 = vtanh.pop %v444
        %v509 = vtanh.pop %v445
        %v510 = vtanh.pop %v446
        %v511 = vtanh.pop %v447
        %v512 = vtanh.pop %v448
        %v513 = vtanh.pop %v449
        %v514 = vtanh.pop %v450
        %v515 = vtanh.pop %v451
        %v516 = vtanh.pop %v452
        %v517 = vtanh.pop %v453
        %v518 = vtanh.pop %v454
        %v519 = vtanh.pop %v455
        %v520 = vtanh.pop %v456
        %v521 = vtanh.pop %v457
        %v522 = vtanh.pop %v458
        %v523 = vtanh.pop %v459
        %v524 = vmul.f32 %v460, 0.5
        %v525 = vmul.f32 %v461, 0.5
        %v526 = vmul.f32 %v462, 0.5
        %v527 = vmul.f32 %v463, 0.5
        %v528 = vmul.f32 %v464, 0.5
        %v529 = vmul.f32 %v465, 0.5
        %v530 = vmul.f32 %v466, 0.5
        %v531 = vmul.f32 %v467, 0.5
        %v532 = vmul.f32 %v468, 0.5
        %v533 = vmul.f32 %v469, 0.5
        %v534 = vmul.f32 %v470, 0.5
        %v535 = vmul.f32 %v471, 0.5
        %v536 = vmul.f32 %v472, 0.5
        %v537 = vmul.f32 %v473, 0.5
        %v538 = vmul.f32 %v474, 0.5
        %v539 = vmul.f32 %v475, 0.5
        %v540 = vmul.f32 %v476, 0.5
        %v541 = vmul.f32 %v477, 0.5
        %v542 = vmul.f32 %v478, 0.5
        %v543 = vmul.f32 %v479, 0.5
        %v544 = vmul.f32 %v480, 0.5
        %v545 = vmul.f32 %v481, 0.5
        %v546 = vmul.f32 %v482, 0.5
        %v547 = vmul.f32 %v483, 0.5
        %v548 = vmul.f32 %v484, 0.5
        %v549 = vmul.f32 %v485, 0.5
        %v550 = vmul.f32 %v486, 0.5
        %v551 = vmul.f32 %v487, 0.5
        %v552 = vmul.f32 %v488, 0.5
        %v553 = vmul.f32 %v489, 0.5
        %v554 = vmul.f32 %v490, 0.5
        %v555 = vmul.f32 %v491, 0.5
        %v556 = vmul.f32 %v492, 0.5
        %v557 = vmul.f32 %v493, 0.5
        %v558 = vmul.f32 %v494, 0.5
        %v559 = vmul.f32 %v495, 0.5
        %v560 = vmul.f32 %v496, 0.5
        %v561 = vmul.f32 %v497, 0.5
        %v562 = vmul.f32 %v498, 0.5
        %v563 = vmul.f32 %v499, 0.5
        %v564 = vmul.f32 %v500, 0.5
        %v565 = vmul.f32 %v501, 0.5
        %v566 = vmul.f32 %v502, 0.5
        %v567 = vmul.f32 %v503, 0.5
        %v568 = vmul.f32 %v504, 0.5
        %v569 = vmul.f32 %v505, 0.5
        %v570 = vmul.f32 %v506, 0.5
        %v571 = vmul.f32 %v507, 0.5
        %v572 = vmul.f32 %v508, 0.5
        %v573 = vmul.f32 %v509, 0.5
        %v574 = vmul.f32 %v510, 0.5
        %v575 = vmul.f32 %v511, 0.5
        %v576 = vmul.f32 %v512, 0.5
        %v577 = vmul.f32 %v513, 0.5
        %v578 = vmul.f32 %v514, 0.5
        %v579 = vmul.f32 %v515, 0.5
        %v580 = vmul.f32 %v516, 0.5
        %v581 = vmul.f32 %v517, 0.5
        %v582 = vmul.f32 %v518, 0.5
        %v583 = vmul.f32 %v519, 0.5
        %v584 = vmul.f32 %v520, 0.5
        %v585 = vmul.f32 %v521, 0.5
        %v586 = vmul.f32 %v522, 0.5
        %v587 = vmul.f32 %v523, 0.5
        %v588 = vadd.f32 %v524, 0.5
        %v589 = vadd.f32 %v525, 0.5
        %v590 = vadd.f32 %v526, 0.5
        %v591 = vadd.f32 %v527, 0.5
        %v592 = vadd.f32 %v528, 0.5
        %v593 = vadd.f32 %v529, 0.5
        %v594 = vadd.f32 %v530, 0.5
        %v595 = vadd.f32 %v531, 0.5
        %v596 = vadd.f32 %v532, 0.5
        %v597 = vadd.f32 %v533, 0.5
        %v598 = vadd.f32 %v534, 0.5
        %v599 = vadd.f32 %v535, 0.5
        %v600 = vadd.f32 %v536, 0.5
        %v601 = vadd.f32 %v537, 0.5
        %v602 = vadd.f32 %v538, 0.5
        %v603 = vadd.f32 %v539, 0.5
        %v604 = vadd.f32 %v540, 0.5
        %v605 = vadd.f32 %v541, 0.5
        %v606 = vadd.f32 %v542, 0.5
        %v607 = vadd.f32 %v543, 0.5
        %v608 = vadd.f32 %v544, 0.5
        %v609 = vadd.f32 %v545, 0.5
        %v610 = vadd.f32 %v546, 0.5
        %v611 = vadd.f32 %v547, 0.5
        %v612 = vadd.f32 %v548, 0.5
        %v613 = vadd.f32 %v549, 0.5
        %v614 = vadd.f32 %v550, 0.5
        %v615 = vadd.f32 %v551, 0.5
        %v616 = vadd.f32 %v552, 0.5
        %v617 = vadd.f32 %v553, 0.5
        %v618 = vadd.f32 %v554, 0.5
        %v619 = vadd.f32 %v555, 0.5
        %v620 = vadd.f32 %v556, 0.5
        %v621 = vadd.f32 %v557, 0.5
        %v622 = vadd.f32 %v558, 0.5
        %v623 = vadd.f32 %v559, 0.5
        %v624 = vadd.f32 %v560, 0.5
        %v625 = vadd.f32 %v561, 0.5
        %v626 = vadd.f32 %v562, 0.5
        %v627 = vadd.f32 %v563, 0.5
        %v628 = vadd.f32 %v564, 0.5
        %v629 = vadd.f32 %v565, 0.5
        %v630 = vadd.f32 %v566, 0.5
        %v631 = vadd.f32 %v567, 0.5
        %v632 = vadd.f32 %v568, 0.5
        %v633 = vadd.f32 %v569, 0.5
        %v634 = vadd.f32 %v570, 0.5
        %v635 = vadd.f32 %v571, 0.5
        %v636 = vadd.f32 %v572, 0.5
        %v637 = vadd.f32 %v573, 0.5
        %v638 = vadd.f32 %v574, 0.5
        %v639 = vadd.f32 %v575, 0.5
        %v640 = vadd.f32 %v576, 0.5
        %v641 = vadd.f32 %v577, 0.5
        %v642 = vadd.f32 %v578, 0.5
        %v643 = vadd.f32 %v579, 0.5
        %v644 = vadd.f32 %v580, 0.5
        %v645 = vadd.f32 %v581, 0.5
        %v646 = vadd.f32 %v582, 0.5
        %v647 = vadd.f32 %v583, 0.5
        %v648 = vadd.f32 %v584, 0.5
        %v649 = vadd.f32 %v585, 0.5
        %v650 = vadd.f32 %v586, 0.5
        %v651 = vadd.f32 %v587, 0.5
        %v652 = vmul.f32 %v588, %v332
        %v653 = vmul.f32 %v589, %v333
        %v654 = vmul.f32 %v590, %v334
        %v655 = vmul.f32 %v591, %v335
        %v656 = vmul.f32 %v592, %v336
        %v657 = vmul.f32 %v593, %v337
        %v658 = vmul.f32 %v594, %v338
        %v659 = vmul.f32 %v595, %v339
        %v660 = vmul.f32 %v596, %v340
        %v661 = vmul.f32 %v597, %v341
        %v662 = vmul.f32 %v598, %v342
        %v663 = vmul.f32 %v599, %v343
        %v664 = vmul.f32 %v600, %v344
        %v665 = vmul.f32 %v601, %v345
        %v666 = vmul.f32 %v602, %v346
        %v667 = vmul.f32 %v603, %v347
        %v668 = vmul.f32 %v604, %v348
        %v669 = vmul.f32 %v605, %v349
        %v670 = vmul.f32 %v606, %v350
        %v671 = vmul.f32 %v607, %v351
        %v672 = vmul.f32 %v608, %v352
        %v673 = vmul.f32 %v609, %v353
        %v674 = vmul.f32 %v610, %v354
        %v675 = vmul.f32 %v611, %v355
        %v676 = vmul.f32 %v612, %v356
        %v677 = vmul.f32 %v613, %v357
        %v678 = vmul.f32 %v614, %v358
        %v679 = vmul.f32 %v615, %v359
        %v680 = vmul.f32 %v616, %v360
        %v681 = vmul.f32 %v617, %v361
        %v682 = vmul.f32 %v618, %v362
        %v683 = vmul.f32 %v619, %v363
        %v684 = vmul.f32 %v620, %v364
        %v685 = vmul.f32 %v621, %v365
        %v686 = vmul.f32 %v622, %v366
        %v687 = vmul.f32 %v623, %v367
        %v688 = vmul.f32 %v624, %v368
        %v689 = vmul.f32 %v625, %v369
        %v690 = vmul.f32 %v626, %v370
        %v691 = vmul.f32 %v627, %v371
        %v692 = vmul.f32 %v628, %v372
        %v693 = vmul.f32 %v629, %v373
        %v694 = vmul.f32 %v630, %v374
        %v695 = vmul.f32 %v631, %v375
        %v696 = vmul.f32 %v632, %v376
        %v697 = vmul.f32 %v633, %v377
        %v698 = vmul.f32 %v634, %v378
        %v699 = vmul.f32 %v635, %v379
        %v700 = vmul.f32 %v636, %v380
        %v701 = vmul.f32 %v637, %v381
        %v702 = vmul.f32 %v638, %v382
        %v703 = vmul.f32 %v639, %v383
        %v704 = vmul.f32 %v640, %v384
        %v705 = vmul.f32 %v641, %v385
        %v706 = vmul.f32 %v642, %v386
        %v707 = vmul.f32 %v643, %v387
        %v708 = vmul.f32 %v644, %v388
        %v709 = vmul.f32 %v645, %v389
        %v710 = vmul.f32 %v646, %v390
        %v711 = vmul.f32 %v647, %v391
        %v712 = vmul.f32 %v648, %v392
        %v713 = vmul.f32 %v649, %v393
        %v714 = vmul.f32 %v650, %v394
        %v715 = vmul.f32 %v651, %v395
        %v716 = vadd.f32 %v652, %v653
        %v717 = vadd.f32 %v716, %v654
        %v718 = vadd.f32 %v717, %v655
        %v719 = vadd.f32 %v718, %v656
        %v720 = vadd.f32 %v719, %v657
        %v721 = vadd.f32 %v720, %v658
        %v722 = vadd.f32 %v721, %v659
        %v723 = vadd.f32 %v722, %v660
        %v724 = vadd.f32 %v723, %v661
        %v725 = vadd.f32 %v724, %v662
        %v726 = vadd.f32 %v725, %v663
        %v727 = vadd.f32 %v726, %v664
        %v728 = vadd.f32 %v727, %v665
        %v729 = vadd.f32 %v728, %v666
        %v730 = vadd.f32 %v729, %v667
        %v731 = vadd.f32 %v730, %v668
        %v732 = vadd.f32 %v731, %v669
        %v733 = vadd.f32 %v732, %v670
        %v734 = vadd.f32 %v733, %v671
        %v735 = vadd.f32 %v734, %v672
        %v736 = vadd.f32 %v735, %v673
        %v737 = vadd.f32 %v736, %v674
        %v738 = vadd.f32 %v737, %v675
        %v739 = vadd.f32 %v738, %v676
        %v740 = vadd.f32 %v739, %v677
        %v741 = vadd.f32 %v740, %v678
        %v742 = vadd.f32 %v741, %v679
        %v743 = vadd.f32 %v742, %v680
        %v744 = vadd.f32 %v743, %v681
        %v745 = vadd.f32 %v744, %v682
        %v746 = vadd.f32 %v745, %v683
        %v747 = vadd.f32 %v746, %v684
        %v748 = vadd.f32 %v747, %v685
        %v749 = vadd.f32 %v748, %v686
        %v750 = vadd.f32 %v749, %v687
        %v751 = vadd.f32 %v750, %v688
        %v752 = vadd.f32 %v751, %v689
        %v753 = vadd.f32 %v752, %v690
        %v754 = vadd.f32 %v753, %v691
        %v755 = vadd.f32 %v754, %v692
        %v756 = vadd.f32 %v755, %v693
        %v757 = vadd.f32 %v756, %v694
        %v758 = vadd.f32 %v757, %v695
        %v759 = vadd.f32 %v758, %v696
        %v760 = vadd.f32 %v759, %v697
        %v761 = vadd.f32 %v760, %v698
        %v762 = vadd.f32 %v761, %v699
        %v763 = vadd.f32 %v762, %v700
        %v764 = vadd.f32 %v763, %v701
        %v765 = vadd.f32 %v764, %v702
        %v766 = vadd.f32 %v765, %v703
        %v767 = vadd.f32 %v766, %v704
        %v768 = vadd.f32 %v767, %v705
        %v769 = vadd.f32 %v768, %v706
        %v770 = vadd.f32 %v769, %v707
        %v771 = vadd.f32 %v770, %v708
        %v772 = vadd.f32 %v771, %v709
        %v773 = vadd.f32 %v772, %v710
        %v774 = vadd.f32 %v773, %v711
        %v775 = vadd.f32 %v774, %v712
        %v776 = vadd.f32 %v775, %v713
        %v777 = vadd.f32 %v776, %v714
        %v778 = vadd.f32 %v777, %v715
        %v779 = vadd.f32 %v778, 0.0
        %v780 = vadd.f32 %v588, %v332
        %v781 = vadd.f32 %v589, %v333
        %v782 = vadd.f32 %v590, %v334
        %v783 = vadd.f32 %v591, %v335
        %v784 = vadd.f32 %v592, %v336
        %v785 = vadd.f32 %v593, %v337
        %v786 = vadd.f32 %v594, %v338
        %v787 = vadd.f32 %v595, %v339
        %v788 = vadd.f32 %v596, %v340
        %v789 = vadd.f32 %v597, %v341
        %v790 = vadd.f32 %v598, %v342
        %v791 = vadd.f32 %v599, %v343
        %v792 = vadd.f32 %v600, %v344
        %v793 = vadd.f32 %v601, %v345
        %v794 = vadd.f32 %v602, %v346
        %v795 = vadd.f32 %v603, %v347
        %v796 = vadd.f32 %v604, %v348
        %v797 = vadd.f32 %v605, %v349
        %v798 = vadd.f32 %v606, %v350
        %v799 = vadd.f32 %v607, %v351
        %v800 = vadd.f32 %v608, %v352
        %v801 = vadd.f32 %v609, %v353
        %v802 = vadd.f32 %v610, %v354
        %v803 = vadd.f32 %v611, %v355
        %v804 = vadd.f32 %v612, %v356
        %v805 = vadd.f32 %v613, %v357
        %v806 = vadd.f32 %v614, %v358
        %v807 = vadd.f32 %v615, %v359
        %v808 = vadd.f32 %v616, %v360
        %v809 = vadd.f32 %v617, %v361
        %v810 = vadd.f32 %v618, %v362
        %v811 = vadd.f32 %v619, %v363
        %v812 = vadd.f32 %v620, %v364
        %v813 = vadd.f32 %v621, %v365
        %v814 = vadd.f32 %v622, %v366
        %v815 = vadd.f32 %v623, %v367
        %v816 = vadd.f32 %v624, %v368
        %v817 = vadd.f32 %v625, %v369
        %v818 = vadd.f32 %v626, %v370
        %v819 = vadd.f32 %v627, %v371
        %v820 = vadd.f32 %v628, %v372
        %v821 = vadd.f32 %v629, %v373
        %v822 = vadd.f32 %v630, %v374
        %v823 = vadd.f32 %v631, %v375
        %v824 = vadd.f32 %v632, %v376
        %v825 = vadd.f32 %v633, %v377
        %v826 = vadd.f32 %v634, %v378
        %v827 = vadd.f32 %v635, %v379
        %v828 = vadd.f32 %v636, %v380
        %v829 = vadd.f32 %v637, %v381
        %v830 = vadd.f32 %v638, %v382
        %v831 = vadd.f32 %v639, %v383
        %v832 = vadd.f32 %v640, %v384
        %v833 = vadd.f32 %v641, %v385
        %v834 = vadd.f32 %v642, %v386
        %v835 = vadd.f32 %v643, %v387
        %v836 = vadd.f32 %v644, %v388
        %v837 = vadd.f32 %v645, %v389
        %v838 = vadd.f32 %v646, %v390
        %v839 = vadd.f32 %v647, %v391
        %v840 = vadd.f32 %v648, %v392
        %v841 = vadd.f32 %v649, %v393
        %v842 = vadd.f32 %v650, %v394
        %v843 = vadd.f32 %v651, %v395
        %v844 = vadd.f32 %v780, %v781
        %v845 = vadd.f32 %v844, %v782
        %v846 = vadd.f32 %v845, %v783
        %v847 = vadd.f32 %v846, %v784
        %v848 = vadd.f32 %v847, %v785
        %v849 = vadd.f32 %v848, %v786
        %v850 = vadd.f32 %v849, %v787
        %v851 = vadd.f32 %v850, %v788
        %v852 = vadd.f32 %v851, %v789
        %v853 = vadd.f32 %v852, %v790
        %v854 = vadd.f32 %v853, %v791
        %v855 = vadd.f32 %v854, %v792
        %v856 = vadd.f32 %v855, %v793
        %v857 = vadd.f32 %v856, %v794
        %v858 = vadd.f32 %v857, %v795
        %v859 = vadd.f32 %v858, %v796
        %v860 = vadd.f32 %v859, %v797
        %v861 = vadd.f32 %v860, %v798
        %v862 = vadd.f32 %v861, %v799
        %v863 = vadd.f32 %v862, %v800
        %v864 = vadd.f32 %v863, %v801
        %v865 = vadd.f32 %v864, %v802
        %v866 = vadd.f32 %v865, %v803
        %v867 = vadd.f32 %v866, %v804
        %v868 = vadd.f32 %v867, %v805
        %v869 = vadd.f32 %v868, %v806
        %v870 = vadd.f32 %v869, %v807
        %v871 = vadd.f32 %v870, %v808
        %v872 = vadd.f32 %v871, %v809
        %v873 = vadd.f32 %v872, %v810
        %v874 = vadd.f32 %v873, %v811
        %v875 = vadd.f32 %v874, %v812
        %v876 = vadd.f32 %v875, %v813
        %v877 = vadd.f32 %v876, %v814
        %v878 = vadd.f32 %v877, %v815
        %v879 = vadd.f32 %v878, %v816
        %v880 = vadd.f32 %v879, %v817
        %v881 = vadd.f32 %v880, %v818
        %v882 = vadd.f32 %v881, %v819
        %v883 = vadd.f32 %v882, %v820
        %v884 = vadd.f32 %v883, %v821
        %v885 = vadd.f32 %v884, %v822
        %v886 = vadd.f32 %v885, %v823
        %v887 = vadd.f32 %v886, %v824
        %v888 = vadd.f32 %v887, %v825
        %v889 = vadd.f32 %v888, %v826
        %v890 = vadd.f32 %v889, %v827
        %v891 = vadd.f32 %v890, %v828
        %v892 = vadd.f32 %v891, %v829
        %v893 = vadd.f32 %v892, %v830
        %v894 = vadd.f32 %v893, %v831
        %v895 = vadd.f32 %v894, %v832
        %v896 = vadd.f32 %v895, %v833
        %v897 = vadd.f32 %v896, %v834
        %v898 = vadd.f32 %v897, %v835
        %v899 = vadd.f32 %v898, %v836
        %v900 = vadd.f32 %v899, %v837
        %v901 = vadd.f32 %v900, %v838
        %v902 = vadd.f32 %v901, %v839
        %v903 = vadd.f32 %v902, %v840
        %v904 = vadd.f32 %v903, %v841
        %v905 = vadd.f32 %v904, %v842
        %v906 = vadd.f32 %v905, %v843
        %v907 = vadd.f32 %v906, 0.0
        %s908 = scalar_lea.vmem %s216, 512 [#allocation2]
        %v909 = vld [vmem:[%s908] sm:$0xff]
        %v910 = vld [vmem:[%s908 + $0x8] sm:$0xff]
        %v911 = vld [vmem:[%s908 + $0x10] sm:$0xff]
        %v912 = vld [vmem:[%s908 + $0x18] sm:$0xff]
        %v913 = vld [vmem:[%s908 + $0x20] sm:$0xff]
        %v914 = vld [vmem:[%s908 + $0x28] sm:$0xff]
        %v915 = vld [vmem:[%s908 + $0x30] sm:$0xff]
        %v916 = vld [vmem:[%s908 + $0x38] sm:$0xff]
        %v917 = vld [vmem:[%s908 + $0x40] sm:$0xff]
        %v918 = vld [vmem:[%s908 + $0x48] sm:$0xff]
        %v919 = vld [vmem:[%s908 + $0x50] sm:$0xff]
        %v920 = vld [vmem:[%s908 + $0x58] sm:$0xff]
        %v921 = vld [vmem:[%s908 + $0x60] sm:$0xff]
        %v922 = vld [vmem:[%s908 + $0x68] sm:$0xff]
        %v923 = vld [vmem:[%s908 + $0x70] sm:$0xff]
        %v924 = vld [vmem:[%s908 + $0x78] sm:$0xff]
        %v925 = vld [vmem:[%s908 + $0x80] sm:$0xff]
        %v926 = vld [vmem:[%s908 + $0x88] sm:$0xff]
        %v927 = vld [vmem:[%s908 + $0x90] sm:$0xff]
        %v928 = vld [vmem:[%s908 + $0x98] sm:$0xff]
        %v929 = vld [vmem:[%s908 + $0xa0] sm:$0xff]
        %v930 = vld [vmem:[%s908 + $0xa8] sm:$0xff]
        %v931 = vld [vmem:[%s908 + $0xb0] sm:$0xff]
        %v932 = vld [vmem:[%s908 + $0xb8] sm:$0xff]
        %v933 = vld [vmem:[%s908 + $0xc0] sm:$0xff]
        %v934 = vld [vmem:[%s908 + $0xc8] sm:$0xff]
        %v935 = vld [vmem:[%s908 + $0xd0] sm:$0xff]
        %v936 = vld [vmem:[%s908 + $0xd8] sm:$0xff]
        %v937 = vld [vmem:[%s908 + $0xe0] sm:$0xff]
        %v938 = vld [vmem:[%s908 + $0xe8] sm:$0xff]
        %v939 = vld [vmem:[%s908 + $0xf0] sm:$0xff]
        %v940 = vld [vmem:[%s908 + $0xf8] sm:$0xff]
        %v941 = vld [vmem:[%s908 + $0x100] sm:$0xff]
        %v942 = vld [vmem:[%s908 + $0x108] sm:$0xff]
        %v943 = vld [vmem:[%s908 + $0x110] sm:$0xff]
        %v944 = vld [vmem:[%s908 + $0x118] sm:$0xff]
        %v945 = vld [vmem:[%s908 + $0x120] sm:$0xff]
        %v946 = vld [vmem:[%s908 + $0x128] sm:$0xff]
        %v947 = vld [vmem:[%s908 + $0x130] sm:$0xff]
        %v948 = vld [vmem:[%s908 + $0x138] sm:$0xff]
        %v949 = vld [vmem:[%s908 + $0x140] sm:$0xff]
        %v950 = vld [vmem:[%s908 + $0x148] sm:$0xff]
        %v951 = vld [vmem:[%s908 + $0x150] sm:$0xff]
        %v952 = vld [vmem:[%s908 + $0x158] sm:$0xff]
        %v953 = vld [vmem:[%s908 + $0x160] sm:$0xff]
        %v954 = vld [vmem:[%s908 + $0x168] sm:$0xff]
        %v955 = vld [vmem:[%s908 + $0x170] sm:$0xff]
        %v956 = vld [vmem:[%s908 + $0x178] sm:$0xff]
        %v957 = vld [vmem:[%s908 + $0x180] sm:$0xff]
        %v958 = vld [vmem:[%s908 + $0x188] sm:$0xff]
        %v959 = vld [vmem:[%s908 + $0x190] sm:$0xff]
        %v960 = vld [vmem:[%s908 + $0x198] sm:$0xff]
        %v961 = vld [vmem:[%s908 + $0x1a0] sm:$0xff]
        %v962 = vld [vmem:[%s908 + $0x1a8] sm:$0xff]
        %v963 = vld [vmem:[%s908 + $0x1b0] sm:$0xff]
        %v964 = vld [vmem:[%s908 + $0x1b8] sm:$0xff]
        %v965 = vld [vmem:[%s908 + $0x1c0] sm:$0xff]
        %v966 = vld [vmem:[%s908 + $0x1c8] sm:$0xff]
        %v967 = vld [vmem:[%s908 + $0x1d0] sm:$0xff]
        %v968 = vld [vmem:[%s908 + $0x1d8] sm:$0xff]
        %v969 = vld [vmem:[%s908 + $0x1e0] sm:$0xff]
        %v970 = vld [vmem:[%s908 + $0x1e8] sm:$0xff]
        %v971 = vld [vmem:[%s908 + $0x1f0] sm:$0xff]
        %v972 = vld [vmem:[%s908 + $0x1f8] sm:$0xff]
        %s973 = scalar_lea.vmem %s225, 512 [#allocation5]
        %v974 = vld [vmem:[%s973] sm:$0xff]
        %v975 = vld [vmem:[%s973 + $0x8] sm:$0xff]
        %v976 = vld [vmem:[%s973 + $0x10] sm:$0xff]
        %v977 = vld [vmem:[%s973 + $0x18] sm:$0xff]
        %v978 = vld [vmem:[%s973 + $0x20] sm:$0xff]
        %v979 = vld [vmem:[%s973 + $0x28] sm:$0xff]
        %v980 = vld [vmem:[%s973 + $0x30] sm:$0xff]
        %v981 = vld [vmem:[%s973 + $0x38] sm:$0xff]
        %v982 = vld [vmem:[%s973 + $0x40] sm:$0xff]
        %v983 = vld [vmem:[%s973 + $0x48] sm:$0xff]
        %v984 = vld [vmem:[%s973 + $0x50] sm:$0xff]
        %v985 = vld [vmem:[%s973 + $0x58] sm:$0xff]
        %v986 = vld [vmem:[%s973 + $0x60] sm:$0xff]
        %v987 = vld [vmem:[%s973 + $0x68] sm:$0xff]
        %v988 = vld [vmem:[%s973 + $0x70] sm:$0xff]
        %v989 = vld [vmem:[%s973 + $0x78] sm:$0xff]
        %v990 = vld [vmem:[%s973 + $0x80] sm:$0xff]
        %v991 = vld [vmem:[%s973 + $0x88] sm:$0xff]
        %v992 = vld [vmem:[%s973 + $0x90] sm:$0xff]
        %v993 = vld [vmem:[%s973 + $0x98] sm:$0xff]
        %v994 = vld [vmem:[%s973 + $0xa0] sm:$0xff]
        %v995 = vld [vmem:[%s973 + $0xa8] sm:$0xff]
        %v996 = vld [vmem:[%s973 + $0xb0] sm:$0xff]
        %v997 = vld [vmem:[%s973 + $0xb8] sm:$0xff]
        %v998 = vld [vmem:[%s973 + $0xc0] sm:$0xff]
        %v999 = vld [vmem:[%s973 + $0xc8] sm:$0xff]
        %v1000 = vld [vmem:[%s973 + $0xd0] sm:$0xff]
        %v1001 = vld [vmem:[%s973 + $0xd8] sm:$0xff]
        %v1002 = vld [vmem:[%s973 + $0xe0] sm:$0xff]
        %v1003 = vld [vmem:[%s973 + $0xe8] sm:$0xff]
        %v1004 = vld [vmem:[%s973 + $0xf0] sm:$0xff]
        %v1005 = vld [vmem:[%s973 + $0xf8] sm:$0xff]
        %v1006 = vld [vmem:[%s973 + $0x100] sm:$0xff]
        %v1007 = vld [vmem:[%s973 + $0x108] sm:$0xff]
        %v1008 = vld [vmem:[%s973 + $0x110] sm:$0xff]
        %v1009 = vld [vmem:[%s973 + $0x118] sm:$0xff]
        %v1010 = vld [vmem:[%s973 + $0x120] sm:$0xff]
        %v1011 = vld [vmem:[%s973 + $0x128] sm:$0xff]
        %v1012 = vld [vmem:[%s973 + $0x130] sm:$0xff]
        %v1013 = vld [vmem:[%s973 + $0x138] sm:$0xff]
        %v1014 = vld [vmem:[%s973 + $0x140] sm:$0xff]
        %v1015 = vld [vmem:[%s973 + $0x148] sm:$0xff]
        %v1016 = vld [vmem:[%s973 + $0x150] sm:$0xff]
        %v1017 = vld [vmem:[%s973 + $0x158] sm:$0xff]
        %v1018 = vld [vmem:[%s973 + $0x160] sm:$0xff]
        %v1019 = vld [vmem:[%s973 + $0x168] sm:$0xff]
        %v1020 = vld [vmem:[%s973 + $0x170] sm:$0xff]
        %v1021 = vld [vmem:[%s973 + $0x178] sm:$0xff]
        %v1022 = vld [vmem:[%s973 + $0x180] sm:$0xff]
        %v1023 = vld [vmem:[%s973 + $0x188] sm:$0xff]
        %v1024 = vld [vmem:[%s973 + $0x190] sm:$0xff]
        %v1025 = vld [vmem:[%s973 + $0x198] sm:$0xff]
        %v1026 = vld [vmem:[%s973 + $0x1a0] sm:$0xff]
        %v1027 = vld [vmem:[%s973 + $0x1a8] sm:$0xff]
        %v1028 = vld [vmem:[%s973 + $0x1b0] sm:$0xff]
        %v1029 = vld [vmem:[%s973 + $0x1b8] sm:$0xff]
        %v1030 = vld [vmem:[%s973 + $0x1c0] sm:$0xff]
        %v1031 = vld [vmem:[%s973 + $0x1c8] sm:$0xff]
        %v1032 = vld [vmem:[%s973 + $0x1d0] sm:$0xff]
        %v1033 = vld [vmem:[%s973 + $0x1d8] sm:$0xff]
        %v1034 = vld [vmem:[%s973 + $0x1e0] sm:$0xff]
        %v1035 = vld [vmem:[%s973 + $0x1e8] sm:$0xff]
        %v1036 = vld [vmem:[%s973 + $0x1f0] sm:$0xff]
        %v1037 = vld [vmem:[%s973 + $0x1f8] sm:$0xff]
        %v1038 = vmul.f32 %v909, 0.5
        %v1039 = vmul.f32 %v910, 0.5
        %v1040 = vmul.f32 %v911, 0.5
        %v1041 = vmul.f32 %v912, 0.5
        %v1042 = vmul.f32 %v913, 0.5
        %v1043 = vmul.f32 %v914, 0.5
        %v1044 = vmul.f32 %v915, 0.5
        %v1045 = vmul.f32 %v916, 0.5
        %v1046 = vmul.f32 %v917, 0.5
        %v1047 = vmul.f32 %v918, 0.5
        %v1048 = vmul.f32 %v919, 0.5
        %v1049 = vmul.f32 %v920, 0.5
        %v1050 = vmul.f32 %v921, 0.5
        %v1051 = vmul.f32 %v922, 0.5
        %v1052 = vmul.f32 %v923, 0.5
        %v1053 = vmul.f32 %v924, 0.5
        %v1054 = vmul.f32 %v925, 0.5
        %v1055 = vmul.f32 %v926, 0.5
        %v1056 = vmul.f32 %v927, 0.5
        %v1057 = vmul.f32 %v928, 0.5
        %v1058 = vmul.f32 %v929, 0.5
        %v1059 = vmul.f32 %v930, 0.5
        %v1060 = vmul.f32 %v931, 0.5
        %v1061 = vmul.f32 %v932, 0.5
        %v1062 = vmul.f32 %v933, 0.5
        %v1063 = vmul.f32 %v934, 0.5
        %v1064 = vmul.f32 %v935, 0.5
        %v1065 = vmul.f32 %v936, 0.5
        %v1066 = vmul.f32 %v937, 0.5
        %v1067 = vmul.f32 %v938, 0.5
        %v1068 = vmul.f32 %v939, 0.5
        %v1069 = vmul.f32 %v940, 0.5
        %v1070 = vmul.f32 %v941, 0.5
        %v1071 = vmul.f32 %v942, 0.5
        %v1072 = vmul.f32 %v943, 0.5
        %v1073 = vmul.f32 %v944, 0.5
        %v1074 = vmul.f32 %v945, 0.5
        %v1075 = vmul.f32 %v946, 0.5
        %v1076 = vmul.f32 %v947, 0.5
        %v1077 = vmul.f32 %v948, 0.5
        %v1078 = vmul.f32 %v949, 0.5
        %v1079 = vmul.f32 %v950, 0.5
        %v1080 = vmul.f32 %v951, 0.5
        %v1081 = vmul.f32 %v952, 0.5
        %v1082 = vmul.f32 %v953, 0.5
        %v1083 = vmul.f32 %v954, 0.5
        %v1084 = vmul.f32 %v955, 0.5
        %v1085 = vmul.f32 %v956, 0.5
        %v1086 = vmul.f32 %v957, 0.5
        %v1087 = vmul.f32 %v958, 0.5
        %v1088 = vmul.f32 %v959, 0.5
        %v1089 = vmul.f32 %v960, 0.5
        %v1090 = vmul.f32 %v961, 0.5
        %v1091 = vmul.f32 %v962, 0.5
        %v1092 = vmul.f32 %v963, 0.5
        %v1093 = vmul.f32 %v964, 0.5
        %v1094 = vmul.f32 %v965, 0.5
        %v1095 = vmul.f32 %v966, 0.5
        %v1096 = vmul.f32 %v967, 0.5
        %v1097 = vmul.f32 %v968, 0.5
        %v1098 = vmul.f32 %v969, 0.5
        %v1099 = vmul.f32 %v970, 0.5
        %v1100 = vmul.f32 %v971, 0.5
        %v1101 = vmul.f32 %v972, 0.5
        %v1102 = vtanh.pop %v1038
        %v1103 = vtanh.pop %v1039
        %v1104 = vtanh.pop %v1040
        %v1105 = vtanh.pop %v1041
        %v1106 = vtanh.pop %v1042
        %v1107 = vtanh.pop %v1043
        %v1108 = vtanh.pop %v1044
        %v1109 = vtanh.pop %v1045
        %v1110 = vtanh.pop %v1046
        %v1111 = vtanh.pop %v1047
        %v1112 = vtanh.pop %v1048
        %v1113 = vtanh.pop %v1049
        %v1114 = vtanh.pop %v1050
        %v1115 = vtanh.pop %v1051
        %v1116 = vtanh.pop %v1052
        %v1117 = vtanh.pop %v1053
        %v1118 = vtanh.pop %v1054
        %v1119 = vtanh.pop %v1055
        %v1120 = vtanh.pop %v1056
        %v1121 = vtanh.pop %v1057
        %v1122 = vtanh.pop %v1058
        %v1123 = vtanh.pop %v1059
        %v1124 = vtanh.pop %v1060
        %v1125 = vtanh.pop %v1061
        %v1126 = vtanh.pop %v1062
        %v1127 = vtanh.pop %v1063
        %v1128 = vtanh.pop %v1064
        %v1129 = vtanh.pop %v1065
        %v1130 = vtanh.pop %v1066
        %v1131 = vtanh.pop %v1067
        %v1132 = vtanh.pop %v1068
        %v1133 = vtanh.pop %v1069
        %v1134 = vtanh.pop %v1070
        %v1135 = vtanh.pop %v1071
        %v1136 = vtanh.pop %v1072
        %v1137 = vtanh.pop %v1073
        %v1138 = vtanh.pop %v1074
        %v1139 = vtanh.pop %v1075
        %v1140 = vtanh.pop %v1076
        %v1141 = vtanh.pop %v1077
        %v1142 = vtanh.pop %v1078
        %v1143 = vtanh.pop %v1079
        %v1144 = vtanh.pop %v1080
        %v1145 = vtanh.pop %v1081
        %v1146 = vtanh.pop %v1082
        %v1147 = vtanh.pop %v1083
        %v1148 = vtanh.pop %v1084
        %v1149 = vtanh.pop %v1085
        %v1150 = vtanh.pop %v1086
        %v1151 = vtanh.pop %v1087
        %v1152 = vtanh.pop %v1088
        %v1153 = vtanh.pop %v1089
        %v1154 = vtanh.pop %v1090
        %v1155 = vtanh.pop %v1091
        %v1156 = vtanh.pop %v1092
        %v1157 = vtanh.pop %v1093
        %v1158 = vtanh.pop %v1094
        %v1159 = vtanh.pop %v1095
        %v1160 = vtanh.pop %v1096
        %v1161 = vtanh.pop %v1097
        %v1162 = vtanh.pop %v1098
        %v1163 = vtanh.pop %v1099
        %v1164 = vtanh.pop %v1100
        %v1165 = vtanh.pop %v1101
        %v1166 = vmul.f32 %v1102, 0.5
        %v1167 = vmul.f32 %v1103, 0.5
        %v1168 = vmul.f32 %v1104, 0.5
        %v1169 = vmul.f32 %v1105, 0.5
        %v1170 = vmul.f32 %v1106, 0.5
        %v1171 = vmul.f32 %v1107, 0.5
        %v1172 = vmul.f32 %v1108, 0.5
        %v1173 = vmul.f32 %v1109, 0.5
        %v1174 = vmul.f32 %v1110, 0.5
        %v1175 = vmul.f32 %v1111, 0.5
        %v1176 = vmul.f32 %v1112, 0.5
        %v1177 = vmul.f32 %v1113, 0.5
        %v1178 = vmul.f32 %v1114, 0.5
        %v1179 = vmul.f32 %v1115, 0.5
        %v1180 = vmul.f32 %v1116, 0.5
        %v1181 = vmul.f32 %v1117, 0.5
        %v1182 = vmul.f32 %v1118, 0.5
        %v1183 = vmul.f32 %v1119, 0.5
        %v1184 = vmul.f32 %v1120, 0.5
        %v1185 = vmul.f32 %v1121, 0.5
        %v1186 = vmul.f32 %v1122, 0.5
        %v1187 = vmul.f32 %v1123, 0.5
        %v1188 = vmul.f32 %v1124, 0.5
        %v1189 = vmul.f32 %v1125, 0.5
        %v1190 = vmul.f32 %v1126, 0.5
        %v1191 = vmul.f32 %v1127, 0.5
        %v1192 = vmul.f32 %v1128, 0.5
        %v1193 = vmul.f32 %v1129, 0.5
        %v1194 = vmul.f32 %v1130, 0.5
        %v1195 = vmul.f32 %v1131, 0.5
        %v1196 = vmul.f32 %v1132, 0.5
        %v1197 = vmul.f32 %v1133, 0.5
        %v1198 = vmul.f32 %v1134, 0.5
        %v1199 = vmul.f32 %v1135, 0.5
        %v1200 = vmul.f32 %v1136, 0.5
        %v1201 = vmul.f32 %v1137, 0.5
        %v1202 = vmul.f32 %v1138, 0.5
        %v1203 = vmul.f32 %v1139, 0.5
        %v1204 = vmul.f32 %v1140, 0.5
        %v1205 = vmul.f32 %v1141, 0.5
        %v1206 = vmul.f32 %v1142, 0.5
        %v1207 = vmul.f32 %v1143, 0.5
        %v1208 = vmul.f32 %v1144, 0.5
        %v1209 = vmul.f32 %v1145, 0.5
        %v1210 = vmul.f32 %v1146, 0.5
        %v1211 = vmul.f32 %v1147, 0.5
        %v1212 = vmul.f32 %v1148, 0.5
        %v1213 = vmul.f32 %v1149, 0.5
        %v1214 = vmul.f32 %v1150, 0.5
        %v1215 = vmul.f32 %v1151, 0.5
        %v1216 = vmul.f32 %v1152, 0.5
        %v1217 = vmul.f32 %v1153, 0.5
        %v1218 = vmul.f32 %v1154, 0.5
        %v1219 = vmul.f32 %v1155, 0.5
        %v1220 = vmul.f32 %v1156, 0.5
        %v1221 = vmul.f32 %v1157, 0.5
        %v1222 = vmul.f32 %v1158, 0.5
        %v1223 = vmul.f32 %v1159, 0.5
        %v1224 = vmul.f32 %v1160, 0.5
        %v1225 = vmul.f32 %v1161, 0.5
        %v1226 = vmul.f32 %v1162, 0.5
        %v1227 = vmul.f32 %v1163, 0.5
        %v1228 = vmul.f32 %v1164, 0.5
        %v1229 = vmul.f32 %v1165, 0.5
        %v1230 = vadd.f32 %v1166, 0.5
        %v1231 = vadd.f32 %v1167, 0.5
        %v1232 = vadd.f32 %v1168, 0.5
        %v1233 = vadd.f32 %v1169, 0.5
        %v1234 = vadd.f32 %v1170, 0.5
        %v1235 = vadd.f32 %v1171, 0.5
        %v1236 = vadd.f32 %v1172, 0.5
        %v1237 = vadd.f32 %v1173, 0.5
        %v1238 = vadd.f32 %v1174, 0.5
        %v1239 = vadd.f32 %v1175, 0.5
        %v1240 = vadd.f32 %v1176, 0.5
        %v1241 = vadd.f32 %v1177, 0.5
        %v1242 = vadd.f32 %v1178, 0.5
        %v1243 = vadd.f32 %v1179, 0.5
        %v1244 = vadd.f32 %v1180, 0.5
        %v1245 = vadd.f32 %v1181, 0.5
        %v1246 = vadd.f32 %v1182, 0.5
        %v1247 = vadd.f32 %v1183, 0.5
        %v1248 = vadd.f32 %v1184, 0.5
        %v1249 = vadd.f32 %v1185, 0.5
        %v1250 = vadd.f32 %v1186, 0.5
        %v1251 = vadd.f32 %v1187, 0.5
        %v1252 = vadd.f32 %v1188, 0.5
        %v1253 = vadd.f32 %v1189, 0.5
        %v1254 = vadd.f32 %v1190, 0.5
        %v1255 = vadd.f32 %v1191, 0.5
        %v1256 = vadd.f32 %v1192, 0.5
        %v1257 = vadd.f32 %v1193, 0.5
        %v1258 = vadd.f32 %v1194, 0.5
        %v1259 = vadd.f32 %v1195, 0.5
        %v1260 = vadd.f32 %v1196, 0.5
        %v1261 = vadd.f32 %v1197, 0.5
        %v1262 = vadd.f32 %v1198, 0.5
        %v1263 = vadd.f32 %v1199, 0.5
        %v1264 = vadd.f32 %v1200, 0.5
        %v1265 = vadd.f32 %v1201, 0.5
        %v1266 = vadd.f32 %v1202, 0.5
        %v1267 = vadd.f32 %v1203, 0.5
        %v1268 = vadd.f32 %v1204, 0.5
        %v1269 = vadd.f32 %v1205, 0.5
        %v1270 = vadd.f32 %v1206, 0.5
        %v1271 = vadd.f32 %v1207, 0.5
        %v1272 = vadd.f32 %v1208, 0.5
        %v1273 = vadd.f32 %v1209, 0.5
        %v1274 = vadd.f32 %v1210, 0.5
        %v1275 = vadd.f32 %v1211, 0.5
        %v1276 = vadd.f32 %v1212, 0.5
        %v1277 = vadd.f32 %v1213, 0.5
        %v1278 = vadd.f32 %v1214, 0.5
        %v1279 = vadd.f32 %v1215, 0.5
        %v1280 = vadd.f32 %v1216, 0.5
        %v1281 = vadd.f32 %v1217, 0.5
        %v1282 = vadd.f32 %v1218, 0.5
        %v1283 = vadd.f32 %v1219, 0.5
        %v1284 = vadd.f32 %v1220, 0.5
        %v1285 = vadd.f32 %v1221, 0.5
        %v1286 = vadd.f32 %v1222, 0.5
        %v1287 = vadd.f32 %v1223, 0.5
        %v1288 = vadd.f32 %v1224, 0.5
        %v1289 = vadd.f32 %v1225, 0.5
        %v1290 = vadd.f32 %v1226, 0.5
        %v1291 = vadd.f32 %v1227, 0.5
        %v1292 = vadd.f32 %v1228, 0.5
        %v1293 = vadd.f32 %v1229, 0.5
        %v1294 = vmul.f32 %v1230, %v974
        %v1295 = vmul.f32 %v1231, %v975
        %v1296 = vmul.f32 %v1232, %v976
        %v1297 = vmul.f32 %v1233, %v977
        %v1298 = vmul.f32 %v1234, %v978
        %v1299 = vmul.f32 %v1235, %v979
        %v1300 = vmul.f32 %v1236, %v980
        %v1301 = vmul.f32 %v1237, %v981
        %v1302 = vmul.f32 %v1238, %v982
        %v1303 = vmul.f32 %v1239, %v983
        %v1304 = vmul.f32 %v1240, %v984
        %v1305 = vmul.f32 %v1241, %v985
        %v1306 = vmul.f32 %v1242, %v986
        %v1307 = vmul.f32 %v1243, %v987
        %v1308 = vmul.f32 %v1244, %v988
        %v1309 = vmul.f32 %v1245, %v989
        %v1310 = vmul.f32 %v1246, %v990
        %v1311 = vmul.f32 %v1247, %v991
        %v1312 = vmul.f32 %v1248, %v992
        %v1313 = vmul.f32 %v1249, %v993
        %v1314 = vmul.f32 %v1250, %v994
        %v1315 = vmul.f32 %v1251, %v995
        %v1316 = vmul.f32 %v1252, %v996
        %v1317 = vmul.f32 %v1253, %v997
        %v1318 = vmul.f32 %v1254, %v998
        %v1319 = vmul.f32 %v1255, %v999
        %v1320 = vmul.f32 %v1256, %v1000
        %v1321 = vmul.f32 %v1257, %v1001
        %v1322 = vmul.f32 %v1258, %v1002
        %v1323 = vmul.f32 %v1259, %v1003
        %v1324 = vmul.f32 %v1260, %v1004
        %v1325 = vmul.f32 %v1261, %v1005
        %v1326 = vmul.f32 %v1262, %v1006
        %v1327 = vmul.f32 %v1263, %v1007
        %v1328 = vmul.f32 %v1264, %v1008
        %v1329 = vmul.f32 %v1265, %v1009
        %v1330 = vmul.f32 %v1266, %v1010
        %v1331 = vmul.f32 %v1267, %v1011
        %v1332 = vmul.f32 %v1268, %v1012
        %v1333 = vmul.f32 %v1269, %v1013
        %v1334 = vmul.f32 %v1270, %v1014
        %v1335 = vmul.f32 %v1271, %v1015
        %v1336 = vmul.f32 %v1272, %v1016
        %v1337 = vmul.f32 %v1273, %v1017
        %v1338 = vmul.f32 %v1274, %v1018
        %v1339 = vmul.f32 %v1275, %v1019
        %v1340 = vmul.f32 %v1276, %v1020
        %v1341 = vmul.f32 %v1277, %v1021
        %v1342 = vmul.f32 %v1278, %v1022
        %v1343 = vmul.f32 %v1279, %v1023
        %v1344 = vmul.f32 %v1280, %v1024
        %v1345 = vmul.f32 %v1281, %v1025
        %v1346 = vmul.f32 %v1282, %v1026
        %v1347 = vmul.f32 %v1283, %v1027
        %v1348 = vmul.f32 %v1284, %v1028
        %v1349 = vmul.f32 %v1285, %v1029
        %v1350 = vmul.f32 %v1286, %v1030
        %v1351 = vmul.f32 %v1287, %v1031
        %v1352 = vmul.f32 %v1288, %v1032
        %v1353 = vmul.f32 %v1289, %v1033
        %v1354 = vmul.f32 %v1290, %v1034
        %v1355 = vmul.f32 %v1291, %v1035
        %v1356 = vmul.f32 %v1292, %v1036
        %v1357 = vmul.f32 %v1293, %v1037
        %v1358 = vadd.f32 %v1294, %v1295
        %v1359 = vadd.f32 %v1358, %v1296
        %v1360 = vadd.f32 %v1359, %v1297
        %v1361 = vadd.f32 %v1360, %v1298
        %v1362 = vadd.f32 %v1361, %v1299
        %v1363 = vadd.f32 %v1362, %v1300
        %v1364 = vadd.f32 %v1363, %v1301
        %v1365 = vadd.f32 %v1364, %v1302
        %v1366 = vadd.f32 %v1365, %v1303
        %v1367 = vadd.f32 %v1366, %v1304
        %v1368 = vadd.f32 %v1367, %v1305
        %v1369 = vadd.f32 %v1368, %v1306
        %v1370 = vadd.f32 %v1369, %v1307
        %v1371 = vadd.f32 %v1370, %v1308
        %v1372 = vadd.f32 %v1371, %v1309
        %v1373 = vadd.f32 %v1372, %v1310
        %v1374 = vadd.f32 %v1373, %v1311
        %v1375 = vadd.f32 %v1374, %v1312
        %v1376 = vadd.f32 %v1375, %v1313
        %v1377 = vadd.f32 %v1376, %v1314
        %v1378 = vadd.f32 %v1377, %v1315
        %v1379 = vadd.f32 %v1378, %v1316
        %v1380 = vadd.f32 %v1379, %v1317
        %v1381 = vadd.f32 %v1380, %v1318
        %v1382 = vadd.f32 %v1381, %v1319
        %v1383 = vadd.f32 %v1382, %v1320
        %v1384 = vadd.f32 %v1383, %v1321
        %v1385 = vadd.f32 %v1384, %v1322
        %v1386 = vadd.f32 %v1385, %v1323
        %v1387 = vadd.f32 %v1386, %v1324
        %v1388 = vadd.f32 %v1387, %v1325
        %v1389 = vadd.f32 %v1388, %v1326
        %v1390 = vadd.f32 %v1389, %v1327
        %v1391 = vadd.f32 %v1390, %v1328
        %v1392 = vadd.f32 %v1391, %v1329
        %v1393 = vadd.f32 %v1392, %v1330
        %v1394 = vadd.f32 %v1393, %v1331
        %v1395 = vadd.f32 %v1394, %v1332
        %v1396 = vadd.f32 %v1395, %v1333
        %v1397 = vadd.f32 %v1396, %v1334
        %v1398 = vadd.f32 %v1397, %v1335
        %v1399 = vadd.f32 %v1398, %v1336
        %v1400 = vadd.f32 %v1399, %v1337
        %v1401 = vadd.f32 %v1400, %v1338
        %v1402 = vadd.f32 %v1401, %v1339
        %v1403 = vadd.f32 %v1402, %v1340
        %v1404 = vadd.f32 %v1403, %v1341
        %v1405 = vadd.f32 %v1404, %v1342
        %v1406 = vadd.f32 %v1405, %v1343
        %v1407 = vadd.f32 %v1406, %v1344
        %v1408 = vadd.f32 %v1407, %v1345
        %v1409 = vadd.f32 %v1408, %v1346
        %v1410 = vadd.f32 %v1409, %v1347
        %v1411 = vadd.f32 %v1410, %v1348
        %v1412 = vadd.f32 %v1411, %v1349
        %v1413 = vadd.f32 %v1412, %v1350
        %v1414 = vadd.f32 %v1413, %v1351
        %v1415 = vadd.f32 %v1414, %v1352
        %v1416 = vadd.f32 %v1415, %v1353
        %v1417 = vadd.f32 %v1416, %v1354
        %v1418 = vadd.f32 %v1417, %v1355
        %v1419 = vadd.f32 %v1418, %v1356
        %v1420 = vadd.f32 %v1419, %v1357
        %v1421 = vadd.f32 %v779, %v1420
        %v1422 = vadd.f32 %v1230, %v974
        %v1423 = vadd.f32 %v1231, %v975
        %v1424 = vadd.f32 %v1232, %v976
        %v1425 = vadd.f32 %v1233, %v977
        %v1426 = vadd.f32 %v1234, %v978
        %v1427 = vadd.f32 %v1235, %v979
        %v1428 = vadd.f32 %v1236, %v980
        %v1429 = vadd.f32 %v1237, %v981
        %v1430 = vadd.f32 %v1238, %v982
        %v1431 = vadd.f32 %v1239, %v983
        %v1432 = vadd.f32 %v1240, %v984
        %v1433 = vadd.f32 %v1241, %v985
        %v1434 = vadd.f32 %v1242, %v986
        %v1435 = vadd.f32 %v1243, %v987
        %v1436 = vadd.f32 %v1244, %v988
        %v1437 = vadd.f32 %v1245, %v989
        %v1438 = vadd.f32 %v1246, %v990
        %v1439 = vadd.f32 %v1247, %v991
        %v1440 = vadd.f32 %v1248, %v992
        %v1441 = vadd.f32 %v1249, %v993
        %v1442 = vadd.f32 %v1250, %v994
        %v1443 = vadd.f32 %v1251, %v995
        %v1444 = vadd.f32 %v1252, %v996
        %v1445 = vadd.f32 %v1253, %v997
        %v1446 = vadd.f32 %v1254, %v998
        %v1447 = vadd.f32 %v1255, %v999
        %v1448 = vadd.f32 %v1256, %v1000
        %v1449 = vadd.f32 %v1257, %v1001
        %v1450 = vadd.f32 %v1258, %v1002
        %v1451 = vadd.f32 %v1259, %v1003
        %v1452 = vadd.f32 %v1260, %v1004
        %v1453 = vadd.f32 %v1261, %v1005
        %v1454 = vadd.f32 %v1262, %v1006
        %v1455 = vadd.f32 %v1263, %v1007
        %v1456 = vadd.f32 %v1264, %v1008
        %v1457 = vadd.f32 %v1265, %v1009
        %v1458 = vadd.f32 %v1266, %v1010
        %v1459 = vadd.f32 %v1267, %v1011
        %v1460 = vadd.f32 %v1268, %v1012
        %v1461 = vadd.f32 %v1269, %v1013
        %v1462 = vadd.f32 %v1270, %v1014
        %v1463 = vadd.f32 %v1271, %v1015
        %v1464 = vadd.f32 %v1272, %v1016
        %v1465 = vadd.f32 %v1273, %v1017
        %v1466 = vadd.f32 %v1274, %v1018
        %v1467 = vadd.f32 %v1275, %v1019
        %v1468 = vadd.f32 %v1276, %v1020
        %v1469 = vadd.f32 %v1277, %v1021
        %v1470 = vadd.f32 %v1278, %v1022
        %v1471 = vadd.f32 %v1279, %v1023
        %v1472 = vadd.f32 %v1280, %v1024
        %v1473 = vadd.f32 %v1281, %v1025
        %v1474 = vadd.f32 %v1282, %v1026
        %v1475 = vadd.f32 %v1283, %v1027
        %v1476 = vadd.f32 %v1284, %v1028
        %v1477 = vadd.f32 %v1285, %v1029
        %v1478 = vadd.f32 %v1286, %v1030
        %v1479 = vadd.f32 %v1287, %v1031
        %v1480 = vadd.f32 %v1288, %v1032
        %v1481 = vadd.f32 %v1289, %v1033
        %v1482 = vadd.f32 %v1290, %v1034
        %v1483 = vadd.f32 %v1291, %v1035
        %v1484 = vadd.f32 %v1292, %v1036
        %v1485 = vadd.f32 %v1293, %v1037
        %v1486 = vadd.f32 %v1422, %v1423
        %v1487 = vadd.f32 %v1486, %v1424
        %v1488 = vadd.f32 %v1487, %v1425
        %v1489 = vadd.f32 %v1488, %v1426
        %v1490 = vadd.f32 %v1489, %v1427
        %v1491 = vadd.f32 %v1490, %v1428
        %v1492 = vadd.f32 %v1491, %v1429
        %v1493 = vadd.f32 %v1492, %v1430
        %v1494 = vadd.f32 %v1493, %v1431
        %v1495 = vadd.f32 %v1494, %v1432
        %v1496 = vadd.f32 %v1495, %v1433
        %v1497 = vadd.f32 %v1496, %v1434
        %v1498 = vadd.f32 %v1497, %v1435
        %v1499 = vadd.f32 %v1498, %v1436
        %v1500 = vadd.f32 %v1499, %v1437
        %v1501 = vadd.f32 %v1500, %v1438
        %v1502 = vadd.f32 %v1501, %v1439
        %v1503 = vadd.f32 %v1502, %v1440
        %v1504 = vadd.f32 %v1503, %v1441
        %v1505 = vadd.f32 %v1504, %v1442
        %v1506 = vadd.f32 %v1505, %v1443
        %v1507 = vadd.f32 %v1506, %v1444
        %v1508 = vadd.f32 %v1507, %v1445
        %v1509 = vadd.f32 %v1508, %v1446
        %v1510 = vadd.f32 %v1509, %v1447
        %v1511 = vadd.f32 %v1510, %v1448
        %v1512 = vadd.f32 %v1511, %v1449
        %v1513 = vadd.f32 %v1512, %v1450
        %v1514 = vadd.f32 %v1513, %v1451
        %v1515 = vadd.f32 %v1514, %v1452
        %v1516 = vadd.f32 %v1515, %v1453
        %v1517 = vadd.f32 %v1516, %v1454
        %v1518 = vadd.f32 %v1517, %v1455
        %v1519 = vadd.f32 %v1518, %v1456
        %v1520 = vadd.f32 %v1519, %v1457
        %v1521 = vadd.f32 %v1520, %v1458
        %v1522 = vadd.f32 %v1521, %v1459
        %v1523 = vadd.f32 %v1522, %v1460
        %v1524 = vadd.f32 %v1523, %v1461
        %v1525 = vadd.f32 %v1524, %v1462
        %v1526 = vadd.f32 %v1525, %v1463
        %v1527 = vadd.f32 %v1526, %v1464
        %v1528 = vadd.f32 %v1527, %v1465
        %v1529 = vadd.f32 %v1528, %v1466
        %v1530 = vadd.f32 %v1529, %v1467
        %v1531 = vadd.f32 %v1530, %v1468
        %v1532 = vadd.f32 %v1531, %v1469
        %v1533 = vadd.f32 %v1532, %v1470
        %v1534 = vadd.f32 %v1533, %v1471
        %v1535 = vadd.f32 %v1534, %v1472
        %v1536 = vadd.f32 %v1535, %v1473
        %v1537 = vadd.f32 %v1536, %v1474
        %v1538 = vadd.f32 %v1537, %v1475
        %v1539 = vadd.f32 %v1538, %v1476
        %v1540 = vadd.f32 %v1539, %v1477
        %v1541 = vadd.f32 %v1540, %v1478
        %v1542 = vadd.f32 %v1541, %v1479
        %v1543 = vadd.f32 %v1542, %v1480
        %v1544 = vadd.f32 %v1543, %v1481
        %v1545 = vadd.f32 %v1544, %v1482
        %v1546 = vadd.f32 %v1545, %v1483
        %v1547 = vadd.f32 %v1546, %v1484
        %v1548 = vadd.f32 %v1547, %v1485
        %v1549 = vadd.f32 %v907, %v1548
        %s1550 = scalar_lea.vmem %s216, 1024 [#allocation2]
        %v1551 = vld [vmem:[%s1550] sm:$0xff]
        %v1552 = vld [vmem:[%s1550 + $0x8] sm:$0xff]
        %v1553 = vld [vmem:[%s1550 + $0x10] sm:$0xff]
        %v1554 = vld [vmem:[%s1550 + $0x18] sm:$0xff]
        %v1555 = vld [vmem:[%s1550 + $0x20] sm:$0xff]
        %v1556 = vld [vmem:[%s1550 + $0x28] sm:$0xff]
        %v1557 = vld [vmem:[%s1550 + $0x30] sm:$0xff]
        %v1558 = vld [vmem:[%s1550 + $0x38] sm:$0xff]
        %v1559 = vld [vmem:[%s1550 + $0x40] sm:$0xff]
        %v1560 = vld [vmem:[%s1550 + $0x48] sm:$0xff]
        %v1561 = vld [vmem:[%s1550 + $0x50] sm:$0xff]
        %v1562 = vld [vmem:[%s1550 + $0x58] sm:$0xff]
        %v1563 = vld [vmem:[%s1550 + $0x60] sm:$0xff]
        %v1564 = vld [vmem:[%s1550 + $0x68] sm:$0xff]
        %v1565 = vld [vmem:[%s1550 + $0x70] sm:$0xff]
        %v1566 = vld [vmem:[%s1550 + $0x78] sm:$0xff]
        %v1567 = vld [vmem:[%s1550 + $0x80] sm:$0xff]
        %v1568 = vld [vmem:[%s1550 + $0x88] sm:$0xff]
        %v1569 = vld [vmem:[%s1550 + $0x90] sm:$0xff]
        %v1570 = vld [vmem:[%s1550 + $0x98] sm:$0xff]
        %v1571 = vld [vmem:[%s1550 + $0xa0] sm:$0xff]
        %v1572 = vld [vmem:[%s1550 + $0xa8] sm:$0xff]
        %v1573 = vld [vmem:[%s1550 + $0xb0] sm:$0xff]
        %v1574 = vld [vmem:[%s1550 + $0xb8] sm:$0xff]
        %v1575 = vld [vmem:[%s1550 + $0xc0] sm:$0xff]
        %v1576 = vld [vmem:[%s1550 + $0xc8] sm:$0xff]
        %v1577 = vld [vmem:[%s1550 + $0xd0] sm:$0xff]
        %v1578 = vld [vmem:[%s1550 + $0xd8] sm:$0xff]
        %v1579 = vld [vmem:[%s1550 + $0xe0] sm:$0xff]
        %v1580 = vld [vmem:[%s1550 + $0xe8] sm:$0xff]
        %v1581 = vld [vmem:[%s1550 + $0xf0] sm:$0xff]
        %v1582 = vld [vmem:[%s1550 + $0xf8] sm:$0xff]
        %v1583 = vld [vmem:[%s1550 + $0x100] sm:$0xff]
        %v1584 = vld [vmem:[%s1550 + $0x108] sm:$0xff]
        %v1585 = vld [vmem:[%s1550 + $0x110] sm:$0xff]
        %v1586 = vld [vmem:[%s1550 + $0x118] sm:$0xff]
        %v1587 = vld [vmem:[%s1550 + $0x120] sm:$0xff]
        %v1588 = vld [vmem:[%s1550 + $0x128] sm:$0xff]
        %v1589 = vld [vmem:[%s1550 + $0x130] sm:$0xff]
        %v1590 = vld [vmem:[%s1550 + $0x138] sm:$0xff]
        %v1591 = vld [vmem:[%s1550 + $0x140] sm:$0xff]
        %v1592 = vld [vmem:[%s1550 + $0x148] sm:$0xff]
        %v1593 = vld [vmem:[%s1550 + $0x150] sm:$0xff]
        %v1594 = vld [vmem:[%s1550 + $0x158] sm:$0xff]
        %v1595 = vld [vmem:[%s1550 + $0x160] sm:$0xff]
        %v1596 = vld [vmem:[%s1550 + $0x168] sm:$0xff]
        %v1597 = vld [vmem:[%s1550 + $0x170] sm:$0xff]
        %v1598 = vld [vmem:[%s1550 + $0x178] sm:$0xff]
        %v1599 = vld [vmem:[%s1550 + $0x180] sm:$0xff]
        %v1600 = vld [vmem:[%s1550 + $0x188] sm:$0xff]
        %v1601 = vld [vmem:[%s1550 + $0x190] sm:$0xff]
        %v1602 = vld [vmem:[%s1550 + $0x198] sm:$0xff]
        %v1603 = vld [vmem:[%s1550 + $0x1a0] sm:$0xff]
        %v1604 = vld [vmem:[%s1550 + $0x1a8] sm:$0xff]
        %v1605 = vld [vmem:[%s1550 + $0x1b0] sm:$0xff]
        %v1606 = vld [vmem:[%s1550 + $0x1b8] sm:$0xff]
        %v1607 = vld [vmem:[%s1550 + $0x1c0] sm:$0xff]
        %v1608 = vld [vmem:[%s1550 + $0x1c8] sm:$0xff]
        %v1609 = vld [vmem:[%s1550 + $0x1d0] sm:$0xff]
        %v1610 = vld [vmem:[%s1550 + $0x1d8] sm:$0xff]
        %v1611 = vld [vmem:[%s1550 + $0x1e0] sm:$0xff]
        %v1612 = vld [vmem:[%s1550 + $0x1e8] sm:$0xff]
        %v1613 = vld [vmem:[%s1550 + $0x1f0] sm:$0xff]
        %v1614 = vld [vmem:[%s1550 + $0x1f8] sm:$0xff]
        %s1615 = scalar_lea.vmem %s225, 1024 [#allocation5]
        %v1616 = vld [vmem:[%s1615] sm:$0xff]
        %v1617 = vld [vmem:[%s1615 + $0x8] sm:$0xff]
        %v1618 = vld [vmem:[%s1615 + $0x10] sm:$0xff]
        %v1619 = vld [vmem:[%s1615 + $0x18] sm:$0xff]
        %v1620 = vld [vmem:[%s1615 + $0x20] sm:$0xff]
        %v1621 = vld [vmem:[%s1615 + $0x28] sm:$0xff]
        %v1622 = vld [vmem:[%s1615 + $0x30] sm:$0xff]
        %v1623 = vld [vmem:[%s1615 + $0x38] sm:$0xff]
        %v1624 = vld [vmem:[%s1615 + $0x40] sm:$0xff]
        %v1625 = vld [vmem:[%s1615 + $0x48] sm:$0xff]
        %v1626 = vld [vmem:[%s1615 + $0x50] sm:$0xff]
        %v1627 = vld [vmem:[%s1615 + $0x58] sm:$0xff]
        %v1628 = vld [vmem:[%s1615 + $0x60] sm:$0xff]
        %v1629 = vld [vmem:[%s1615 + $0x68] sm:$0xff]
        %v1630 = vld [vmem:[%s1615 + $0x70] sm:$0xff]
        %v1631 = vld [vmem:[%s1615 + $0x78] sm:$0xff]
        %v1632 = vld [vmem:[%s1615 + $0x80] sm:$0xff]
        %v1633 = vld [vmem:[%s1615 + $0x88] sm:$0xff]
        %v1634 = vld [vmem:[%s1615 + $0x90] sm:$0xff]
        %v1635 = vld [vmem:[%s1615 + $0x98] sm:$0xff]
        %v1636 = vld [vmem:[%s1615 + $0xa0] sm:$0xff]
        %v1637 = vld [vmem:[%s1615 + $0xa8] sm:$0xff]
        %v1638 = vld [vmem:[%s1615 + $0xb0] sm:$0xff]
        %v1639 = vld [vmem:[%s1615 + $0xb8] sm:$0xff]
        %v1640 = vld [vmem:[%s1615 + $0xc0] sm:$0xff]
        %v1641 = vld [vmem:[%s1615 + $0xc8] sm:$0xff]
        %v1642 = vld [vmem:[%s1615 + $0xd0] sm:$0xff]
        %v1643 = vld [vmem:[%s1615 + $0xd8] sm:$0xff]
        %v1644 = vld [vmem:[%s1615 + $0xe0] sm:$0xff]
        %v1645 = vld [vmem:[%s1615 + $0xe8] sm:$0xff]
        %v1646 = vld [vmem:[%s1615 + $0xf0] sm:$0xff]
        %v1647 = vld [vmem:[%s1615 + $0xf8] sm:$0xff]
        %v1648 = vld [vmem:[%s1615 + $0x100] sm:$0xff]
        %v1649 = vld [vmem:[%s1615 + $0x108] sm:$0xff]
        %v1650 = vld [vmem:[%s1615 + $0x110] sm:$0xff]
        %v1651 = vld [vmem:[%s1615 + $0x118] sm:$0xff]
        %v1652 = vld [vmem:[%s1615 + $0x120] sm:$0xff]
        %v1653 = vld [vmem:[%s1615 + $0x128] sm:$0xff]
        %v1654 = vld [vmem:[%s1615 + $0x130] sm:$0xff]
        %v1655 = vld [vmem:[%s1615 + $0x138] sm:$0xff]
        %v1656 = vld [vmem:[%s1615 + $0x140] sm:$0xff]
        %v1657 = vld [vmem:[%s1615 + $0x148] sm:$0xff]
        %v1658 = vld [vmem:[%s1615 + $0x150] sm:$0xff]
        %v1659 = vld [vmem:[%s1615 + $0x158] sm:$0xff]
        %v1660 = vld [vmem:[%s1615 + $0x160] sm:$0xff]
        %v1661 = vld [vmem:[%s1615 + $0x168] sm:$0xff]
        %v1662 = vld [vmem:[%s1615 + $0x170] sm:$0xff]
        %v1663 = vld [vmem:[%s1615 + $0x178] sm:$0xff]
        %v1664 = vld [vmem:[%s1615 + $0x180] sm:$0xff]
        %v1665 = vld [vmem:[%s1615 + $0x188] sm:$0xff]
        %v1666 = vld [vmem:[%s1615 + $0x190] sm:$0xff]
        %v1667 = vld [vmem:[%s1615 + $0x198] sm:$0xff]
        %v1668 = vld [vmem:[%s1615 + $0x1a0] sm:$0xff]
        %v1669 = vld [vmem:[%s1615 + $0x1a8] sm:$0xff]
        %v1670 = vld [vmem:[%s1615 + $0x1b0] sm:$0xff]
        %v1671 = vld [vmem:[%s1615 + $0x1b8] sm:$0xff]
        %v1672 = vld [vmem:[%s1615 + $0x1c0] sm:$0xff]
        %v1673 = vld [vmem:[%s1615 + $0x1c8] sm:$0xff]
        %v1674 = vld [vmem:[%s1615 + $0x1d0] sm:$0xff]
        %v1675 = vld [vmem:[%s1615 + $0x1d8] sm:$0xff]
        %v1676 = vld [vmem:[%s1615 + $0x1e0] sm:$0xff]
        %v1677 = vld [vmem:[%s1615 + $0x1e8] sm:$0xff]
        %v1678 = vld [vmem:[%s1615 + $0x1f0] sm:$0xff]
        %v1679 = vld [vmem:[%s1615 + $0x1f8] sm:$0xff]
        %v1680 = vmul.f32 %v1551, 0.5
        %v1681 = vmul.f32 %v1552, 0.5
        %v1682 = vmul.f32 %v1553, 0.5
        %v1683 = vmul.f32 %v1554, 0.5
        %v1684 = vmul.f32 %v1555, 0.5
        %v1685 = vmul.f32 %v1556, 0.5
        %v1686 = vmul.f32 %v1557, 0.5
        %v1687 = vmul.f32 %v1558, 0.5
        %v1688 = vmul.f32 %v1559, 0.5
        %v1689 = vmul.f32 %v1560, 0.5
        %v1690 = vmul.f32 %v1561, 0.5
        %v1691 = vmul.f32 %v1562, 0.5
        %v1692 = vmul.f32 %v1563, 0.5
        %v1693 = vmul.f32 %v1564, 0.5
        %v1694 = vmul.f32 %v1565, 0.5
        %v1695 = vmul.f32 %v1566, 0.5
        %v1696 = vmul.f32 %v1567, 0.5
        %v1697 = vmul.f32 %v1568, 0.5
        %v1698 = vmul.f32 %v1569, 0.5
        %v1699 = vmul.f32 %v1570, 0.5
        %v1700 = vmul.f32 %v1571, 0.5
        %v1701 = vmul.f32 %v1572, 0.5
        %v1702 = vmul.f32 %v1573, 0.5
        %v1703 = vmul.f32 %v1574, 0.5
        %v1704 = vmul.f32 %v1575, 0.5
        %v1705 = vmul.f32 %v1576, 0.5
        %v1706 = vmul.f32 %v1577, 0.5
        %v1707 = vmul.f32 %v1578, 0.5
        %v1708 = vmul.f32 %v1579, 0.5
        %v1709 = vmul.f32 %v1580, 0.5
        %v1710 = vmul.f32 %v1581, 0.5
        %v1711 = vmul.f32 %v1582, 0.5
        %v1712 = vmul.f32 %v1583, 0.5
        %v1713 = vmul.f32 %v1584, 0.5
        %v1714 = vmul.f32 %v1585, 0.5
        %v1715 = vmul.f32 %v1586, 0.5
        %v1716 = vmul.f32 %v1587, 0.5
        %v1717 = vmul.f32 %v1588, 0.5
        %v1718 = vmul.f32 %v1589, 0.5
        %v1719 = vmul.f32 %v1590, 0.5
        %v1720 = vmul.f32 %v1591, 0.5
        %v1721 = vmul.f32 %v1592, 0.5
        %v1722 = vmul.f32 %v1593, 0.5
        %v1723 = vmul.f32 %v1594, 0.5
        %v1724 = vmul.f32 %v1595, 0.5
        %v1725 = vmul.f32 %v1596, 0.5
        %v1726 = vmul.f32 %v1597, 0.5
        %v1727 = vmul.f32 %v1598, 0.5
        %v1728 = vmul.f32 %v1599, 0.5
        %v1729 = vmul.f32 %v1600, 0.5
        %v1730 = vmul.f32 %v1601, 0.5
        %v1731 = vmul.f32 %v1602, 0.5
        %v1732 = vmul.f32 %v1603, 0.5
        %v1733 = vmul.f32 %v1604, 0.5
        %v1734 = vmul.f32 %v1605, 0.5
        %v1735 = vmul.f32 %v1606, 0.5
        %v1736 = vmul.f32 %v1607, 0.5
        %v1737 = vmul.f32 %v1608, 0.5
        %v1738 = vmul.f32 %v1609, 0.5
        %v1739 = vmul.f32 %v1610, 0.5
        %v1740 = vmul.f32 %v1611, 0.5
        %v1741 = vmul.f32 %v1612, 0.5
        %v1742 = vmul.f32 %v1613, 0.5
        %v1743 = vmul.f32 %v1614, 0.5
        %v1744 = vtanh.pop %v1680
        %v1745 = vtanh.pop %v1681
        %v1746 = vtanh.pop %v1682
        %v1747 = vtanh.pop %v1683
        %v1748 = vtanh.pop %v1684
        %v1749 = vtanh.pop %v1685
        %v1750 = vtanh.pop %v1686
        %v1751 = vtanh.pop %v1687
        %v1752 = vtanh.pop %v1688
        %v1753 = vtanh.pop %v1689
        %v1754 = vtanh.pop %v1690
        %v1755 = vtanh.pop %v1691
        %v1756 = vtanh.pop %v1692
        %v1757 = vtanh.pop %v1693
        %v1758 = vtanh.pop %v1694
        %v1759 = vtanh.pop %v1695
        %v1760 = vtanh.pop %v1696
        %v1761 = vtanh.pop %v1697
        %v1762 = vtanh.pop %v1698
        %v1763 = vtanh.pop %v1699
        %v1764 = vtanh.pop %v1700
        %v1765 = vtanh.pop %v1701
        %v1766 = vtanh.pop %v1702
        %v1767 = vtanh.pop %v1703
        %v1768 = vtanh.pop %v1704
        %v1769 = vtanh.pop %v1705
        %v1770 = vtanh.pop %v1706
        %v1771 = vtanh.pop %v1707
        %v1772 = vtanh.pop %v1708
        %v1773 = vtanh.pop %v1709
        %v1774 = vtanh.pop %v1710
        %v1775 = vtanh.pop %v1711
        %v1776 = vtanh.pop %v1712
        %v1777 = vtanh.pop %v1713
        %v1778 = vtanh.pop %v1714
        %v1779 = vtanh.pop %v1715
        %v1780 = vtanh.pop %v1716
        %v1781 = vtanh.pop %v1717
        %v1782 = vtanh.pop %v1718
        %v1783 = vtanh.pop %v1719
        %v1784 = vtanh.pop %v1720
        %v1785 = vtanh.pop %v1721
        %v1786 = vtanh.pop %v1722
        %v1787 = vtanh.pop %v1723
        %v1788 = vtanh.pop %v1724
        %v1789 = vtanh.pop %v1725
        %v1790 = vtanh.pop %v1726
        %v1791 = vtanh.pop %v1727
        %v1792 = vtanh.pop %v1728
        %v1793 = vtanh.pop %v1729
        %v1794 = vtanh.pop %v1730
        %v1795 = vtanh.pop %v1731
        %v1796 = vtanh.pop %v1732
        %v1797 = vtanh.pop %v1733
        %v1798 = vtanh.pop %v1734
        %v1799 = vtanh.pop %v1735
        %v1800 = vtanh.pop %v1736
        %v1801 = vtanh.pop %v1737
        %v1802 = vtanh.pop %v1738
        %v1803 = vtanh.pop %v1739
        %v1804 = vtanh.pop %v1740
        %v1805 = vtanh.pop %v1741
        %v1806 = vtanh.pop %v1742
        %v1807 = vtanh.pop %v1743
        %v1808 = vmul.f32 %v1744, 0.5
        %v1809 = vmul.f32 %v1745, 0.5
        %v1810 = vmul.f32 %v1746, 0.5
        %v1811 = vmul.f32 %v1747, 0.5
        %v1812 = vmul.f32 %v1748, 0.5
        %v1813 = vmul.f32 %v1749, 0.5
        %v1814 = vmul.f32 %v1750, 0.5
        %v1815 = vmul.f32 %v1751, 0.5
        %v1816 = vmul.f32 %v1752, 0.5
        %v1817 = vmul.f32 %v1753, 0.5
        %v1818 = vmul.f32 %v1754, 0.5
        %v1819 = vmul.f32 %v1755, 0.5
        %v1820 = vmul.f32 %v1756, 0.5
        %v1821 = vmul.f32 %v1757, 0.5
        %v1822 = vmul.f32 %v1758, 0.5
        %v1823 = vmul.f32 %v1759, 0.5
        %v1824 = vmul.f32 %v1760, 0.5
        %v1825 = vmul.f32 %v1761, 0.5
        %v1826 = vmul.f32 %v1762, 0.5
        %v1827 = vmul.f32 %v1763, 0.5
        %v1828 = vmul.f32 %v1764, 0.5
        %v1829 = vmul.f32 %v1765, 0.5
        %v1830 = vmul.f32 %v1766, 0.5
        %v1831 = vmul.f32 %v1767, 0.5
        %v1832 = vmul.f32 %v1768, 0.5
        %v1833 = vmul.f32 %v1769, 0.5
        %v1834 = vmul.f32 %v1770, 0.5
        %v1835 = vmul.f32 %v1771, 0.5
        %v1836 = vmul.f32 %v1772, 0.5
        %v1837 = vmul.f32 %v1773, 0.5
        %v1838 = vmul.f32 %v1774, 0.5
        %v1839 = vmul.f32 %v1775, 0.5
        %v1840 = vmul.f32 %v1776, 0.5
        %v1841 = vmul.f32 %v1777, 0.5
        %v1842 = vmul.f32 %v1778, 0.5
        %v1843 = vmul.f32 %v1779, 0.5
        %v1844 = vmul.f32 %v1780, 0.5
        %v1845 = vmul.f32 %v1781, 0.5
        %v1846 = vmul.f32 %v1782, 0.5
        %v1847 = vmul.f32 %v1783, 0.5
        %v1848 = vmul.f32 %v1784, 0.5
        %v1849 = vmul.f32 %v1785, 0.5
        %v1850 = vmul.f32 %v1786, 0.5
        %v1851 = vmul.f32 %v1787, 0.5
        %v1852 = vmul.f32 %v1788, 0.5
        %v1853 = vmul.f32 %v1789, 0.5
        %v1854 = vmul.f32 %v1790, 0.5
        %v1855 = vmul.f32 %v1791, 0.5
        %v1856 = vmul.f32 %v1792, 0.5
        %v1857 = vmul.f32 %v1793, 0.5
        %v1858 = vmul.f32 %v1794, 0.5
        %v1859 = vmul.f32 %v1795, 0.5
        %v1860 = vmul.f32 %v1796, 0.5
        %v1861 = vmul.f32 %v1797, 0.5
        %v1862 = vmul.f32 %v1798, 0.5
        %v1863 = vmul.f32 %v1799, 0.5
        %v1864 = vmul.f32 %v1800, 0.5
        %v1865 = vmul.f32 %v1801, 0.5
        %v1866 = vmul.f32 %v1802, 0.5
        %v1867 = vmul.f32 %v1803, 0.5
        %v1868 = vmul.f32 %v1804, 0.5
        %v1869 = vmul.f32 %v1805, 0.5
        %v1870 = vmul.f32 %v1806, 0.5
        %v1871 = vmul.f32 %v1807, 0.5
        %v1872 = vadd.f32 %v1808, 0.5
        %v1873 = vadd.f32 %v1809, 0.5
        %v1874 = vadd.f32 %v1810, 0.5
        %v1875 = vadd.f32 %v1811, 0.5
        %v1876 = vadd.f32 %v1812, 0.5
        %v1877 = vadd.f32 %v1813, 0.5
        %v1878 = vadd.f32 %v1814, 0.5
        %v1879 = vadd.f32 %v1815, 0.5
        %v1880 = vadd.f32 %v1816, 0.5
        %v1881 = vadd.f32 %v1817, 0.5
        %v1882 = vadd.f32 %v1818, 0.5
        %v1883 = vadd.f32 %v1819, 0.5
        %v1884 = vadd.f32 %v1820, 0.5
        %v1885 = vadd.f32 %v1821, 0.5
        %v1886 = vadd.f32 %v1822, 0.5
        %v1887 = vadd.f32 %v1823, 0.5
        %v1888 = vadd.f32 %v1824, 0.5
        %v1889 = vadd.f32 %v1825, 0.5
        %v1890 = vadd.f32 %v1826, 0.5
        %v1891 = vadd.f32 %v1827, 0.5
        %v1892 = vadd.f32 %v1828, 0.5
        %v1893 = vadd.f32 %v1829, 0.5
        %v1894 = vadd.f32 %v1830, 0.5
        %v1895 = vadd.f32 %v1831, 0.5
        %v1896 = vadd.f32 %v1832, 0.5
        %v1897 = vadd.f32 %v1833, 0.5
        %v1898 = vadd.f32 %v1834, 0.5
        %v1899 = vadd.f32 %v1835, 0.5
        %v1900 = vadd.f32 %v1836, 0.5
        %v1901 = vadd.f32 %v1837, 0.5
        %v1902 = vadd.f32 %v1838, 0.5
        %v1903 = vadd.f32 %v1839, 0.5
        %v1904 = vadd.f32 %v1840, 0.5
        %v1905 = vadd.f32 %v1841, 0.5
        %v1906 = vadd.f32 %v1842, 0.5
        %v1907 = vadd.f32 %v1843, 0.5
        %v1908 = vadd.f32 %v1844, 0.5
        %v1909 = vadd.f32 %v1845, 0.5
        %v1910 = vadd.f32 %v1846, 0.5
        %v1911 = vadd.f32 %v1847, 0.5
        %v1912 = vadd.f32 %v1848, 0.5
        %v1913 = vadd.f32 %v1849, 0.5
        %v1914 = vadd.f32 %v1850, 0.5
        %v1915 = vadd.f32 %v1851, 0.5
        %v1916 = vadd.f32 %v1852, 0.5
        %v1917 = vadd.f32 %v1853, 0.5
        %v1918 = vadd.f32 %v1854, 0.5
        %v1919 = vadd.f32 %v1855, 0.5
        %v1920 = vadd.f32 %v1856, 0.5
        %v1921 = vadd.f32 %v1857, 0.5
        %v1922 = vadd.f32 %v1858, 0.5
        %v1923 = vadd.f32 %v1859, 0.5
        %v1924 = vadd.f32 %v1860, 0.5
        %v1925 = vadd.f32 %v1861, 0.5
        %v1926 = vadd.f32 %v1862, 0.5
        %v1927 = vadd.f32 %v1863, 0.5
        %v1928 = vadd.f32 %v1864, 0.5
        %v1929 = vadd.f32 %v1865, 0.5
        %v1930 = vadd.f32 %v1866, 0.5
        %v1931 = vadd.f32 %v1867, 0.5
        %v1932 = vadd.f32 %v1868, 0.5
        %v1933 = vadd.f32 %v1869, 0.5
        %v1934 = vadd.f32 %v1870, 0.5
        %v1935 = vadd.f32 %v1871, 0.5
        %v1936 = vmul.f32 %v1872, %v1616
        %v1937 = vmul.f32 %v1873, %v1617
        %v1938 = vmul.f32 %v1874, %v1618
        %v1939 = vmul.f32 %v1875, %v1619
        %v1940 = vmul.f32 %v1876, %v1620
        %v1941 = vmul.f32 %v1877, %v1621
        %v1942 = vmul.f32 %v1878, %v1622
        %v1943 = vmul.f32 %v1879, %v1623
        %v1944 = vmul.f32 %v1880, %v1624
        %v1945 = vmul.f32 %v1881, %v1625
        %v1946 = vmul.f32 %v1882, %v1626
        %v1947 = vmul.f32 %v1883, %v1627
        %v1948 = vmul.f32 %v1884, %v1628
        %v1949 = vmul.f32 %v1885, %v1629
        %v1950 = vmul.f32 %v1886, %v1630
        %v1951 = vmul.f32 %v1887, %v1631
        %v1952 = vmul.f32 %v1888, %v1632
        %v1953 = vmul.f32 %v1889, %v1633
        %v1954 = vmul.f32 %v1890, %v1634
        %v1955 = vmul.f32 %v1891, %v1635
        %v1956 = vmul.f32 %v1892, %v1636
        %v1957 = vmul.f32 %v1893, %v1637
        %v1958 = vmul.f32 %v1894, %v1638
        %v1959 = vmul.f32 %v1895, %v1639
        %v1960 = vmul.f32 %v1896, %v1640
        %v1961 = vmul.f32 %v1897, %v1641
        %v1962 = vmul.f32 %v1898, %v1642
        %v1963 = vmul.f32 %v1899, %v1643
        %v1964 = vmul.f32 %v1900, %v1644
        %v1965 = vmul.f32 %v1901, %v1645
        %v1966 = vmul.f32 %v1902, %v1646
        %v1967 = vmul.f32 %v1903, %v1647
        %v1968 = vmul.f32 %v1904, %v1648
        %v1969 = vmul.f32 %v1905, %v1649
        %v1970 = vmul.f32 %v1906, %v1650
        %v1971 = vmul.f32 %v1907, %v1651
        %v1972 = vmul.f32 %v1908, %v1652
        %v1973 = vmul.f32 %v1909, %v1653
        %v1974 = vmul.f32 %v1910, %v1654
        %v1975 = vmul.f32 %v1911, %v1655
        %v1976 = vmul.f32 %v1912, %v1656
        %v1977 = vmul.f32 %v1913, %v1657
        %v1978 = vmul.f32 %v1914, %v1658
        %v1979 = vmul.f32 %v1915, %v1659
        %v1980 = vmul.f32 %v1916, %v1660
        %v1981 = vmul.f32 %v1917, %v1661
        %v1982 = vmul.f32 %v1918, %v1662
        %v1983 = vmul.f32 %v1919, %v1663
        %v1984 = vmul.f32 %v1920, %v1664
        %v1985 = vmul.f32 %v1921, %v1665
        %v1986 = vmul.f32 %v1922, %v1666
        %v1987 = vmul.f32 %v1923, %v1667
        %v1988 = vmul.f32 %v1924, %v1668
        %v1989 = vmul.f32 %v1925, %v1669
        %v1990 = vmul.f32 %v1926, %v1670
        %v1991 = vmul.f32 %v1927, %v1671
        %v1992 = vmul.f32 %v1928, %v1672
        %v1993 = vmul.f32 %v1929, %v1673
        %v1994 = vmul.f32 %v1930, %v1674
        %v1995 = vmul.f32 %v1931, %v1675
        %v1996 = vmul.f32 %v1932, %v1676
        %v1997 = vmul.f32 %v1933, %v1677
        %v1998 = vmul.f32 %v1934, %v1678
        %v1999 = vmul.f32 %v1935, %v1679
        %v2000 = vadd.f32 %v1936, %v1937
        %v2001 = vadd.f32 %v2000, %v1938
        %v2002 = vadd.f32 %v2001, %v1939
        %v2003 = vadd.f32 %v2002, %v1940
        %v2004 = vadd.f32 %v2003, %v1941
        %v2005 = vadd.f32 %v2004, %v1942
        %v2006 = vadd.f32 %v2005, %v1943
        %v2007 = vadd.f32 %v2006, %v1944
        %v2008 = vadd.f32 %v2007, %v1945
        %v2009 = vadd.f32 %v2008, %v1946
        %v2010 = vadd.f32 %v2009, %v1947
        %v2011 = vadd.f32 %v2010, %v1948
        %v2012 = vadd.f32 %v2011, %v1949
        %v2013 = vadd.f32 %v2012, %v1950
        %v2014 = vadd.f32 %v2013, %v1951
        %v2015 = vadd.f32 %v2014, %v1952
        %v2016 = vadd.f32 %v2015, %v1953
        %v2017 = vadd.f32 %v2016, %v1954
        %v2018 = vadd.f32 %v2017, %v1955
        %v2019 = vadd.f32 %v2018, %v1956
        %v2020 = vadd.f32 %v2019, %v1957
        %v2021 = vadd.f32 %v2020, %v1958
        %v2022 = vadd.f32 %v2021, %v1959
        %v2023 = vadd.f32 %v2022, %v1960
        %v2024 = vadd.f32 %v2023, %v1961
        %v2025 = vadd.f32 %v2024, %v1962
        %v2026 = vadd.f32 %v2025, %v1963
        %v2027 = vadd.f32 %v2026, %v1964
        %v2028 = vadd.f32 %v2027, %v1965
        %v2029 = vadd.f32 %v2028, %v1966
        %v2030 = vadd.f32 %v2029, %v1967
        %v2031 = vadd.f32 %v2030, %v1968
        %v2032 = vadd.f32 %v2031, %v1969
        %v2033 = vadd.f32 %v2032, %v1970
        %v2034 = vadd.f32 %v2033, %v1971
        %v2035 = vadd.f32 %v2034, %v1972
        %v2036 = vadd.f32 %v2035, %v1973
        %v2037 = vadd.f32 %v2036, %v1974
        %v2038 = vadd.f32 %v2037, %v1975
        %v2039 = vadd.f32 %v2038, %v1976
        %v2040 = vadd.f32 %v2039, %v1977
        %v2041 = vadd.f32 %v2040, %v1978
        %v2042 = vadd.f32 %v2041, %v1979
        %v2043 = vadd.f32 %v2042, %v1980
        %v2044 = vadd.f32 %v2043, %v1981
        %v2045 = vadd.f32 %v2044, %v1982
        %v2046 = vadd.f32 %v2045, %v1983
        %v2047 = vadd.f32 %v2046, %v1984
        %v2048 = vadd.f32 %v2047, %v1985
        %v2049 = vadd.f32 %v2048, %v1986
        %v2050 = vadd.f32 %v2049, %v1987
        %v2051 = vadd.f32 %v2050, %v1988
        %v2052 = vadd.f32 %v2051, %v1989
        %v2053 = vadd.f32 %v2052, %v1990
        %v2054 = vadd.f32 %v2053, %v1991
        %v2055 = vadd.f32 %v2054, %v1992
        %v2056 = vadd.f32 %v2055, %v1993
        %v2057 = vadd.f32 %v2056, %v1994
        %v2058 = vadd.f32 %v2057, %v1995
        %v2059 = vadd.f32 %v2058, %v1996
        %v2060 = vadd.f32 %v2059, %v1997
        %v2061 = vadd.f32 %v2060, %v1998
        %v2062 = vadd.f32 %v2061, %v1999
        %v2063 = vadd.f32 %v1421, %v2062
        %v2064 = vadd.f32 %v1872, %v1616
        %v2065 = vadd.f32 %v1873, %v1617
        %v2066 = vadd.f32 %v1874, %v1618
        %v2067 = vadd.f32 %v1875, %v1619
        %v2068 = vadd.f32 %v1876, %v1620
        %v2069 = vadd.f32 %v1877, %v1621
        %v2070 = vadd.f32 %v1878, %v1622
        %v2071 = vadd.f32 %v1879, %v1623
        %v2072 = vadd.f32 %v1880, %v1624
        %v2073 = vadd.f32 %v1881, %v1625
        %v2074 = vadd.f32 %v1882, %v1626
        %v2075 = vadd.f32 %v1883, %v1627
        %v2076 = vadd.f32 %v1884, %v1628
        %v2077 = vadd.f32 %v1885, %v1629
        %v2078 = vadd.f32 %v1886, %v1630
        %v2079 = vadd.f32 %v1887, %v1631
        %v2080 = vadd.f32 %v1888, %v1632
        %v2081 = vadd.f32 %v1889, %v1633
        %v2082 = vadd.f32 %v1890, %v1634
        %v2083 = vadd.f32 %v1891, %v1635
        %v2084 = vadd.f32 %v1892, %v1636
        %v2085 = vadd.f32 %v1893, %v1637
        %v2086 = vadd.f32 %v1894, %v1638
        %v2087 = vadd.f32 %v1895, %v1639
        %v2088 = vadd.f32 %v1896, %v1640
        %v2089 = vadd.f32 %v1897, %v1641
        %v2090 = vadd.f32 %v1898, %v1642
        %v2091 = vadd.f32 %v1899, %v1643
        %v2092 = vadd.f32 %v1900, %v1644
        %v2093 = vadd.f32 %v1901, %v1645
        %v2094 = vadd.f32 %v1902, %v1646
        %v2095 = vadd.f32 %v1903, %v1647
        %v2096 = vadd.f32 %v1904, %v1648
        %v2097 = vadd.f32 %v1905, %v1649
        %v2098 = vadd.f32 %v1906, %v1650
        %v2099 = vadd.f32 %v1907, %v1651
        %v2100 = vadd.f32 %v1908, %v1652
        %v2101 = vadd.f32 %v1909, %v1653
        %v2102 = vadd.f32 %v1910, %v1654
        %v2103 = vadd.f32 %v1911, %v1655
        %v2104 = vadd.f32 %v1912, %v1656
        %v2105 = vadd.f32 %v1913, %v1657
        %v2106 = vadd.f32 %v1914, %v1658
        %v2107 = vadd.f32 %v1915, %v1659
        %v2108 = vadd.f32 %v1916, %v1660
        %v2109 = vadd.f32 %v1917, %v1661
        %v2110 = vadd.f32 %v1918, %v1662
        %v2111 = vadd.f32 %v1919, %v1663
        %v2112 = vadd.f32 %v1920, %v1664
        %v2113 = vadd.f32 %v1921, %v1665
        %v2114 = vadd.f32 %v1922, %v1666
        %v2115 = vadd.f32 %v1923, %v1667
        %v2116 = vadd.f32 %v1924, %v1668
        %v2117 = vadd.f32 %v1925, %v1669
        %v2118 = vadd.f32 %v1926, %v1670
        %v2119 = vadd.f32 %v1927, %v1671
        %v2120 = vadd.f32 %v1928, %v1672
        %v2121 = vadd.f32 %v1929, %v1673
        %v2122 = vadd.f32 %v1930, %v1674
        %v2123 = vadd.f32 %v1931, %v1675
        %v2124 = vadd.f32 %v1932, %v1676
        %v2125 = vadd.f32 %v1933, %v1677
        %v2126 = vadd.f32 %v1934, %v1678
        %v2127 = vadd.f32 %v1935, %v1679
        %v2128 = vadd.f32 %v2064, %v2065
        %v2129 = vadd.f32 %v2128, %v2066
        %v2130 = vadd.f32 %v2129, %v2067
        %v2131 = vadd.f32 %v2130, %v2068
        %v2132 = vadd.f32 %v2131, %v2069
        %v2133 = vadd.f32 %v2132, %v2070
        %v2134 = vadd.f32 %v2133, %v2071
        %v2135 = vadd.f32 %v2134, %v2072
        %v2136 = vadd.f32 %v2135, %v2073
        %v2137 = vadd.f32 %v2136, %v2074
        %v2138 = vadd.f32 %v2137, %v2075
        %v2139 = vadd.f32 %v2138, %v2076
        %v2140 = vadd.f32 %v2139, %v2077
        %v2141 = vadd.f32 %v2140, %v2078
        %v2142 = vadd.f32 %v2141, %v2079
        %v2143 = vadd.f32 %v2142, %v2080
        %v2144 = vadd.f32 %v2143, %v2081
        %v2145 = vadd.f32 %v2144, %v2082
        %v2146 = vadd.f32 %v2145, %v2083
        %v2147 = vadd.f32 %v2146, %v2084
        %v2148 = vadd.f32 %v2147, %v2085
        %v2149 = vadd.f32 %v2148, %v2086
        %v2150 = vadd.f32 %v2149, %v2087
        %v2151 = vadd.f32 %v2150, %v2088
        %v2152 = vadd.f32 %v2151, %v2089
        %v2153 = vadd.f32 %v2152, %v2090
        %v2154 = vadd.f32 %v2153, %v2091
        %v2155 = vadd.f32 %v2154, %v2092
        %v2156 = vadd.f32 %v2155, %v2093
        %v2157 = vadd.f32 %v2156, %v2094
        %v2158 = vadd.f32 %v2157, %v2095
        %v2159 = vadd.f32 %v2158, %v2096
        %v2160 = vadd.f32 %v2159, %v2097
        %v2161 = vadd.f32 %v2160, %v2098
        %v2162 = vadd.f32 %v2161, %v2099
        %v2163 = vadd.f32 %v2162, %v2100
        %v2164 = vadd.f32 %v2163, %v2101
        %v2165 = vadd.f32 %v2164, %v2102
        %v2166 = vadd.f32 %v2165, %v2103
        %v2167 = vadd.f32 %v2166, %v2104
        %v2168 = vadd.f32 %v2167, %v2105
        %v2169 = vadd.f32 %v2168, %v2106
        %v2170 = vadd.f32 %v2169, %v2107
        %v2171 = vadd.f32 %v2170, %v2108
        %v2172 = vadd.f32 %v2171, %v2109
        %v2173 = vadd.f32 %v2172, %v2110
        %v2174 = vadd.f32 %v2173, %v2111
        %v2175 = vadd.f32 %v2174, %v2112
        %v2176 = vadd.f32 %v2175, %v2113
        %v2177 = vadd.f32 %v2176, %v2114
        %v2178 = vadd.f32 %v2177, %v2115
        %v2179 = vadd.f32 %v2178, %v2116
        %v2180 = vadd.f32 %v2179, %v2117
        %v2181 = vadd.f32 %v2180, %v2118
        %v2182 = vadd.f32 %v2181, %v2119
        %v2183 = vadd.f32 %v2182, %v2120
        %v2184 = vadd.f32 %v2183, %v2121
        %v2185 = vadd.f32 %v2184, %v2122
        %v2186 = vadd.f32 %v2185, %v2123
        %v2187 = vadd.f32 %v2186, %v2124
        %v2188 = vadd.f32 %v2187, %v2125
        %v2189 = vadd.f32 %v2188, %v2126
        %v2190 = vadd.f32 %v2189, %v2127
        %v2191 = vadd.f32 %v1549, %v2190
        %s2192 = scalar_lea.vmem %s216, 1536 [#allocation2]
        %v2193 = vld [vmem:[%s2192] sm:$0xff]
        %v2194 = vld [vmem:[%s2192 + $0x8] sm:$0xff]
        %v2195 = vld [vmem:[%s2192 + $0x10] sm:$0xff]
        %v2196 = vld [vmem:[%s2192 + $0x18] sm:$0xff]
        %v2197 = vld [vmem:[%s2192 + $0x20] sm:$0xff]
        %v2198 = vld [vmem:[%s2192 + $0x28] sm:$0xff]
        %v2199 = vld [vmem:[%s2192 + $0x30] sm:$0xff]
        %v2200 = vld [vmem:[%s2192 + $0x38] sm:$0xff]
        %v2201 = vld [vmem:[%s2192 + $0x40] sm:$0xff]
        %v2202 = vld [vmem:[%s2192 + $0x48] sm:$0xff]
        %v2203 = vld [vmem:[%s2192 + $0x50] sm:$0xff]
        %v2204 = vld [vmem:[%s2192 + $0x58] sm:$0xff]
        %v2205 = vld [vmem:[%s2192 + $0x60] sm:$0xff]
        %v2206 = vld [vmem:[%s2192 + $0x68] sm:$0xff]
        %v2207 = vld [vmem:[%s2192 + $0x70] sm:$0xff]
        %v2208 = vld [vmem:[%s2192 + $0x78] sm:$0xff]
        %v2209 = vld [vmem:[%s2192 + $0x80] sm:$0xff]
        %v2210 = vld [vmem:[%s2192 + $0x88] sm:$0xff]
        %v2211 = vld [vmem:[%s2192 + $0x90] sm:$0xff]
        %v2212 = vld [vmem:[%s2192 + $0x98] sm:$0xff]
        %v2213 = vld [vmem:[%s2192 + $0xa0] sm:$0xff]
        %v2214 = vld [vmem:[%s2192 + $0xa8] sm:$0xff]
        %v2215 = vld [vmem:[%s2192 + $0xb0] sm:$0xff]
        %v2216 = vld [vmem:[%s2192 + $0xb8] sm:$0xff]
        %v2217 = vld [vmem:[%s2192 + $0xc0] sm:$0xff]
        %v2218 = vld [vmem:[%s2192 + $0xc8] sm:$0xff]
        %v2219 = vld [vmem:[%s2192 + $0xd0] sm:$0xff]
        %v2220 = vld [vmem:[%s2192 + $0xd8] sm:$0xff]
        %v2221 = vld [vmem:[%s2192 + $0xe0] sm:$0xff]
        %v2222 = vld [vmem:[%s2192 + $0xe8] sm:$0xff]
        %v2223 = vld [vmem:[%s2192 + $0xf0] sm:$0xff]
        %v2224 = vld [vmem:[%s2192 + $0xf8] sm:$0xff]
        %v2225 = vld [vmem:[%s2192 + $0x100] sm:$0xff]
        %v2226 = vld [vmem:[%s2192 + $0x108] sm:$0xff]
        %v2227 = vld [vmem:[%s2192 + $0x110] sm:$0xff]
        %v2228 = vld [vmem:[%s2192 + $0x118] sm:$0xff]
        %v2229 = vld [vmem:[%s2192 + $0x120] sm:$0xff]
        %v2230 = vld [vmem:[%s2192 + $0x128] sm:$0xff]
        %v2231 = vld [vmem:[%s2192 + $0x130] sm:$0xff]
        %v2232 = vld [vmem:[%s2192 + $0x138] sm:$0xff]
        %v2233 = vld [vmem:[%s2192 + $0x140] sm:$0xff]
        %v2234 = vld [vmem:[%s2192 + $0x148] sm:$0xff]
        %v2235 = vld [vmem:[%s2192 + $0x150] sm:$0xff]
        %v2236 = vld [vmem:[%s2192 + $0x158] sm:$0xff]
        %v2237 = vld [vmem:[%s2192 + $0x160] sm:$0xff]
        %v2238 = vld [vmem:[%s2192 + $0x168] sm:$0xff]
        %v2239 = vld [vmem:[%s2192 + $0x170] sm:$0xff]
        %v2240 = vld [vmem:[%s2192 + $0x178] sm:$0xff]
        %v2241 = vld [vmem:[%s2192 + $0x180] sm:$0xff]
        %v2242 = vld [vmem:[%s2192 + $0x188] sm:$0xff]
        %v2243 = vld [vmem:[%s2192 + $0x190] sm:$0xff]
        %v2244 = vld [vmem:[%s2192 + $0x198] sm:$0xff]
        %v2245 = vld [vmem:[%s2192 + $0x1a0] sm:$0xff]
        %v2246 = vld [vmem:[%s2192 + $0x1a8] sm:$0xff]
        %v2247 = vld [vmem:[%s2192 + $0x1b0] sm:$0xff]
        %v2248 = vld [vmem:[%s2192 + $0x1b8] sm:$0xff]
        %v2249 = vld [vmem:[%s2192 + $0x1c0] sm:$0xff]
        %v2250 = vld [vmem:[%s2192 + $0x1c8] sm:$0xff]
        %v2251 = vld [vmem:[%s2192 + $0x1d0] sm:$0xff]
        %v2252 = vld [vmem:[%s2192 + $0x1d8] sm:$0xff]
        %v2253 = vld [vmem:[%s2192 + $0x1e0] sm:$0xff]
        %v2254 = vld [vmem:[%s2192 + $0x1e8] sm:$0xff]
        %v2255 = vld [vmem:[%s2192 + $0x1f0] sm:$0xff]
        %v2256 = vld [vmem:[%s2192 + $0x1f8] sm:$0xff]
        %s2257 = scalar_lea.vmem %s225, 1536 [#allocation5]
        %v2258 = vld [vmem:[%s2257] sm:$0xff]
        %v2259 = vld [vmem:[%s2257 + $0x8] sm:$0xff]
        %v2260 = vld [vmem:[%s2257 + $0x10] sm:$0xff]
        %v2261 = vld [vmem:[%s2257 + $0x18] sm:$0xff]
        %v2262 = vld [vmem:[%s2257 + $0x20] sm:$0xff]
        %v2263 = vld [vmem:[%s2257 + $0x28] sm:$0xff]
        %v2264 = vld [vmem:[%s2257 + $0x30] sm:$0xff]
        %v2265 = vld [vmem:[%s2257 + $0x38] sm:$0xff]
        %v2266 = vld [vmem:[%s2257 + $0x40] sm:$0xff]
        %v2267 = vld [vmem:[%s2257 + $0x48] sm:$0xff]
        %v2268 = vld [vmem:[%s2257 + $0x50] sm:$0xff]
        %v2269 = vld [vmem:[%s2257 + $0x58] sm:$0xff]
        %v2270 = vld [vmem:[%s2257 + $0x60] sm:$0xff]
        %v2271 = vld [vmem:[%s2257 + $0x68] sm:$0xff]
        %v2272 = vld [vmem:[%s2257 + $0x70] sm:$0xff]
        %v2273 = vld [vmem:[%s2257 + $0x78] sm:$0xff]
        %v2274 = vld [vmem:[%s2257 + $0x80] sm:$0xff]
        %v2275 = vld [vmem:[%s2257 + $0x88] sm:$0xff]
        %v2276 = vld [vmem:[%s2257 + $0x90] sm:$0xff]
        %v2277 = vld [vmem:[%s2257 + $0x98] sm:$0xff]
        %v2278 = vld [vmem:[%s2257 + $0xa0] sm:$0xff]
        %v2279 = vld [vmem:[%s2257 + $0xa8] sm:$0xff]
        %v2280 = vld [vmem:[%s2257 + $0xb0] sm:$0xff]
        %v2281 = vld [vmem:[%s2257 + $0xb8] sm:$0xff]
        %v2282 = vld [vmem:[%s2257 + $0xc0] sm:$0xff]
        %v2283 = vld [vmem:[%s2257 + $0xc8] sm:$0xff]
        %v2284 = vld [vmem:[%s2257 + $0xd0] sm:$0xff]
        %v2285 = vld [vmem:[%s2257 + $0xd8] sm:$0xff]
        %v2286 = vld [vmem:[%s2257 + $0xe0] sm:$0xff]
        %v2287 = vld [vmem:[%s2257 + $0xe8] sm:$0xff]
        %v2288 = vld [vmem:[%s2257 + $0xf0] sm:$0xff]
        %v2289 = vld [vmem:[%s2257 + $0xf8] sm:$0xff]
        %v2290 = vld [vmem:[%s2257 + $0x100] sm:$0xff]
        %v2291 = vld [vmem:[%s2257 + $0x108] sm:$0xff]
        %v2292 = vld [vmem:[%s2257 + $0x110] sm:$0xff]
        %v2293 = vld [vmem:[%s2257 + $0x118] sm:$0xff]
        %v2294 = vld [vmem:[%s2257 + $0x120] sm:$0xff]
        %v2295 = vld [vmem:[%s2257 + $0x128] sm:$0xff]
        %v2296 = vld [vmem:[%s2257 + $0x130] sm:$0xff]
        %v2297 = vld [vmem:[%s2257 + $0x138] sm:$0xff]
        %v2298 = vld [vmem:[%s2257 + $0x140] sm:$0xff]
        %v2299 = vld [vmem:[%s2257 + $0x148] sm:$0xff]
        %v2300 = vld [vmem:[%s2257 + $0x150] sm:$0xff]
        %v2301 = vld [vmem:[%s2257 + $0x158] sm:$0xff]
        %v2302 = vld [vmem:[%s2257 + $0x160] sm:$0xff]
        %v2303 = vld [vmem:[%s2257 + $0x168] sm:$0xff]
        %v2304 = vld [vmem:[%s2257 + $0x170] sm:$0xff]
        %v2305 = vld [vmem:[%s2257 + $0x178] sm:$0xff]
        %v2306 = vld [vmem:[%s2257 + $0x180] sm:$0xff]
        %v2307 = vld [vmem:[%s2257 + $0x188] sm:$0xff]
        %v2308 = vld [vmem:[%s2257 + $0x190] sm:$0xff]
        %v2309 = vld [vmem:[%s2257 + $0x198] sm:$0xff]
        %v2310 = vld [vmem:[%s2257 + $0x1a0] sm:$0xff]
        %v2311 = vld [vmem:[%s2257 + $0x1a8] sm:$0xff]
        %v2312 = vld [vmem:[%s2257 + $0x1b0] sm:$0xff]
        %v2313 = vld [vmem:[%s2257 + $0x1b8] sm:$0xff]
        %v2314 = vld [vmem:[%s2257 + $0x1c0] sm:$0xff]
        %v2315 = vld [vmem:[%s2257 + $0x1c8] sm:$0xff]
        %v2316 = vld [vmem:[%s2257 + $0x1d0] sm:$0xff]
        %v2317 = vld [vmem:[%s2257 + $0x1d8] sm:$0xff]
        %v2318 = vld [vmem:[%s2257 + $0x1e0] sm:$0xff]
        %v2319 = vld [vmem:[%s2257 + $0x1e8] sm:$0xff]
        %v2320 = vld [vmem:[%s2257 + $0x1f0] sm:$0xff]
        %v2321 = vld [vmem:[%s2257 + $0x1f8] sm:$0xff]
        %v2322 = vmul.f32 %v2193, 0.5
        %v2323 = vmul.f32 %v2194, 0.5
        %v2324 = vmul.f32 %v2195, 0.5
        %v2325 = vmul.f32 %v2196, 0.5
        %v2326 = vmul.f32 %v2197, 0.5
        %v2327 = vmul.f32 %v2198, 0.5
        %v2328 = vmul.f32 %v2199, 0.5
        %v2329 = vmul.f32 %v2200, 0.5
        %v2330 = vmul.f32 %v2201, 0.5
        %v2331 = vmul.f32 %v2202, 0.5
        %v2332 = vmul.f32 %v2203, 0.5
        %v2333 = vmul.f32 %v2204, 0.5
        %v2334 = vmul.f32 %v2205, 0.5
        %v2335 = vmul.f32 %v2206, 0.5
        %v2336 = vmul.f32 %v2207, 0.5
        %v2337 = vmul.f32 %v2208, 0.5
        %v2338 = vmul.f32 %v2209, 0.5
        %v2339 = vmul.f32 %v2210, 0.5
        %v2340 = vmul.f32 %v2211, 0.5
        %v2341 = vmul.f32 %v2212, 0.5
        %v2342 = vmul.f32 %v2213, 0.5
        %v2343 = vmul.f32 %v2214, 0.5
        %v2344 = vmul.f32 %v2215, 0.5
        %v2345 = vmul.f32 %v2216, 0.5
        %v2346 = vmul.f32 %v2217, 0.5
        %v2347 = vmul.f32 %v2218, 0.5
        %v2348 = vmul.f32 %v2219, 0.5
        %v2349 = vmul.f32 %v2220, 0.5
        %v2350 = vmul.f32 %v2221, 0.5
        %v2351 = vmul.f32 %v2222, 0.5
        %v2352 = vmul.f32 %v2223, 0.5
        %v2353 = vmul.f32 %v2224, 0.5
        %v2354 = vmul.f32 %v2225, 0.5
        %v2355 = vmul.f32 %v2226, 0.5
        %v2356 = vmul.f32 %v2227, 0.5
        %v2357 = vmul.f32 %v2228, 0.5
        %v2358 = vmul.f32 %v2229, 0.5
        %v2359 = vmul.f32 %v2230, 0.5
        %v2360 = vmul.f32 %v2231, 0.5
        %v2361 = vmul.f32 %v2232, 0.5
        %v2362 = vmul.f32 %v2233, 0.5
        %v2363 = vmul.f32 %v2234, 0.5
        %v2364 = vmul.f32 %v2235, 0.5
        %v2365 = vmul.f32 %v2236, 0.5
        %v2366 = vmul.f32 %v2237, 0.5
        %v2367 = vmul.f32 %v2238, 0.5
        %v2368 = vmul.f32 %v2239, 0.5
        %v2369 = vmul.f32 %v2240, 0.5
        %v2370 = vmul.f32 %v2241, 0.5
        %v2371 = vmul.f32 %v2242, 0.5
        %v2372 = vmul.f32 %v2243, 0.5
        %v2373 = vmul.f32 %v2244, 0.5
        %v2374 = vmul.f32 %v2245, 0.5
        %v2375 = vmul.f32 %v2246, 0.5
        %v2376 = vmul.f32 %v2247, 0.5
        %v2377 = vmul.f32 %v2248, 0.5
        %v2378 = vmul.f32 %v2249, 0.5
        %v2379 = vmul.f32 %v2250, 0.5
        %v2380 = vmul.f32 %v2251, 0.5
        %v2381 = vmul.f32 %v2252, 0.5
        %v2382 = vmul.f32 %v2253, 0.5
        %v2383 = vmul.f32 %v2254, 0.5
        %v2384 = vmul.f32 %v2255, 0.5
        %v2385 = vmul.f32 %v2256, 0.5
        %v2386 = vtanh.pop %v2322
        %v2387 = vtanh.pop %v2323
        %v2388 = vtanh.pop %v2324
        %v2389 = vtanh.pop %v2325
        %v2390 = vtanh.pop %v2326
        %v2391 = vtanh.pop %v2327
        %v2392 = vtanh.pop %v2328
        %v2393 = vtanh.pop %v2329
        %v2394 = vtanh.pop %v2330
        %v2395 = vtanh.pop %v2331
        %v2396 = vtanh.pop %v2332
        %v2397 = vtanh.pop %v2333
        %v2398 = vtanh.pop %v2334
        %v2399 = vtanh.pop %v2335
        %v2400 = vtanh.pop %v2336
        %v2401 = vtanh.pop %v2337
        %v2402 = vtanh.pop %v2338
        %v2403 = vtanh.pop %v2339
        %v2404 = vtanh.pop %v2340
        %v2405 = vtanh.pop %v2341
        %v2406 = vtanh.pop %v2342
        %v2407 = vtanh.pop %v2343
        %v2408 = vtanh.pop %v2344
        %v2409 = vtanh.pop %v2345
        %v2410 = vtanh.pop %v2346
        %v2411 = vtanh.pop %v2347
        %v2412 = vtanh.pop %v2348
        %v2413 = vtanh.pop %v2349
        %v2414 = vtanh.pop %v2350
        %v2415 = vtanh.pop %v2351
        %v2416 = vtanh.pop %v2352
        %v2417 = vtanh.pop %v2353
        %v2418 = vtanh.pop %v2354
        %v2419 = vtanh.pop %v2355
        %v2420 = vtanh.pop %v2356
        %v2421 = vtanh.pop %v2357
        %v2422 = vtanh.pop %v2358
        %v2423 = vtanh.pop %v2359
        %v2424 = vtanh.pop %v2360
        %v2425 = vtanh.pop %v2361
        %v2426 = vtanh.pop %v2362
        %v2427 = vtanh.pop %v2363
        %v2428 = vtanh.pop %v2364
        %v2429 = vtanh.pop %v2365
        %v2430 = vtanh.pop %v2366
        %v2431 = vtanh.pop %v2367
        %v2432 = vtanh.pop %v2368
        %v2433 = vtanh.pop %v2369
        %v2434 = vtanh.pop %v2370
        %v2435 = vtanh.pop %v2371
        %v2436 = vtanh.pop %v2372
        %v2437 = vtanh.pop %v2373
        %v2438 = vtanh.pop %v2374
        %v2439 = vtanh.pop %v2375
        %v2440 = vtanh.pop %v2376
        %v2441 = vtanh.pop %v2377
        %v2442 = vtanh.pop %v2378
        %v2443 = vtanh.pop %v2379
        %v2444 = vtanh.pop %v2380
        %v2445 = vtanh.pop %v2381
        %v2446 = vtanh.pop %v2382
        %v2447 = vtanh.pop %v2383
        %v2448 = vtanh.pop %v2384
        %v2449 = vtanh.pop %v2385
        %v2450 = vmul.f32 %v2386, 0.5
        %v2451 = vmul.f32 %v2387, 0.5
        %v2452 = vmul.f32 %v2388, 0.5
        %v2453 = vmul.f32 %v2389, 0.5
        %v2454 = vmul.f32 %v2390, 0.5
        %v2455 = vmul.f32 %v2391, 0.5
        %v2456 = vmul.f32 %v2392, 0.5
        %v2457 = vmul.f32 %v2393, 0.5
        %v2458 = vmul.f32 %v2394, 0.5
        %v2459 = vmul.f32 %v2395, 0.5
        %v2460 = vmul.f32 %v2396, 0.5
        %v2461 = vmul.f32 %v2397, 0.5
        %v2462 = vmul.f32 %v2398, 0.5
        %v2463 = vmul.f32 %v2399, 0.5
        %v2464 = vmul.f32 %v2400, 0.5
        %v2465 = vmul.f32 %v2401, 0.5
        %v2466 = vmul.f32 %v2402, 0.5
        %v2467 = vmul.f32 %v2403, 0.5
        %v2468 = vmul.f32 %v2404, 0.5
        %v2469 = vmul.f32 %v2405, 0.5
        %v2470 = vmul.f32 %v2406, 0.5
        %v2471 = vmul.f32 %v2407, 0.5
        %v2472 = vmul.f32 %v2408, 0.5
        %v2473 = vmul.f32 %v2409, 0.5
        %v2474 = vmul.f32 %v2410, 0.5
        %v2475 = vmul.f32 %v2411, 0.5
        %v2476 = vmul.f32 %v2412, 0.5
        %v2477 = vmul.f32 %v2413, 0.5
        %v2478 = vmul.f32 %v2414, 0.5
        %v2479 = vmul.f32 %v2415, 0.5
        %v2480 = vmul.f32 %v2416, 0.5
        %v2481 = vmul.f32 %v2417, 0.5
        %v2482 = vmul.f32 %v2418, 0.5
        %v2483 = vmul.f32 %v2419, 0.5
        %v2484 = vmul.f32 %v2420, 0.5
        %v2485 = vmul.f32 %v2421, 0.5
        %v2486 = vmul.f32 %v2422, 0.5
        %v2487 = vmul.f32 %v2423, 0.5
        %v2488 = vmul.f32 %v2424, 0.5
        %v2489 = vmul.f32 %v2425, 0.5
        %v2490 = vmul.f32 %v2426, 0.5
        %v2491 = vmul.f32 %v2427, 0.5
        %v2492 = vmul.f32 %v2428, 0.5
        %v2493 = vmul.f32 %v2429, 0.5
        %v2494 = vmul.f32 %v2430, 0.5
        %v2495 = vmul.f32 %v2431, 0.5
        %v2496 = vmul.f32 %v2432, 0.5
        %v2497 = vmul.f32 %v2433, 0.5
        %v2498 = vmul.f32 %v2434, 0.5
        %v2499 = vmul.f32 %v2435, 0.5
        %v2500 = vmul.f32 %v2436, 0.5
        %v2501 = vmul.f32 %v2437, 0.5
        %v2502 = vmul.f32 %v2438, 0.5
        %v2503 = vmul.f32 %v2439, 0.5
        %v2504 = vmul.f32 %v2440, 0.5
        %v2505 = vmul.f32 %v2441, 0.5
        %v2506 = vmul.f32 %v2442, 0.5
        %v2507 = vmul.f32 %v2443, 0.5
        %v2508 = vmul.f32 %v2444, 0.5
        %v2509 = vmul.f32 %v2445, 0.5
        %v2510 = vmul.f32 %v2446, 0.5
        %v2511 = vmul.f32 %v2447, 0.5
        %v2512 = vmul.f32 %v2448, 0.5
        %v2513 = vmul.f32 %v2449, 0.5
        %v2514 = vadd.f32 %v2450, 0.5
        %v2515 = vadd.f32 %v2451, 0.5
        %v2516 = vadd.f32 %v2452, 0.5
        %v2517 = vadd.f32 %v2453, 0.5
        %v2518 = vadd.f32 %v2454, 0.5
        %v2519 = vadd.f32 %v2455, 0.5
        %v2520 = vadd.f32 %v2456, 0.5
        %v2521 = vadd.f32 %v2457, 0.5
        %v2522 = vadd.f32 %v2458, 0.5
        %v2523 = vadd.f32 %v2459, 0.5
        %v2524 = vadd.f32 %v2460, 0.5
        %v2525 = vadd.f32 %v2461, 0.5
        %v2526 = vadd.f32 %v2462, 0.5
        %v2527 = vadd.f32 %v2463, 0.5
        %v2528 = vadd.f32 %v2464, 0.5
        %v2529 = vadd.f32 %v2465, 0.5
        %v2530 = vadd.f32 %v2466, 0.5
        %v2531 = vadd.f32 %v2467, 0.5
        %v2532 = vadd.f32 %v2468, 0.5
        %v2533 = vadd.f32 %v2469, 0.5
        %v2534 = vadd.f32 %v2470, 0.5
        %v2535 = vadd.f32 %v2471, 0.5
        %v2536 = vadd.f32 %v2472, 0.5
        %v2537 = vadd.f32 %v2473, 0.5
        %v2538 = vadd.f32 %v2474, 0.5
        %v2539 = vadd.f32 %v2475, 0.5
        %v2540 = vadd.f32 %v2476, 0.5
        %v2541 = vadd.f32 %v2477, 0.5
        %v2542 = vadd.f32 %v2478, 0.5
        %v2543 = vadd.f32 %v2479, 0.5
        %v2544 = vadd.f32 %v2480, 0.5
        %v2545 = vadd.f32 %v2481, 0.5
        %v2546 = vadd.f32 %v2482, 0.5
        %v2547 = vadd.f32 %v2483, 0.5
        %v2548 = vadd.f32 %v2484, 0.5
        %v2549 = vadd.f32 %v2485, 0.5
        %v2550 = vadd.f32 %v2486, 0.5
        %v2551 = vadd.f32 %v2487, 0.5
        %v2552 = vadd.f32 %v2488, 0.5
        %v2553 = vadd.f32 %v2489, 0.5
        %v2554 = vadd.f32 %v2490, 0.5
        %v2555 = vadd.f32 %v2491, 0.5
        %v2556 = vadd.f32 %v2492, 0.5
        %v2557 = vadd.f32 %v2493, 0.5
        %v2558 = vadd.f32 %v2494, 0.5
        %v2559 = vadd.f32 %v2495, 0.5
        %v2560 = vadd.f32 %v2496, 0.5
        %v2561 = vadd.f32 %v2497, 0.5
        %v2562 = vadd.f32 %v2498, 0.5
        %v2563 = vadd.f32 %v2499, 0.5
        %v2564 = vadd.f32 %v2500, 0.5
        %v2565 = vadd.f32 %v2501, 0.5
        %v2566 = vadd.f32 %v2502, 0.5
        %v2567 = vadd.f32 %v2503, 0.5
        %v2568 = vadd.f32 %v2504, 0.5
        %v2569 = vadd.f32 %v2505, 0.5
        %v2570 = vadd.f32 %v2506, 0.5
        %v2571 = vadd.f32 %v2507, 0.5
        %v2572 = vadd.f32 %v2508, 0.5
        %v2573 = vadd.f32 %v2509, 0.5
        %v2574 = vadd.f32 %v2510, 0.5
        %v2575 = vadd.f32 %v2511, 0.5
        %v2576 = vadd.f32 %v2512, 0.5
        %v2577 = vadd.f32 %v2513, 0.5
        %v2578 = vmul.f32 %v2514, %v2258
        %v2579 = vmul.f32 %v2515, %v2259
        %v2580 = vmul.f32 %v2516, %v2260
        %v2581 = vmul.f32 %v2517, %v2261
        %v2582 = vmul.f32 %v2518, %v2262
        %v2583 = vmul.f32 %v2519, %v2263
        %v2584 = vmul.f32 %v2520, %v2264
        %v2585 = vmul.f32 %v2521, %v2265
        %v2586 = vmul.f32 %v2522, %v2266
        %v2587 = vmul.f32 %v2523, %v2267
        %v2588 = vmul.f32 %v2524, %v2268
        %v2589 = vmul.f32 %v2525, %v2269
        %v2590 = vmul.f32 %v2526, %v2270
        %v2591 = vmul.f32 %v2527, %v2271
        %v2592 = vmul.f32 %v2528, %v2272
        %v2593 = vmul.f32 %v2529, %v2273
        %v2594 = vmul.f32 %v2530, %v2274
        %v2595 = vmul.f32 %v2531, %v2275
        %v2596 = vmul.f32 %v2532, %v2276
        %v2597 = vmul.f32 %v2533, %v2277
        %v2598 = vmul.f32 %v2534, %v2278
        %v2599 = vmul.f32 %v2535, %v2279
        %v2600 = vmul.f32 %v2536, %v2280
        %v2601 = vmul.f32 %v2537, %v2281
        %v2602 = vmul.f32 %v2538, %v2282
        %v2603 = vmul.f32 %v2539, %v2283
        %v2604 = vmul.f32 %v2540, %v2284
        %v2605 = vmul.f32 %v2541, %v2285
        %v2606 = vmul.f32 %v2542, %v2286
        %v2607 = vmul.f32 %v2543, %v2287
        %v2608 = vmul.f32 %v2544, %v2288
        %v2609 = vmul.f32 %v2545, %v2289
        %v2610 = vmul.f32 %v2546, %v2290
        %v2611 = vmul.f32 %v2547, %v2291
        %v2612 = vmul.f32 %v2548, %v2292
        %v2613 = vmul.f32 %v2549, %v2293
        %v2614 = vmul.f32 %v2550, %v2294
        %v2615 = vmul.f32 %v2551, %v2295
        %v2616 = vmul.f32 %v2552, %v2296
        %v2617 = vmul.f32 %v2553, %v2297
        %v2618 = vmul.f32 %v2554, %v2298
        %v2619 = vmul.f32 %v2555, %v2299
        %v2620 = vmul.f32 %v2556, %v2300
        %v2621 = vmul.f32 %v2557, %v2301
        %v2622 = vmul.f32 %v2558, %v2302
        %v2623 = vmul.f32 %v2559, %v2303
        %v2624 = vmul.f32 %v2560, %v2304
        %v2625 = vmul.f32 %v2561, %v2305
        %v2626 = vmul.f32 %v2562, %v2306
        %v2627 = vmul.f32 %v2563, %v2307
        %v2628 = vmul.f32 %v2564, %v2308
        %v2629 = vmul.f32 %v2565, %v2309
        %v2630 = vmul.f32 %v2566, %v2310
        %v2631 = vmul.f32 %v2567, %v2311
        %v2632 = vmul.f32 %v2568, %v2312
        %v2633 = vmul.f32 %v2569, %v2313
        %v2634 = vmul.f32 %v2570, %v2314
        %v2635 = vmul.f32 %v2571, %v2315
        %v2636 = vmul.f32 %v2572, %v2316
        %v2637 = vmul.f32 %v2573, %v2317
        %v2638 = vmul.f32 %v2574, %v2318
        %v2639 = vmul.f32 %v2575, %v2319
        %v2640 = vmul.f32 %v2576, %v2320
        %v2641 = vmul.f32 %v2577, %v2321
        %v2642 = vadd.f32 %v2578, %v2579
        %v2643 = vadd.f32 %v2642, %v2580
        %v2644 = vadd.f32 %v2643, %v2581
        %v2645 = vadd.f32 %v2644, %v2582
        %v2646 = vadd.f32 %v2645, %v2583
        %v2647 = vadd.f32 %v2646, %v2584
        %v2648 = vadd.f32 %v2647, %v2585
        %v2649 = vadd.f32 %v2648, %v2586
        %v2650 = vadd.f32 %v2649, %v2587
        %v2651 = vadd.f32 %v2650, %v2588
        %v2652 = vadd.f32 %v2651, %v2589
        %v2653 = vadd.f32 %v2652, %v2590
        %v2654 = vadd.f32 %v2653, %v2591
        %v2655 = vadd.f32 %v2654, %v2592
        %v2656 = vadd.f32 %v2655, %v2593
        %v2657 = vadd.f32 %v2656, %v2594
        %v2658 = vadd.f32 %v2657, %v2595
        %v2659 = vadd.f32 %v2658, %v2596
        %v2660 = vadd.f32 %v2659, %v2597
        %v2661 = vadd.f32 %v2660, %v2598
        %v2662 = vadd.f32 %v2661, %v2599
        %v2663 = vadd.f32 %v2662, %v2600
        %v2664 = vadd.f32 %v2663, %v2601
        %v2665 = vadd.f32 %v2664, %v2602
        %v2666 = vadd.f32 %v2665, %v2603
        %v2667 = vadd.f32 %v2666, %v2604
        %v2668 = vadd.f32 %v2667, %v2605
        %v2669 = vadd.f32 %v2668, %v2606
        %v2670 = vadd.f32 %v2669, %v2607
        %v2671 = vadd.f32 %v2670, %v2608
        %v2672 = vadd.f32 %v2671, %v2609
        %v2673 = vadd.f32 %v2672, %v2610
        %v2674 = vadd.f32 %v2673, %v2611
        %v2675 = vadd.f32 %v2674, %v2612
        %v2676 = vadd.f32 %v2675, %v2613
        %v2677 = vadd.f32 %v2676, %v2614
        %v2678 = vadd.f32 %v2677, %v2615
        %v2679 = vadd.f32 %v2678, %v2616
        %v2680 = vadd.f32 %v2679, %v2617
        %v2681 = vadd.f32 %v2680, %v2618
        %v2682 = vadd.f32 %v2681, %v2619
        %v2683 = vadd.f32 %v2682, %v2620
        %v2684 = vadd.f32 %v2683, %v2621
        %v2685 = vadd.f32 %v2684, %v2622
        %v2686 = vadd.f32 %v2685, %v2623
        %v2687 = vadd.f32 %v2686, %v2624
        %v2688 = vadd.f32 %v2687, %v2625
        %v2689 = vadd.f32 %v2688, %v2626
        %v2690 = vadd.f32 %v2689, %v2627
        %v2691 = vadd.f32 %v2690, %v2628
        %v2692 = vadd.f32 %v2691, %v2629
        %v2693 = vadd.f32 %v2692, %v2630
        %v2694 = vadd.f32 %v2693, %v2631
        %v2695 = vadd.f32 %v2694, %v2632
        %v2696 = vadd.f32 %v2695, %v2633
        %v2697 = vadd.f32 %v2696, %v2634
        %v2698 = vadd.f32 %v2697, %v2635
        %v2699 = vadd.f32 %v2698, %v2636
        %v2700 = vadd.f32 %v2699, %v2637
        %v2701 = vadd.f32 %v2700, %v2638
        %v2702 = vadd.f32 %v2701, %v2639
        %v2703 = vadd.f32 %v2702, %v2640
        %v2704 = vadd.f32 %v2703, %v2641
        %v2705 = vadd.f32 %v2063, %v2704
        %v2706 = vadd.f32 %v2514, %v2258
        %v2707 = vadd.f32 %v2515, %v2259
        %v2708 = vadd.f32 %v2516, %v2260
        %v2709 = vadd.f32 %v2517, %v2261
        %v2710 = vadd.f32 %v2518, %v2262
        %v2711 = vadd.f32 %v2519, %v2263
        %v2712 = vadd.f32 %v2520, %v2264
        %v2713 = vadd.f32 %v2521, %v2265
        %v2714 = vadd.f32 %v2522, %v2266
        %v2715 = vadd.f32 %v2523, %v2267
        %v2716 = vadd.f32 %v2524, %v2268
        %v2717 = vadd.f32 %v2525, %v2269
        %v2718 = vadd.f32 %v2526, %v2270
        %v2719 = vadd.f32 %v2527, %v2271
        %v2720 = vadd.f32 %v2528, %v2272
        %v2721 = vadd.f32 %v2529, %v2273
        %v2722 = vadd.f32 %v2530, %v2274
        %v2723 = vadd.f32 %v2531, %v2275
        %v2724 = vadd.f32 %v2532, %v2276
        %v2725 = vadd.f32 %v2533, %v2277
        %v2726 = vadd.f32 %v2534, %v2278
        %v2727 = vadd.f32 %v2535, %v2279
        %v2728 = vadd.f32 %v2536, %v2280
        %v2729 = vadd.f32 %v2537, %v2281
        %v2730 = vadd.f32 %v2538, %v2282
        %v2731 = vadd.f32 %v2539, %v2283
        %v2732 = vadd.f32 %v2540, %v2284
        %v2733 = vadd.f32 %v2541, %v2285
        %v2734 = vadd.f32 %v2542, %v2286
        %v2735 = vadd.f32 %v2543, %v2287
        %v2736 = vadd.f32 %v2544, %v2288
        %v2737 = vadd.f32 %v2545, %v2289
        %v2738 = vadd.f32 %v2546, %v2290
        %v2739 = vadd.f32 %v2547, %v2291
        %v2740 = vadd.f32 %v2548, %v2292
        %v2741 = vadd.f32 %v2549, %v2293
        %v2742 = vadd.f32 %v2550, %v2294
        %v2743 = vadd.f32 %v2551, %v2295
        %v2744 = vadd.f32 %v2552, %v2296
        %v2745 = vadd.f32 %v2553, %v2297
        %v2746 = vadd.f32 %v2554, %v2298
        %v2747 = vadd.f32 %v2555, %v2299
        %v2748 = vadd.f32 %v2556, %v2300
        %v2749 = vadd.f32 %v2557, %v2301
        %v2750 = vadd.f32 %v2558, %v2302
        %v2751 = vadd.f32 %v2559, %v2303
        %v2752 = vadd.f32 %v2560, %v2304
        %v2753 = vadd.f32 %v2561, %v2305
        %v2754 = vadd.f32 %v2562, %v2306
        %v2755 = vadd.f32 %v2563, %v2307
        %v2756 = vadd.f32 %v2564, %v2308
        %v2757 = vadd.f32 %v2565, %v2309
        %v2758 = vadd.f32 %v2566, %v2310
        %v2759 = vadd.f32 %v2567, %v2311
        %v2760 = vadd.f32 %v2568, %v2312
        %v2761 = vadd.f32 %v2569, %v2313
        %v2762 = vadd.f32 %v2570, %v2314
        %v2763 = vadd.f32 %v2571, %v2315
        %v2764 = vadd.f32 %v2572, %v2316
        %v2765 = vadd.f32 %v2573, %v2317
        %v2766 = vadd.f32 %v2574, %v2318
        %v2767 = vadd.f32 %v2575, %v2319
        %v2768 = vadd.f32 %v2576, %v2320
        %v2769 = vadd.f32 %v2577, %v2321
        %v2770 = vadd.f32 %v2706, %v2707
        %v2771 = vadd.f32 %v2770, %v2708
        %v2772 = vadd.f32 %v2771, %v2709
        %v2773 = vadd.f32 %v2772, %v2710
        %v2774 = vadd.f32 %v2773, %v2711
        %v2775 = vadd.f32 %v2774, %v2712
        %v2776 = vadd.f32 %v2775, %v2713
        %v2777 = vadd.f32 %v2776, %v2714
        %v2778 = vadd.f32 %v2777, %v2715
        %v2779 = vadd.f32 %v2778, %v2716
        %v2780 = vadd.f32 %v2779, %v2717
        %v2781 = vadd.f32 %v2780, %v2718
        %v2782 = vadd.f32 %v2781, %v2719
        %v2783 = vadd.f32 %v2782, %v2720
        %v2784 = vadd.f32 %v2783, %v2721
        %v2785 = vadd.f32 %v2784, %v2722
        %v2786 = vadd.f32 %v2785, %v2723
        %v2787 = vadd.f32 %v2786, %v2724
        %v2788 = vadd.f32 %v2787, %v2725
        %v2789 = vadd.f32 %v2788, %v2726
        %v2790 = vadd.f32 %v2789, %v2727
        %v2791 = vadd.f32 %v2790, %v2728
        %v2792 = vadd.f32 %v2791, %v2729
        %v2793 = vadd.f32 %v2792, %v2730
        %v2794 = vadd.f32 %v2793, %v2731
        %v2795 = vadd.f32 %v2794, %v2732
        %v2796 = vadd.f32 %v2795, %v2733
        %v2797 = vadd.f32 %v2796, %v2734
        %v2798 = vadd.f32 %v2797, %v2735
        %v2799 = vadd.f32 %v2798, %v2736
        %v2800 = vadd.f32 %v2799, %v2737
        %v2801 = vadd.f32 %v2800, %v2738
        %v2802 = vadd.f32 %v2801, %v2739
        %v2803 = vadd.f32 %v2802, %v2740
        %v2804 = vadd.f32 %v2803, %v2741
        %v2805 = vadd.f32 %v2804, %v2742
        %v2806 = vadd.f32 %v2805, %v2743
        %v2807 = vadd.f32 %v2806, %v2744
        %v2808 = vadd.f32 %v2807, %v2745
        %v2809 = vadd.f32 %v2808, %v2746
        %v2810 = vadd.f32 %v2809, %v2747
        %v2811 = vadd.f32 %v2810, %v2748
        %v2812 = vadd.f32 %v2811, %v2749
        %v2813 = vadd.f32 %v2812, %v2750
        %v2814 = vadd.f32 %v2813, %v2751
        %v2815 = vadd.f32 %v2814, %v2752
        %v2816 = vadd.f32 %v2815, %v2753
        %v2817 = vadd.f32 %v2816, %v2754
        %v2818 = vadd.f32 %v2817, %v2755
        %v2819 = vadd.f32 %v2818, %v2756
        %v2820 = vadd.f32 %v2819, %v2757
        %v2821 = vadd.f32 %v2820, %v2758
        %v2822 = vadd.f32 %v2821, %v2759
        %v2823 = vadd.f32 %v2822, %v2760
        %v2824 = vadd.f32 %v2823, %v2761
        %v2825 = vadd.f32 %v2824, %v2762
        %v2826 = vadd.f32 %v2825, %v2763
        %v2827 = vadd.f32 %v2826, %v2764
        %v2828 = vadd.f32 %v2827, %v2765
        %v2829 = vadd.f32 %v2828, %v2766
        %v2830 = vadd.f32 %v2829, %v2767
        %v2831 = vadd.f32 %v2830, %v2768
        %v2832 = vadd.f32 %v2831, %v2769
        %v2833 = vadd.f32 %v2191, %v2832
        %s2834 = scalar_lea.vmem %s216, 2048 [#allocation2]
        %v2835 = vld [vmem:[%s2834] sm:$0xff]
        %v2836 = vld [vmem:[%s2834 + $0x8] sm:$0xff]
        %v2837 = vld [vmem:[%s2834 + $0x10] sm:$0xff]
        %v2838 = vld [vmem:[%s2834 + $0x18] sm:$0xff]
        %v2839 = vld [vmem:[%s2834 + $0x20] sm:$0xff]
        %v2840 = vld [vmem:[%s2834 + $0x28] sm:$0xff]
        %v2841 = vld [vmem:[%s2834 + $0x30] sm:$0xff]
        %v2842 = vld [vmem:[%s2834 + $0x38] sm:$0xff]
        %v2843 = vld [vmem:[%s2834 + $0x40] sm:$0xff]
        %v2844 = vld [vmem:[%s2834 + $0x48] sm:$0xff]
        %v2845 = vld [vmem:[%s2834 + $0x50] sm:$0xff]
        %v2846 = vld [vmem:[%s2834 + $0x58] sm:$0xff]
        %v2847 = vld [vmem:[%s2834 + $0x60] sm:$0xff]
        %v2848 = vld [vmem:[%s2834 + $0x68] sm:$0xff]
        %v2849 = vld [vmem:[%s2834 + $0x70] sm:$0xff]
        %v2850 = vld [vmem:[%s2834 + $0x78] sm:$0xff]
        %v2851 = vld [vmem:[%s2834 + $0x80] sm:$0xff]
        %v2852 = vld [vmem:[%s2834 + $0x88] sm:$0xff]
        %v2853 = vld [vmem:[%s2834 + $0x90] sm:$0xff]
        %v2854 = vld [vmem:[%s2834 + $0x98] sm:$0xff]
        %v2855 = vld [vmem:[%s2834 + $0xa0] sm:$0xff]
        %v2856 = vld [vmem:[%s2834 + $0xa8] sm:$0xff]
        %v2857 = vld [vmem:[%s2834 + $0xb0] sm:$0xff]
        %v2858 = vld [vmem:[%s2834 + $0xb8] sm:$0xff]
        %v2859 = vld [vmem:[%s2834 + $0xc0] sm:$0xff]
        %v2860 = vld [vmem:[%s2834 + $0xc8] sm:$0xff]
        %v2861 = vld [vmem:[%s2834 + $0xd0] sm:$0xff]
        %v2862 = vld [vmem:[%s2834 + $0xd8] sm:$0xff]
        %v2863 = vld [vmem:[%s2834 + $0xe0] sm:$0xff]
        %v2864 = vld [vmem:[%s2834 + $0xe8] sm:$0xff]
        %v2865 = vld [vmem:[%s2834 + $0xf0] sm:$0xff]
        %v2866 = vld [vmem:[%s2834 + $0xf8] sm:$0xff]
        %v2867 = vld [vmem:[%s2834 + $0x100] sm:$0xff]
        %v2868 = vld [vmem:[%s2834 + $0x108] sm:$0xff]
        %v2869 = vld [vmem:[%s2834 + $0x110] sm:$0xff]
        %v2870 = vld [vmem:[%s2834 + $0x118] sm:$0xff]
        %v2871 = vld [vmem:[%s2834 + $0x120] sm:$0xff]
        %v2872 = vld [vmem:[%s2834 + $0x128] sm:$0xff]
        %v2873 = vld [vmem:[%s2834 + $0x130] sm:$0xff]
        %v2874 = vld [vmem:[%s2834 + $0x138] sm:$0xff]
        %v2875 = vld [vmem:[%s2834 + $0x140] sm:$0xff]
        %v2876 = vld [vmem:[%s2834 + $0x148] sm:$0xff]
        %v2877 = vld [vmem:[%s2834 + $0x150] sm:$0xff]
        %v2878 = vld [vmem:[%s2834 + $0x158] sm:$0xff]
        %v2879 = vld [vmem:[%s2834 + $0x160] sm:$0xff]
        %v2880 = vld [vmem:[%s2834 + $0x168] sm:$0xff]
        %v2881 = vld [vmem:[%s2834 + $0x170] sm:$0xff]
        %v2882 = vld [vmem:[%s2834 + $0x178] sm:$0xff]
        %v2883 = vld [vmem:[%s2834 + $0x180] sm:$0xff]
        %v2884 = vld [vmem:[%s2834 + $0x188] sm:$0xff]
        %v2885 = vld [vmem:[%s2834 + $0x190] sm:$0xff]
        %v2886 = vld [vmem:[%s2834 + $0x198] sm:$0xff]
        %v2887 = vld [vmem:[%s2834 + $0x1a0] sm:$0xff]
        %v2888 = vld [vmem:[%s2834 + $0x1a8] sm:$0xff]
        %v2889 = vld [vmem:[%s2834 + $0x1b0] sm:$0xff]
        %v2890 = vld [vmem:[%s2834 + $0x1b8] sm:$0xff]
        %v2891 = vld [vmem:[%s2834 + $0x1c0] sm:$0xff]
        %v2892 = vld [vmem:[%s2834 + $0x1c8] sm:$0xff]
        %v2893 = vld [vmem:[%s2834 + $0x1d0] sm:$0xff]
        %v2894 = vld [vmem:[%s2834 + $0x1d8] sm:$0xff]
        %v2895 = vld [vmem:[%s2834 + $0x1e0] sm:$0xff]
        %v2896 = vld [vmem:[%s2834 + $0x1e8] sm:$0xff]
        %v2897 = vld [vmem:[%s2834 + $0x1f0] sm:$0xff]
        %v2898 = vld [vmem:[%s2834 + $0x1f8] sm:$0xff]
        %s2899 = scalar_lea.vmem %s225, 2048 [#allocation5]
        %v2900 = vld [vmem:[%s2899] sm:$0xff]
        %v2901 = vld [vmem:[%s2899 + $0x8] sm:$0xff]
        %v2902 = vld [vmem:[%s2899 + $0x10] sm:$0xff]
        %v2903 = vld [vmem:[%s2899 + $0x18] sm:$0xff]
        %v2904 = vld [vmem:[%s2899 + $0x20] sm:$0xff]
        %v2905 = vld [vmem:[%s2899 + $0x28] sm:$0xff]
        %v2906 = vld [vmem:[%s2899 + $0x30] sm:$0xff]
        %v2907 = vld [vmem:[%s2899 + $0x38] sm:$0xff]
        %v2908 = vld [vmem:[%s2899 + $0x40] sm:$0xff]
        %v2909 = vld [vmem:[%s2899 + $0x48] sm:$0xff]
        %v2910 = vld [vmem:[%s2899 + $0x50] sm:$0xff]
        %v2911 = vld [vmem:[%s2899 + $0x58] sm:$0xff]
        %v2912 = vld [vmem:[%s2899 + $0x60] sm:$0xff]
        %v2913 = vld [vmem:[%s2899 + $0x68] sm:$0xff]
        %v2914 = vld [vmem:[%s2899 + $0x70] sm:$0xff]
        %v2915 = vld [vmem:[%s2899 + $0x78] sm:$0xff]
        %v2916 = vld [vmem:[%s2899 + $0x80] sm:$0xff]
        %v2917 = vld [vmem:[%s2899 + $0x88] sm:$0xff]
        %v2918 = vld [vmem:[%s2899 + $0x90] sm:$0xff]
        %v2919 = vld [vmem:[%s2899 + $0x98] sm:$0xff]
        %v2920 = vld [vmem:[%s2899 + $0xa0] sm:$0xff]
        %v2921 = vld [vmem:[%s2899 + $0xa8] sm:$0xff]
        %v2922 = vld [vmem:[%s2899 + $0xb0] sm:$0xff]
        %v2923 = vld [vmem:[%s2899 + $0xb8] sm:$0xff]
        %v2924 = vld [vmem:[%s2899 + $0xc0] sm:$0xff]
        %v2925 = vld [vmem:[%s2899 + $0xc8] sm:$0xff]
        %v2926 = vld [vmem:[%s2899 + $0xd0] sm:$0xff]
        %v2927 = vld [vmem:[%s2899 + $0xd8] sm:$0xff]
        %v2928 = vld [vmem:[%s2899 + $0xe0] sm:$0xff]
        %v2929 = vld [vmem:[%s2899 + $0xe8] sm:$0xff]
        %v2930 = vld [vmem:[%s2899 + $0xf0] sm:$0xff]
        %v2931 = vld [vmem:[%s2899 + $0xf8] sm:$0xff]
        %v2932 = vld [vmem:[%s2899 + $0x100] sm:$0xff]
        %v2933 = vld [vmem:[%s2899 + $0x108] sm:$0xff]
        %v2934 = vld [vmem:[%s2899 + $0x110] sm:$0xff]
        %v2935 = vld [vmem:[%s2899 + $0x118] sm:$0xff]
        %v2936 = vld [vmem:[%s2899 + $0x120] sm:$0xff]
        %v2937 = vld [vmem:[%s2899 + $0x128] sm:$0xff]
        %v2938 = vld [vmem:[%s2899 + $0x130] sm:$0xff]
        %v2939 = vld [vmem:[%s2899 + $0x138] sm:$0xff]
        %v2940 = vld [vmem:[%s2899 + $0x140] sm:$0xff]
        %v2941 = vld [vmem:[%s2899 + $0x148] sm:$0xff]
        %v2942 = vld [vmem:[%s2899 + $0x150] sm:$0xff]
        %v2943 = vld [vmem:[%s2899 + $0x158] sm:$0xff]
        %v2944 = vld [vmem:[%s2899 + $0x160] sm:$0xff]
        %v2945 = vld [vmem:[%s2899 + $0x168] sm:$0xff]
        %v2946 = vld [vmem:[%s2899 + $0x170] sm:$0xff]
        %v2947 = vld [vmem:[%s2899 + $0x178] sm:$0xff]
        %v2948 = vld [vmem:[%s2899 + $0x180] sm:$0xff]
        %v2949 = vld [vmem:[%s2899 + $0x188] sm:$0xff]
        %v2950 = vld [vmem:[%s2899 + $0x190] sm:$0xff]
        %v2951 = vld [vmem:[%s2899 + $0x198] sm:$0xff]
        %v2952 = vld [vmem:[%s2899 + $0x1a0] sm:$0xff]
        %v2953 = vld [vmem:[%s2899 + $0x1a8] sm:$0xff]
        %v2954 = vld [vmem:[%s2899 + $0x1b0] sm:$0xff]
        %v2955 = vld [vmem:[%s2899 + $0x1b8] sm:$0xff]
        %v2956 = vld [vmem:[%s2899 + $0x1c0] sm:$0xff]
        %v2957 = vld [vmem:[%s2899 + $0x1c8] sm:$0xff]
        %v2958 = vld [vmem:[%s2899 + $0x1d0] sm:$0xff]
        %v2959 = vld [vmem:[%s2899 + $0x1d8] sm:$0xff]
        %v2960 = vld [vmem:[%s2899 + $0x1e0] sm:$0xff]
        %v2961 = vld [vmem:[%s2899 + $0x1e8] sm:$0xff]
        %v2962 = vld [vmem:[%s2899 + $0x1f0] sm:$0xff]
        %v2963 = vld [vmem:[%s2899 + $0x1f8] sm:$0xff]
        %v2964 = vmul.f32 %v2835, 0.5
        %v2965 = vmul.f32 %v2836, 0.5
        %v2966 = vmul.f32 %v2837, 0.5
        %v2967 = vmul.f32 %v2838, 0.5
        %v2968 = vmul.f32 %v2839, 0.5
        %v2969 = vmul.f32 %v2840, 0.5
        %v2970 = vmul.f32 %v2841, 0.5
        %v2971 = vmul.f32 %v2842, 0.5
        %v2972 = vmul.f32 %v2843, 0.5
        %v2973 = vmul.f32 %v2844, 0.5
        %v2974 = vmul.f32 %v2845, 0.5
        %v2975 = vmul.f32 %v2846, 0.5
        %v2976 = vmul.f32 %v2847, 0.5
        %v2977 = vmul.f32 %v2848, 0.5
        %v2978 = vmul.f32 %v2849, 0.5
        %v2979 = vmul.f32 %v2850, 0.5
        %v2980 = vmul.f32 %v2851, 0.5
        %v2981 = vmul.f32 %v2852, 0.5
        %v2982 = vmul.f32 %v2853, 0.5
        %v2983 = vmul.f32 %v2854, 0.5
        %v2984 = vmul.f32 %v2855, 0.5
        %v2985 = vmul.f32 %v2856, 0.5
        %v2986 = vmul.f32 %v2857, 0.5
        %v2987 = vmul.f32 %v2858, 0.5
        %v2988 = vmul.f32 %v2859, 0.5
        %v2989 = vmul.f32 %v2860, 0.5
        %v2990 = vmul.f32 %v2861, 0.5
        %v2991 = vmul.f32 %v2862, 0.5
        %v2992 = vmul.f32 %v2863, 0.5
        %v2993 = vmul.f32 %v2864, 0.5
        %v2994 = vmul.f32 %v2865, 0.5
        %v2995 = vmul.f32 %v2866, 0.5
        %v2996 = vmul.f32 %v2867, 0.5
        %v2997 = vmul.f32 %v2868, 0.5
        %v2998 = vmul.f32 %v2869, 0.5
        %v2999 = vmul.f32 %v2870, 0.5
        %v3000 = vmul.f32 %v2871, 0.5
        %v3001 = vmul.f32 %v2872, 0.5
        %v3002 = vmul.f32 %v2873, 0.5
        %v3003 = vmul.f32 %v2874, 0.5
        %v3004 = vmul.f32 %v2875, 0.5
        %v3005 = vmul.f32 %v2876, 0.5
        %v3006 = vmul.f32 %v2877, 0.5
        %v3007 = vmul.f32 %v2878, 0.5
        %v3008 = vmul.f32 %v2879, 0.5
        %v3009 = vmul.f32 %v2880, 0.5
        %v3010 = vmul.f32 %v2881, 0.5
        %v3011 = vmul.f32 %v2882, 0.5
        %v3012 = vmul.f32 %v2883, 0.5
        %v3013 = vmul.f32 %v2884, 0.5
        %v3014 = vmul.f32 %v2885, 0.5
        %v3015 = vmul.f32 %v2886, 0.5
        %v3016 = vmul.f32 %v2887, 0.5
        %v3017 = vmul.f32 %v2888, 0.5
        %v3018 = vmul.f32 %v2889, 0.5
        %v3019 = vmul.f32 %v2890, 0.5
        %v3020 = vmul.f32 %v2891, 0.5
        %v3021 = vmul.f32 %v2892, 0.5
        %v3022 = vmul.f32 %v2893, 0.5
        %v3023 = vmul.f32 %v2894, 0.5
        %v3024 = vmul.f32 %v2895, 0.5
        %v3025 = vmul.f32 %v2896, 0.5
        %v3026 = vmul.f32 %v2897, 0.5
        %v3027 = vmul.f32 %v2898, 0.5
        %v3028 = vtanh.pop %v2964
        %v3029 = vtanh.pop %v2965
        %v3030 = vtanh.pop %v2966
        %v3031 = vtanh.pop %v2967
        %v3032 = vtanh.pop %v2968
        %v3033 = vtanh.pop %v2969
        %v3034 = vtanh.pop %v2970
        %v3035 = vtanh.pop %v2971
        %v3036 = vtanh.pop %v2972
        %v3037 = vtanh.pop %v2973
        %v3038 = vtanh.pop %v2974
        %v3039 = vtanh.pop %v2975
        %v3040 = vtanh.pop %v2976
        %v3041 = vtanh.pop %v2977
        %v3042 = vtanh.pop %v2978
        %v3043 = vtanh.pop %v2979
        %v3044 = vtanh.pop %v2980
        %v3045 = vtanh.pop %v2981
        %v3046 = vtanh.pop %v2982
        %v3047 = vtanh.pop %v2983
        %v3048 = vtanh.pop %v2984
        %v3049 = vtanh.pop %v2985
        %v3050 = vtanh.pop %v2986
        %v3051 = vtanh.pop %v2987
        %v3052 = vtanh.pop %v2988
        %v3053 = vtanh.pop %v2989
        %v3054 = vtanh.pop %v2990
        %v3055 = vtanh.pop %v2991
        %v3056 = vtanh.pop %v2992
        %v3057 = vtanh.pop %v2993
        %v3058 = vtanh.pop %v2994
        %v3059 = vtanh.pop %v2995
        %v3060 = vtanh.pop %v2996
        %v3061 = vtanh.pop %v2997
        %v3062 = vtanh.pop %v2998
        %v3063 = vtanh.pop %v2999
        %v3064 = vtanh.pop %v3000
        %v3065 = vtanh.pop %v3001
        %v3066 = vtanh.pop %v3002
        %v3067 = vtanh.pop %v3003
        %v3068 = vtanh.pop %v3004
        %v3069 = vtanh.pop %v3005
        %v3070 = vtanh.pop %v3006
        %v3071 = vtanh.pop %v3007
        %v3072 = vtanh.pop %v3008
        %v3073 = vtanh.pop %v3009
        %v3074 = vtanh.pop %v3010
        %v3075 = vtanh.pop %v3011
        %v3076 = vtanh.pop %v3012
        %v3077 = vtanh.pop %v3013
        %v3078 = vtanh.pop %v3014
        %v3079 = vtanh.pop %v3015
        %v3080 = vtanh.pop %v3016
        %v3081 = vtanh.pop %v3017
        %v3082 = vtanh.pop %v3018
        %v3083 = vtanh.pop %v3019
        %v3084 = vtanh.pop %v3020
        %v3085 = vtanh.pop %v3021
        %v3086 = vtanh.pop %v3022
        %v3087 = vtanh.pop %v3023
        %v3088 = vtanh.pop %v3024
        %v3089 = vtanh.pop %v3025
        %v3090 = vtanh.pop %v3026
        %v3091 = vtanh.pop %v3027
        %v3092 = vmul.f32 %v3028, 0.5
        %v3093 = vmul.f32 %v3029, 0.5
        %v3094 = vmul.f32 %v3030, 0.5
        %v3095 = vmul.f32 %v3031, 0.5
        %v3096 = vmul.f32 %v3032, 0.5
        %v3097 = vmul.f32 %v3033, 0.5
        %v3098 = vmul.f32 %v3034, 0.5
        %v3099 = vmul.f32 %v3035, 0.5
        %v3100 = vmul.f32 %v3036, 0.5
        %v3101 = vmul.f32 %v3037, 0.5
        %v3102 = vmul.f32 %v3038, 0.5
        %v3103 = vmul.f32 %v3039, 0.5
        %v3104 = vmul.f32 %v3040, 0.5
        %v3105 = vmul.f32 %v3041, 0.5
        %v3106 = vmul.f32 %v3042, 0.5
        %v3107 = vmul.f32 %v3043, 0.5
        %v3108 = vmul.f32 %v3044, 0.5
        %v3109 = vmul.f32 %v3045, 0.5
        %v3110 = vmul.f32 %v3046, 0.5
        %v3111 = vmul.f32 %v3047, 0.5
        %v3112 = vmul.f32 %v3048, 0.5
        %v3113 = vmul.f32 %v3049, 0.5
        %v3114 = vmul.f32 %v3050, 0.5
        %v3115 = vmul.f32 %v3051, 0.5
        %v3116 = vmul.f32 %v3052, 0.5
        %v3117 = vmul.f32 %v3053, 0.5
        %v3118 = vmul.f32 %v3054, 0.5
        %v3119 = vmul.f32 %v3055, 0.5
        %v3120 = vmul.f32 %v3056, 0.5
        %v3121 = vmul.f32 %v3057, 0.5
        %v3122 = vmul.f32 %v3058, 0.5
        %v3123 = vmul.f32 %v3059, 0.5
        %v3124 = vmul.f32 %v3060, 0.5
        %v3125 = vmul.f32 %v3061, 0.5
        %v3126 = vmul.f32 %v3062, 0.5
        %v3127 = vmul.f32 %v3063, 0.5
        %v3128 = vmul.f32 %v3064, 0.5
        %v3129 = vmul.f32 %v3065, 0.5
        %v3130 = vmul.f32 %v3066, 0.5
        %v3131 = vmul.f32 %v3067, 0.5
        %v3132 = vmul.f32 %v3068, 0.5
        %v3133 = vmul.f32 %v3069, 0.5
        %v3134 = vmul.f32 %v3070, 0.5
        %v3135 = vmul.f32 %v3071, 0.5
        %v3136 = vmul.f32 %v3072, 0.5
        %v3137 = vmul.f32 %v3073, 0.5
        %v3138 = vmul.f32 %v3074, 0.5
        %v3139 = vmul.f32 %v3075, 0.5
        %v3140 = vmul.f32 %v3076, 0.5
        %v3141 = vmul.f32 %v3077, 0.5
        %v3142 = vmul.f32 %v3078, 0.5
        %v3143 = vmul.f32 %v3079, 0.5
        %v3144 = vmul.f32 %v3080, 0.5
        %v3145 = vmul.f32 %v3081, 0.5
        %v3146 = vmul.f32 %v3082, 0.5
        %v3147 = vmul.f32 %v3083, 0.5
        %v3148 = vmul.f32 %v3084, 0.5
        %v3149 = vmul.f32 %v3085, 0.5
        %v3150 = vmul.f32 %v3086, 0.5
        %v3151 = vmul.f32 %v3087, 0.5
        %v3152 = vmul.f32 %v3088, 0.5
        %v3153 = vmul.f32 %v3089, 0.5
        %v3154 = vmul.f32 %v3090, 0.5
        %v3155 = vmul.f32 %v3091, 0.5
        %v3156 = vadd.f32 %v3092, 0.5
        %v3157 = vadd.f32 %v3093, 0.5
        %v3158 = vadd.f32 %v3094, 0.5
        %v3159 = vadd.f32 %v3095, 0.5
        %v3160 = vadd.f32 %v3096, 0.5
        %v3161 = vadd.f32 %v3097, 0.5
        %v3162 = vadd.f32 %v3098, 0.5
        %v3163 = vadd.f32 %v3099, 0.5
        %v3164 = vadd.f32 %v3100, 0.5
        %v3165 = vadd.f32 %v3101, 0.5
        %v3166 = vadd.f32 %v3102, 0.5
        %v3167 = vadd.f32 %v3103, 0.5
        %v3168 = vadd.f32 %v3104, 0.5
        %v3169 = vadd.f32 %v3105, 0.5
        %v3170 = vadd.f32 %v3106, 0.5
        %v3171 = vadd.f32 %v3107, 0.5
        %v3172 = vadd.f32 %v3108, 0.5
        %v3173 = vadd.f32 %v3109, 0.5
        %v3174 = vadd.f32 %v3110, 0.5
        %v3175 = vadd.f32 %v3111, 0.5
        %v3176 = vadd.f32 %v3112, 0.5
        %v3177 = vadd.f32 %v3113, 0.5
        %v3178 = vadd.f32 %v3114, 0.5
        %v3179 = vadd.f32 %v3115, 0.5
        %v3180 = vadd.f32 %v3116, 0.5
        %v3181 = vadd.f32 %v3117, 0.5
        %v3182 = vadd.f32 %v3118, 0.5
        %v3183 = vadd.f32 %v3119, 0.5
        %v3184 = vadd.f32 %v3120, 0.5
        %v3185 = vadd.f32 %v3121, 0.5
        %v3186 = vadd.f32 %v3122, 0.5
        %v3187 = vadd.f32 %v3123, 0.5
        %v3188 = vadd.f32 %v3124, 0.5
        %v3189 = vadd.f32 %v3125, 0.5
        %v3190 = vadd.f32 %v3126, 0.5
        %v3191 = vadd.f32 %v3127, 0.5
        %v3192 = vadd.f32 %v3128, 0.5
        %v3193 = vadd.f32 %v3129, 0.5
        %v3194 = vadd.f32 %v3130, 0.5
        %v3195 = vadd.f32 %v3131, 0.5
        %v3196 = vadd.f32 %v3132, 0.5
        %v3197 = vadd.f32 %v3133, 0.5
        %v3198 = vadd.f32 %v3134, 0.5
        %v3199 = vadd.f32 %v3135, 0.5
        %v3200 = vadd.f32 %v3136, 0.5
        %v3201 = vadd.f32 %v3137, 0.5
        %v3202 = vadd.f32 %v3138, 0.5
        %v3203 = vadd.f32 %v3139, 0.5
        %v3204 = vadd.f32 %v3140, 0.5
        %v3205 = vadd.f32 %v3141, 0.5
        %v3206 = vadd.f32 %v3142, 0.5
        %v3207 = vadd.f32 %v3143, 0.5
        %v3208 = vadd.f32 %v3144, 0.5
        %v3209 = vadd.f32 %v3145, 0.5
        %v3210 = vadd.f32 %v3146, 0.5
        %v3211 = vadd.f32 %v3147, 0.5
        %v3212 = vadd.f32 %v3148, 0.5
        %v3213 = vadd.f32 %v3149, 0.5
        %v3214 = vadd.f32 %v3150, 0.5
        %v3215 = vadd.f32 %v3151, 0.5
        %v3216 = vadd.f32 %v3152, 0.5
        %v3217 = vadd.f32 %v3153, 0.5
        %v3218 = vadd.f32 %v3154, 0.5
        %v3219 = vadd.f32 %v3155, 0.5
        %v3220 = vmul.f32 %v3156, %v2900
        %v3221 = vmul.f32 %v3157, %v2901
        %v3222 = vmul.f32 %v3158, %v2902
        %v3223 = vmul.f32 %v3159, %v2903
        %v3224 = vmul.f32 %v3160, %v2904
        %v3225 = vmul.f32 %v3161, %v2905
        %v3226 = vmul.f32 %v3162, %v2906
        %v3227 = vmul.f32 %v3163, %v2907
        %v3228 = vmul.f32 %v3164, %v2908
        %v3229 = vmul.f32 %v3165, %v2909
        %v3230 = vmul.f32 %v3166, %v2910
        %v3231 = vmul.f32 %v3167, %v2911
        %v3232 = vmul.f32 %v3168, %v2912
        %v3233 = vmul.f32 %v3169, %v2913
        %v3234 = vmul.f32 %v3170, %v2914
        %v3235 = vmul.f32 %v3171, %v2915
        %v3236 = vmul.f32 %v3172, %v2916
        %v3237 = vmul.f32 %v3173, %v2917
        %v3238 = vmul.f32 %v3174, %v2918
        %v3239 = vmul.f32 %v3175, %v2919
        %v3240 = vmul.f32 %v3176, %v2920
        %v3241 = vmul.f32 %v3177, %v2921
        %v3242 = vmul.f32 %v3178, %v2922
        %v3243 = vmul.f32 %v3179, %v2923
        %v3244 = vmul.f32 %v3180, %v2924
        %v3245 = vmul.f32 %v3181, %v2925
        %v3246 = vmul.f32 %v3182, %v2926
        %v3247 = vmul.f32 %v3183, %v2927
        %v3248 = vmul.f32 %v3184, %v2928
        %v3249 = vmul.f32 %v3185, %v2929
        %v3250 = vmul.f32 %v3186, %v2930
        %v3251 = vmul.f32 %v3187, %v2931
        %v3252 = vmul.f32 %v3188, %v2932
        %v3253 = vmul.f32 %v3189, %v2933
        %v3254 = vmul.f32 %v3190, %v2934
        %v3255 = vmul.f32 %v3191, %v2935
        %v3256 = vmul.f32 %v3192, %v2936
        %v3257 = vmul.f32 %v3193, %v2937
        %v3258 = vmul.f32 %v3194, %v2938
        %v3259 = vmul.f32 %v3195, %v2939
        %v3260 = vmul.f32 %v3196, %v2940
        %v3261 = vmul.f32 %v3197, %v2941
        %v3262 = vmul.f32 %v3198, %v2942
        %v3263 = vmul.f32 %v3199, %v2943
        %v3264 = vmul.f32 %v3200, %v2944
        %v3265 = vmul.f32 %v3201, %v2945
        %v3266 = vmul.f32 %v3202, %v2946
        %v3267 = vmul.f32 %v3203, %v2947
        %v3268 = vmul.f32 %v3204, %v2948
        %v3269 = vmul.f32 %v3205, %v2949
        %v3270 = vmul.f32 %v3206, %v2950
        %v3271 = vmul.f32 %v3207, %v2951
        %v3272 = vmul.f32 %v3208, %v2952
        %v3273 = vmul.f32 %v3209, %v2953
        %v3274 = vmul.f32 %v3210, %v2954
        %v3275 = vmul.f32 %v3211, %v2955
        %v3276 = vmul.f32 %v3212, %v2956
        %v3277 = vmul.f32 %v3213, %v2957
        %v3278 = vmul.f32 %v3214, %v2958
        %v3279 = vmul.f32 %v3215, %v2959
        %v3280 = vmul.f32 %v3216, %v2960
        %v3281 = vmul.f32 %v3217, %v2961
        %v3282 = vmul.f32 %v3218, %v2962
        %v3283 = vmul.f32 %v3219, %v2963
        %v3284 = vadd.f32 %v3220, %v3221
        %v3285 = vadd.f32 %v3284, %v3222
        %v3286 = vadd.f32 %v3285, %v3223
        %v3287 = vadd.f32 %v3286, %v3224
        %v3288 = vadd.f32 %v3287, %v3225
        %v3289 = vadd.f32 %v3288, %v3226
        %v3290 = vadd.f32 %v3289, %v3227
        %v3291 = vadd.f32 %v3290, %v3228
        %v3292 = vadd.f32 %v3291, %v3229
        %v3293 = vadd.f32 %v3292, %v3230
        %v3294 = vadd.f32 %v3293, %v3231
        %v3295 = vadd.f32 %v3294, %v3232
        %v3296 = vadd.f32 %v3295, %v3233
        %v3297 = vadd.f32 %v3296, %v3234
        %v3298 = vadd.f32 %v3297, %v3235
        %v3299 = vadd.f32 %v3298, %v3236
        %v3300 = vadd.f32 %v3299, %v3237
        %v3301 = vadd.f32 %v3300, %v3238
        %v3302 = vadd.f32 %v3301, %v3239
        %v3303 = vadd.f32 %v3302, %v3240
        %v3304 = vadd.f32 %v3303, %v3241
        %v3305 = vadd.f32 %v3304, %v3242
        %v3306 = vadd.f32 %v3305, %v3243
        %v3307 = vadd.f32 %v3306, %v3244
        %v3308 = vadd.f32 %v3307, %v3245
        %v3309 = vadd.f32 %v3308, %v3246
        %v3310 = vadd.f32 %v3309, %v3247
        %v3311 = vadd.f32 %v3310, %v3248
        %v3312 = vadd.f32 %v3311, %v3249
        %v3313 = vadd.f32 %v3312, %v3250
        %v3314 = vadd.f32 %v3313, %v3251
        %v3315 = vadd.f32 %v3314, %v3252
        %v3316 = vadd.f32 %v3315, %v3253
        %v3317 = vadd.f32 %v3316, %v3254
        %v3318 = vadd.f32 %v3317, %v3255
        %v3319 = vadd.f32 %v3318, %v3256
        %v3320 = vadd.f32 %v3319, %v3257
        %v3321 = vadd.f32 %v3320, %v3258
        %v3322 = vadd.f32 %v3321, %v3259
        %v3323 = vadd.f32 %v3322, %v3260
        %v3324 = vadd.f32 %v3323, %v3261
        %v3325 = vadd.f32 %v3324, %v3262
        %v3326 = vadd.f32 %v3325, %v3263
        %v3327 = vadd.f32 %v3326, %v3264
        %v3328 = vadd.f32 %v3327, %v3265
        %v3329 = vadd.f32 %v3328, %v3266
        %v3330 = vadd.f32 %v3329, %v3267
        %v3331 = vadd.f32 %v3330, %v3268
        %v3332 = vadd.f32 %v3331, %v3269
        %v3333 = vadd.f32 %v3332, %v3270
        %v3334 = vadd.f32 %v3333, %v3271
        %v3335 = vadd.f32 %v3334, %v3272
        %v3336 = vadd.f32 %v3335, %v3273
        %v3337 = vadd.f32 %v3336, %v3274
        %v3338 = vadd.f32 %v3337, %v3275
        %v3339 = vadd.f32 %v3338, %v3276
        %v3340 = vadd.f32 %v3339, %v3277
        %v3341 = vadd.f32 %v3340, %v3278
        %v3342 = vadd.f32 %v3341, %v3279
        %v3343 = vadd.f32 %v3342, %v3280
        %v3344 = vadd.f32 %v3343, %v3281
        %v3345 = vadd.f32 %v3344, %v3282
        %v3346 = vadd.f32 %v3345, %v3283
        %v3347 = vadd.f32 %v2705, %v3346
        %v3348 = vadd.f32 %v3156, %v2900
        %v3349 = vadd.f32 %v3157, %v2901
        %v3350 = vadd.f32 %v3158, %v2902
        %v3351 = vadd.f32 %v3159, %v2903
        %v3352 = vadd.f32 %v3160, %v2904
        %v3353 = vadd.f32 %v3161, %v2905
        %v3354 = vadd.f32 %v3162, %v2906
        %v3355 = vadd.f32 %v3163, %v2907
        %v3356 = vadd.f32 %v3164, %v2908
        %v3357 = vadd.f32 %v3165, %v2909
        %v3358 = vadd.f32 %v3166, %v2910
        %v3359 = vadd.f32 %v3167, %v2911
        %v3360 = vadd.f32 %v3168, %v2912
        %v3361 = vadd.f32 %v3169, %v2913
        %v3362 = vadd.f32 %v3170, %v2914
        %v3363 = vadd.f32 %v3171, %v2915
        %v3364 = vadd.f32 %v3172, %v2916
        %v3365 = vadd.f32 %v3173, %v2917
        %v3366 = vadd.f32 %v3174, %v2918
        %v3367 = vadd.f32 %v3175, %v2919
        %v3368 = vadd.f32 %v3176, %v2920
        %v3369 = vadd.f32 %v3177, %v2921
        %v3370 = vadd.f32 %v3178, %v2922
        %v3371 = vadd.f32 %v3179, %v2923
        %v3372 = vadd.f32 %v3180, %v2924
        %v3373 = vadd.f32 %v3181, %v2925
        %v3374 = vadd.f32 %v3182, %v2926
        %v3375 = vadd.f32 %v3183, %v2927
        %v3376 = vadd.f32 %v3184, %v2928
        %v3377 = vadd.f32 %v3185, %v2929
        %v3378 = vadd.f32 %v3186, %v2930
        %v3379 = vadd.f32 %v3187, %v2931
        %v3380 = vadd.f32 %v3188, %v2932
        %v3381 = vadd.f32 %v3189, %v2933
        %v3382 = vadd.f32 %v3190, %v2934
        %v3383 = vadd.f32 %v3191, %v2935
        %v3384 = vadd.f32 %v3192, %v2936
        %v3385 = vadd.f32 %v3193, %v2937
        %v3386 = vadd.f32 %v3194, %v2938
        %v3387 = vadd.f32 %v3195, %v2939
        %v3388 = vadd.f32 %v3196, %v2940
        %v3389 = vadd.f32 %v3197, %v2941
        %v3390 = vadd.f32 %v3198, %v2942
        %v3391 = vadd.f32 %v3199, %v2943
        %v3392 = vadd.f32 %v3200, %v2944
        %v3393 = vadd.f32 %v3201, %v2945
        %v3394 = vadd.f32 %v3202, %v2946
        %v3395 = vadd.f32 %v3203, %v2947
        %v3396 = vadd.f32 %v3204, %v2948
        %v3397 = vadd.f32 %v3205, %v2949
        %v3398 = vadd.f32 %v3206, %v2950
        %v3399 = vadd.f32 %v3207, %v2951
        %v3400 = vadd.f32 %v3208, %v2952
        %v3401 = vadd.f32 %v3209, %v2953
        %v3402 = vadd.f32 %v3210, %v2954
        %v3403 = vadd.f32 %v3211, %v2955
        %v3404 = vadd.f32 %v3212, %v2956
        %v3405 = vadd.f32 %v3213, %v2957
        %v3406 = vadd.f32 %v3214, %v2958
        %v3407 = vadd.f32 %v3215, %v2959
        %v3408 = vadd.f32 %v3216, %v2960
        %v3409 = vadd.f32 %v3217, %v2961
        %v3410 = vadd.f32 %v3218, %v2962
        %v3411 = vadd.f32 %v3219, %v2963
        %v3412 = vadd.f32 %v3348, %v3349
        %v3413 = vadd.f32 %v3412, %v3350
        %v3414 = vadd.f32 %v3413, %v3351
        %v3415 = vadd.f32 %v3414, %v3352
        %v3416 = vadd.f32 %v3415, %v3353
        %v3417 = vadd.f32 %v3416, %v3354
        %v3418 = vadd.f32 %v3417, %v3355
        %v3419 = vadd.f32 %v3418, %v3356
        %v3420 = vadd.f32 %v3419, %v3357
        %v3421 = vadd.f32 %v3420, %v3358
        %v3422 = vadd.f32 %v3421, %v3359
        %v3423 = vadd.f32 %v3422, %v3360
        %v3424 = vadd.f32 %v3423, %v3361
        %v3425 = vadd.f32 %v3424, %v3362
        %v3426 = vadd.f32 %v3425, %v3363
        %v3427 = vadd.f32 %v3426, %v3364
        %v3428 = vadd.f32 %v3427, %v3365
        %v3429 = vadd.f32 %v3428, %v3366
        %v3430 = vadd.f32 %v3429, %v3367
        %v3431 = vadd.f32 %v3430, %v3368
        %v3432 = vadd.f32 %v3431, %v3369
        %v3433 = vadd.f32 %v3432, %v3370
        %v3434 = vadd.f32 %v3433, %v3371
        %v3435 = vadd.f32 %v3434, %v3372
        %v3436 = vadd.f32 %v3435, %v3373
        %v3437 = vadd.f32 %v3436, %v3374
        %v3438 = vadd.f32 %v3437, %v3375
        %v3439 = vadd.f32 %v3438, %v3376
        %v3440 = vadd.f32 %v3439, %v3377
        %v3441 = vadd.f32 %v3440, %v3378
        %v3442 = vadd.f32 %v3441, %v3379
        %v3443 = vadd.f32 %v3442, %v3380
        %v3444 = vadd.f32 %v3443, %v3381
        %v3445 = vadd.f32 %v3444, %v3382
        %v3446 = vadd.f32 %v3445, %v3383
        %v3447 = vadd.f32 %v3446, %v3384
        %v3448 = vadd.f32 %v3447, %v3385
        %v3449 = vadd.f32 %v3448, %v3386
        %v3450 = vadd.f32 %v3449, %v3387
        %v3451 = vadd.f32 %v3450, %v3388
        %v3452 = vadd.f32 %v3451, %v3389
        %v3453 = vadd.f32 %v3452, %v3390
        %v3454 = vadd.f32 %v3453, %v3391
        %v3455 = vadd.f32 %v3454, %v3392
        %v3456 = vadd.f32 %v3455, %v3393
        %v3457 = vadd.f32 %v3456, %v3394
        %v3458 = vadd.f32 %v3457, %v3395
        %v3459 = vadd.f32 %v3458, %v3396
        %v3460 = vadd.f32 %v3459, %v3397
        %v3461 = vadd.f32 %v3460, %v3398
        %v3462 = vadd.f32 %v3461, %v3399
        %v3463 = vadd.f32 %v3462, %v3400
        %v3464 = vadd.f32 %v3463, %v3401
        %v3465 = vadd.f32 %v3464, %v3402
        %v3466 = vadd.f32 %v3465, %v3403
        %v3467 = vadd.f32 %v3466, %v3404
        %v3468 = vadd.f32 %v3467, %v3405
        %v3469 = vadd.f32 %v3468, %v3406
        %v3470 = vadd.f32 %v3469, %v3407
        %v3471 = vadd.f32 %v3470, %v3408
        %v3472 = vadd.f32 %v3471, %v3409
        %v3473 = vadd.f32 %v3472, %v3410
        %v3474 = vadd.f32 %v3473, %v3411
        %v3475 = vadd.f32 %v2833, %v3474
        %s3476 = scalar_lea.vmem %s216, 2560 [#allocation2]
        %v3477 = vld [vmem:[%s3476] sm:$0xff]
        %v3478 = vld [vmem:[%s3476 + $0x8] sm:$0xff]
        %v3479 = vld [vmem:[%s3476 + $0x10] sm:$0xff]
        %v3480 = vld [vmem:[%s3476 + $0x18] sm:$0xff]
        %v3481 = vld [vmem:[%s3476 + $0x20] sm:$0xff]
        %v3482 = vld [vmem:[%s3476 + $0x28] sm:$0xff]
        %v3483 = vld [vmem:[%s3476 + $0x30] sm:$0xff]
        %v3484 = vld [vmem:[%s3476 + $0x38] sm:$0xff]
        %v3485 = vld [vmem:[%s3476 + $0x40] sm:$0xff]
        %v3486 = vld [vmem:[%s3476 + $0x48] sm:$0xff]
        %v3487 = vld [vmem:[%s3476 + $0x50] sm:$0xff]
        %v3488 = vld [vmem:[%s3476 + $0x58] sm:$0xff]
        %v3489 = vld [vmem:[%s3476 + $0x60] sm:$0xff]
        %v3490 = vld [vmem:[%s3476 + $0x68] sm:$0xff]
        %v3491 = vld [vmem:[%s3476 + $0x70] sm:$0xff]
        %v3492 = vld [vmem:[%s3476 + $0x78] sm:$0xff]
        %v3493 = vld [vmem:[%s3476 + $0x80] sm:$0xff]
        %v3494 = vld [vmem:[%s3476 + $0x88] sm:$0xff]
        %v3495 = vld [vmem:[%s3476 + $0x90] sm:$0xff]
        %v3496 = vld [vmem:[%s3476 + $0x98] sm:$0xff]
        %v3497 = vld [vmem:[%s3476 + $0xa0] sm:$0xff]
        %v3498 = vld [vmem:[%s3476 + $0xa8] sm:$0xff]
        %v3499 = vld [vmem:[%s3476 + $0xb0] sm:$0xff]
        %v3500 = vld [vmem:[%s3476 + $0xb8] sm:$0xff]
        %v3501 = vld [vmem:[%s3476 + $0xc0] sm:$0xff]
        %v3502 = vld [vmem:[%s3476 + $0xc8] sm:$0xff]
        %v3503 = vld [vmem:[%s3476 + $0xd0] sm:$0xff]
        %v3504 = vld [vmem:[%s3476 + $0xd8] sm:$0xff]
        %v3505 = vld [vmem:[%s3476 + $0xe0] sm:$0xff]
        %v3506 = vld [vmem:[%s3476 + $0xe8] sm:$0xff]
        %v3507 = vld [vmem:[%s3476 + $0xf0] sm:$0xff]
        %v3508 = vld [vmem:[%s3476 + $0xf8] sm:$0xff]
        %v3509 = vld [vmem:[%s3476 + $0x100] sm:$0xff]
        %v3510 = vld [vmem:[%s3476 + $0x108] sm:$0xff]
        %v3511 = vld [vmem:[%s3476 + $0x110] sm:$0xff]
        %v3512 = vld [vmem:[%s3476 + $0x118] sm:$0xff]
        %v3513 = vld [vmem:[%s3476 + $0x120] sm:$0xff]
        %v3514 = vld [vmem:[%s3476 + $0x128] sm:$0xff]
        %v3515 = vld [vmem:[%s3476 + $0x130] sm:$0xff]
        %v3516 = vld [vmem:[%s3476 + $0x138] sm:$0xff]
        %v3517 = vld [vmem:[%s3476 + $0x140] sm:$0xff]
        %v3518 = vld [vmem:[%s3476 + $0x148] sm:$0xff]
        %v3519 = vld [vmem:[%s3476 + $0x150] sm:$0xff]
        %v3520 = vld [vmem:[%s3476 + $0x158] sm:$0xff]
        %v3521 = vld [vmem:[%s3476 + $0x160] sm:$0xff]
        %v3522 = vld [vmem:[%s3476 + $0x168] sm:$0xff]
        %v3523 = vld [vmem:[%s3476 + $0x170] sm:$0xff]
        %v3524 = vld [vmem:[%s3476 + $0x178] sm:$0xff]
        %v3525 = vld [vmem:[%s3476 + $0x180] sm:$0xff]
        %v3526 = vld [vmem:[%s3476 + $0x188] sm:$0xff]
        %v3527 = vld [vmem:[%s3476 + $0x190] sm:$0xff]
        %v3528 = vld [vmem:[%s3476 + $0x198] sm:$0xff]
        %v3529 = vld [vmem:[%s3476 + $0x1a0] sm:$0xff]
        %v3530 = vld [vmem:[%s3476 + $0x1a8] sm:$0xff]
        %v3531 = vld [vmem:[%s3476 + $0x1b0] sm:$0xff]
        %v3532 = vld [vmem:[%s3476 + $0x1b8] sm:$0xff]
        %v3533 = vld [vmem:[%s3476 + $0x1c0] sm:$0xff]
        %v3534 = vld [vmem:[%s3476 + $0x1c8] sm:$0xff]
        %v3535 = vld [vmem:[%s3476 + $0x1d0] sm:$0xff]
        %v3536 = vld [vmem:[%s3476 + $0x1d8] sm:$0xff]
        %v3537 = vld [vmem:[%s3476 + $0x1e0] sm:$0xff]
        %v3538 = vld [vmem:[%s3476 + $0x1e8] sm:$0xff]
        %v3539 = vld [vmem:[%s3476 + $0x1f0] sm:$0xff]
        %v3540 = vld [vmem:[%s3476 + $0x1f8] sm:$0xff]
        %s3541 = scalar_lea.vmem %s225, 2560 [#allocation5]
        %v3542 = vld [vmem:[%s3541] sm:$0xff]
        %v3543 = vld [vmem:[%s3541 + $0x8] sm:$0xff]
        %v3544 = vld [vmem:[%s3541 + $0x10] sm:$0xff]
        %v3545 = vld [vmem:[%s3541 + $0x18] sm:$0xff]
        %v3546 = vld [vmem:[%s3541 + $0x20] sm:$0xff]
        %v3547 = vld [vmem:[%s3541 + $0x28] sm:$0xff]
        %v3548 = vld [vmem:[%s3541 + $0x30] sm:$0xff]
        %v3549 = vld [vmem:[%s3541 + $0x38] sm:$0xff]
        %v3550 = vld [vmem:[%s3541 + $0x40] sm:$0xff]
        %v3551 = vld [vmem:[%s3541 + $0x48] sm:$0xff]
        %v3552 = vld [vmem:[%s3541 + $0x50] sm:$0xff]
        %v3553 = vld [vmem:[%s3541 + $0x58] sm:$0xff]
        %v3554 = vld [vmem:[%s3541 + $0x60] sm:$0xff]
        %v3555 = vld [vmem:[%s3541 + $0x68] sm:$0xff]
        %v3556 = vld [vmem:[%s3541 + $0x70] sm:$0xff]
        %v3557 = vld [vmem:[%s3541 + $0x78] sm:$0xff]
        %v3558 = vld [vmem:[%s3541 + $0x80] sm:$0xff]
        %v3559 = vld [vmem:[%s3541 + $0x88] sm:$0xff]
        %v3560 = vld [vmem:[%s3541 + $0x90] sm:$0xff]
        %v3561 = vld [vmem:[%s3541 + $0x98] sm:$0xff]
        %v3562 = vld [vmem:[%s3541 + $0xa0] sm:$0xff]
        %v3563 = vld [vmem:[%s3541 + $0xa8] sm:$0xff]
        %v3564 = vld [vmem:[%s3541 + $0xb0] sm:$0xff]
        %v3565 = vld [vmem:[%s3541 + $0xb8] sm:$0xff]
        %v3566 = vld [vmem:[%s3541 + $0xc0] sm:$0xff]
        %v3567 = vld [vmem:[%s3541 + $0xc8] sm:$0xff]
        %v3568 = vld [vmem:[%s3541 + $0xd0] sm:$0xff]
        %v3569 = vld [vmem:[%s3541 + $0xd8] sm:$0xff]
        %v3570 = vld [vmem:[%s3541 + $0xe0] sm:$0xff]
        %v3571 = vld [vmem:[%s3541 + $0xe8] sm:$0xff]
        %v3572 = vld [vmem:[%s3541 + $0xf0] sm:$0xff]
        %v3573 = vld [vmem:[%s3541 + $0xf8] sm:$0xff]
        %v3574 = vld [vmem:[%s3541 + $0x100] sm:$0xff]
        %v3575 = vld [vmem:[%s3541 + $0x108] sm:$0xff]
        %v3576 = vld [vmem:[%s3541 + $0x110] sm:$0xff]
        %v3577 = vld [vmem:[%s3541 + $0x118] sm:$0xff]
        %v3578 = vld [vmem:[%s3541 + $0x120] sm:$0xff]
        %v3579 = vld [vmem:[%s3541 + $0x128] sm:$0xff]
        %v3580 = vld [vmem:[%s3541 + $0x130] sm:$0xff]
        %v3581 = vld [vmem:[%s3541 + $0x138] sm:$0xff]
        %v3582 = vld [vmem:[%s3541 + $0x140] sm:$0xff]
        %v3583 = vld [vmem:[%s3541 + $0x148] sm:$0xff]
        %v3584 = vld [vmem:[%s3541 + $0x150] sm:$0xff]
        %v3585 = vld [vmem:[%s3541 + $0x158] sm:$0xff]
        %v3586 = vld [vmem:[%s3541 + $0x160] sm:$0xff]
        %v3587 = vld [vmem:[%s3541 + $0x168] sm:$0xff]
        %v3588 = vld [vmem:[%s3541 + $0x170] sm:$0xff]
        %v3589 = vld [vmem:[%s3541 + $0x178] sm:$0xff]
        %v3590 = vld [vmem:[%s3541 + $0x180] sm:$0xff]
        %v3591 = vld [vmem:[%s3541 + $0x188] sm:$0xff]
        %v3592 = vld [vmem:[%s3541 + $0x190] sm:$0xff]
        %v3593 = vld [vmem:[%s3541 + $0x198] sm:$0xff]
        %v3594 = vld [vmem:[%s3541 + $0x1a0] sm:$0xff]
        %v3595 = vld [vmem:[%s3541 + $0x1a8] sm:$0xff]
        %v3596 = vld [vmem:[%s3541 + $0x1b0] sm:$0xff]
        %v3597 = vld [vmem:[%s3541 + $0x1b8] sm:$0xff]
        %v3598 = vld [vmem:[%s3541 + $0x1c0] sm:$0xff]
        %v3599 = vld [vmem:[%s3541 + $0x1c8] sm:$0xff]
        %v3600 = vld [vmem:[%s3541 + $0x1d0] sm:$0xff]
        %v3601 = vld [vmem:[%s3541 + $0x1d8] sm:$0xff]
        %v3602 = vld [vmem:[%s3541 + $0x1e0] sm:$0xff]
        %v3603 = vld [vmem:[%s3541 + $0x1e8] sm:$0xff]
        %v3604 = vld [vmem:[%s3541 + $0x1f0] sm:$0xff]
        %v3605 = vld [vmem:[%s3541 + $0x1f8] sm:$0xff]
        %v3606 = vmul.f32 %v3477, 0.5
        %v3607 = vmul.f32 %v3478, 0.5
        %v3608 = vmul.f32 %v3479, 0.5
        %v3609 = vmul.f32 %v3480, 0.5
        %v3610 = vmul.f32 %v3481, 0.5
        %v3611 = vmul.f32 %v3482, 0.5
        %v3612 = vmul.f32 %v3483, 0.5
        %v3613 = vmul.f32 %v3484, 0.5
        %v3614 = vmul.f32 %v3485, 0.5
        %v3615 = vmul.f32 %v3486, 0.5
        %v3616 = vmul.f32 %v3487, 0.5
        %v3617 = vmul.f32 %v3488, 0.5
        %v3618 = vmul.f32 %v3489, 0.5
        %v3619 = vmul.f32 %v3490, 0.5
        %v3620 = vmul.f32 %v3491, 0.5
        %v3621 = vmul.f32 %v3492, 0.5
        %v3622 = vmul.f32 %v3493, 0.5
        %v3623 = vmul.f32 %v3494, 0.5
        %v3624 = vmul.f32 %v3495, 0.5
        %v3625 = vmul.f32 %v3496, 0.5
        %v3626 = vmul.f32 %v3497, 0.5
        %v3627 = vmul.f32 %v3498, 0.5
        %v3628 = vmul.f32 %v3499, 0.5
        %v3629 = vmul.f32 %v3500, 0.5
        %v3630 = vmul.f32 %v3501, 0.5
        %v3631 = vmul.f32 %v3502, 0.5
        %v3632 = vmul.f32 %v3503, 0.5
        %v3633 = vmul.f32 %v3504, 0.5
        %v3634 = vmul.f32 %v3505, 0.5
        %v3635 = vmul.f32 %v3506, 0.5
        %v3636 = vmul.f32 %v3507, 0.5
        %v3637 = vmul.f32 %v3508, 0.5
        %v3638 = vmul.f32 %v3509, 0.5
        %v3639 = vmul.f32 %v3510, 0.5
        %v3640 = vmul.f32 %v3511, 0.5
        %v3641 = vmul.f32 %v3512, 0.5
        %v3642 = vmul.f32 %v3513, 0.5
        %v3643 = vmul.f32 %v3514, 0.5
        %v3644 = vmul.f32 %v3515, 0.5
        %v3645 = vmul.f32 %v3516, 0.5
        %v3646 = vmul.f32 %v3517, 0.5
        %v3647 = vmul.f32 %v3518, 0.5
        %v3648 = vmul.f32 %v3519, 0.5
        %v3649 = vmul.f32 %v3520, 0.5
        %v3650 = vmul.f32 %v3521, 0.5
        %v3651 = vmul.f32 %v3522, 0.5
        %v3652 = vmul.f32 %v3523, 0.5
        %v3653 = vmul.f32 %v3524, 0.5
        %v3654 = vmul.f32 %v3525, 0.5
        %v3655 = vmul.f32 %v3526, 0.5
        %v3656 = vmul.f32 %v3527, 0.5
        %v3657 = vmul.f32 %v3528, 0.5
        %v3658 = vmul.f32 %v3529, 0.5
        %v3659 = vmul.f32 %v3530, 0.5
        %v3660 = vmul.f32 %v3531, 0.5
        %v3661 = vmul.f32 %v3532, 0.5
        %v3662 = vmul.f32 %v3533, 0.5
        %v3663 = vmul.f32 %v3534, 0.5
        %v3664 = vmul.f32 %v3535, 0.5
        %v3665 = vmul.f32 %v3536, 0.5
        %v3666 = vmul.f32 %v3537, 0.5
        %v3667 = vmul.f32 %v3538, 0.5
        %v3668 = vmul.f32 %v3539, 0.5
        %v3669 = vmul.f32 %v3540, 0.5
        %v3670 = vtanh.pop %v3606
        %v3671 = vtanh.pop %v3607
        %v3672 = vtanh.pop %v3608
        %v3673 = vtanh.pop %v3609
        %v3674 = vtanh.pop %v3610
        %v3675 = vtanh.pop %v3611
        %v3676 = vtanh.pop %v3612
        %v3677 = vtanh.pop %v3613
        %v3678 = vtanh.pop %v3614
        %v3679 = vtanh.pop %v3615
        %v3680 = vtanh.pop %v3616
        %v3681 = vtanh.pop %v3617
        %v3682 = vtanh.pop %v3618
        %v3683 = vtanh.pop %v3619
        %v3684 = vtanh.pop %v3620
        %v3685 = vtanh.pop %v3621
        %v3686 = vtanh.pop %v3622
        %v3687 = vtanh.pop %v3623
        %v3688 = vtanh.pop %v3624
        %v3689 = vtanh.pop %v3625
        %v3690 = vtanh.pop %v3626
        %v3691 = vtanh.pop %v3627
        %v3692 = vtanh.pop %v3628
        %v3693 = vtanh.pop %v3629
        %v3694 = vtanh.pop %v3630
        %v3695 = vtanh.pop %v3631
        %v3696 = vtanh.pop %v3632
        %v3697 = vtanh.pop %v3633
        %v3698 = vtanh.pop %v3634
        %v3699 = vtanh.pop %v3635
        %v3700 = vtanh.pop %v3636
        %v3701 = vtanh.pop %v3637
        %v3702 = vtanh.pop %v3638
        %v3703 = vtanh.pop %v3639
        %v3704 = vtanh.pop %v3640
        %v3705 = vtanh.pop %v3641
        %v3706 = vtanh.pop %v3642
        %v3707 = vtanh.pop %v3643
        %v3708 = vtanh.pop %v3644
        %v3709 = vtanh.pop %v3645
        %v3710 = vtanh.pop %v3646
        %v3711 = vtanh.pop %v3647
        %v3712 = vtanh.pop %v3648
        %v3713 = vtanh.pop %v3649
        %v3714 = vtanh.pop %v3650
        %v3715 = vtanh.pop %v3651
        %v3716 = vtanh.pop %v3652
        %v3717 = vtanh.pop %v3653
        %v3718 = vtanh.pop %v3654
        %v3719 = vtanh.pop %v3655
        %v3720 = vtanh.pop %v3656
        %v3721 = vtanh.pop %v3657
        %v3722 = vtanh.pop %v3658
        %v3723 = vtanh.pop %v3659
        %v3724 = vtanh.pop %v3660
        %v3725 = vtanh.pop %v3661
        %v3726 = vtanh.pop %v3662
        %v3727 = vtanh.pop %v3663
        %v3728 = vtanh.pop %v3664
        %v3729 = vtanh.pop %v3665
        %v3730 = vtanh.pop %v3666
        %v3731 = vtanh.pop %v3667
        %v3732 = vtanh.pop %v3668
        %v3733 = vtanh.pop %v3669
        %v3734 = vmul.f32 %v3670, 0.5
        %v3735 = vmul.f32 %v3671, 0.5
        %v3736 = vmul.f32 %v3672, 0.5
        %v3737 = vmul.f32 %v3673, 0.5
        %v3738 = vmul.f32 %v3674, 0.5
        %v3739 = vmul.f32 %v3675, 0.5
        %v3740 = vmul.f32 %v3676, 0.5
        %v3741 = vmul.f32 %v3677, 0.5
        %v3742 = vmul.f32 %v3678, 0.5
        %v3743 = vmul.f32 %v3679, 0.5
        %v3744 = vmul.f32 %v3680, 0.5
        %v3745 = vmul.f32 %v3681, 0.5
        %v3746 = vmul.f32 %v3682, 0.5
        %v3747 = vmul.f32 %v3683, 0.5
        %v3748 = vmul.f32 %v3684, 0.5
        %v3749 = vmul.f32 %v3685, 0.5
        %v3750 = vmul.f32 %v3686, 0.5
        %v3751 = vmul.f32 %v3687, 0.5
        %v3752 = vmul.f32 %v3688, 0.5
        %v3753 = vmul.f32 %v3689, 0.5
        %v3754 = vmul.f32 %v3690, 0.5
        %v3755 = vmul.f32 %v3691, 0.5
        %v3756 = vmul.f32 %v3692, 0.5
        %v3757 = vmul.f32 %v3693, 0.5
        %v3758 = vmul.f32 %v3694, 0.5
        %v3759 = vmul.f32 %v3695, 0.5
        %v3760 = vmul.f32 %v3696, 0.5
        %v3761 = vmul.f32 %v3697, 0.5
        %v3762 = vmul.f32 %v3698, 0.5
        %v3763 = vmul.f32 %v3699, 0.5
        %v3764 = vmul.f32 %v3700, 0.5
        %v3765 = vmul.f32 %v3701, 0.5
        %v3766 = vmul.f32 %v3702, 0.5
        %v3767 = vmul.f32 %v3703, 0.5
        %v3768 = vmul.f32 %v3704, 0.5
        %v3769 = vmul.f32 %v3705, 0.5
        %v3770 = vmul.f32 %v3706, 0.5
        %v3771 = vmul.f32 %v3707, 0.5
        %v3772 = vmul.f32 %v3708, 0.5
        %v3773 = vmul.f32 %v3709, 0.5
        %v3774 = vmul.f32 %v3710, 0.5
        %v3775 = vmul.f32 %v3711, 0.5
        %v3776 = vmul.f32 %v3712, 0.5
        %v3777 = vmul.f32 %v3713, 0.5
        %v3778 = vmul.f32 %v3714, 0.5
        %v3779 = vmul.f32 %v3715, 0.5
        %v3780 = vmul.f32 %v3716, 0.5
        %v3781 = vmul.f32 %v3717, 0.5
        %v3782 = vmul.f32 %v3718, 0.5
        %v3783 = vmul.f32 %v3719, 0.5
        %v3784 = vmul.f32 %v3720, 0.5
        %v3785 = vmul.f32 %v3721, 0.5
        %v3786 = vmul.f32 %v3722, 0.5
        %v3787 = vmul.f32 %v3723, 0.5
        %v3788 = vmul.f32 %v3724, 0.5
        %v3789 = vmul.f32 %v3725, 0.5
        %v3790 = vmul.f32 %v3726, 0.5
        %v3791 = vmul.f32 %v3727, 0.5
        %v3792 = vmul.f32 %v3728, 0.5
        %v3793 = vmul.f32 %v3729, 0.5
        %v3794 = vmul.f32 %v3730, 0.5
        %v3795 = vmul.f32 %v3731, 0.5
        %v3796 = vmul.f32 %v3732, 0.5
        %v3797 = vmul.f32 %v3733, 0.5
        %v3798 = vadd.f32 %v3734, 0.5
        %v3799 = vadd.f32 %v3735, 0.5
        %v3800 = vadd.f32 %v3736, 0.5
        %v3801 = vadd.f32 %v3737, 0.5
        %v3802 = vadd.f32 %v3738, 0.5
        %v3803 = vadd.f32 %v3739, 0.5
        %v3804 = vadd.f32 %v3740, 0.5
        %v3805 = vadd.f32 %v3741, 0.5
        %v3806 = vadd.f32 %v3742, 0.5
        %v3807 = vadd.f32 %v3743, 0.5
        %v3808 = vadd.f32 %v3744, 0.5
        %v3809 = vadd.f32 %v3745, 0.5
        %v3810 = vadd.f32 %v3746, 0.5
        %v3811 = vadd.f32 %v3747, 0.5
        %v3812 = vadd.f32 %v3748, 0.5
        %v3813 = vadd.f32 %v3749, 0.5
        %v3814 = vadd.f32 %v3750, 0.5
        %v3815 = vadd.f32 %v3751, 0.5
        %v3816 = vadd.f32 %v3752, 0.5
        %v3817 = vadd.f32 %v3753, 0.5
        %v3818 = vadd.f32 %v3754, 0.5
        %v3819 = vadd.f32 %v3755, 0.5
        %v3820 = vadd.f32 %v3756, 0.5
        %v3821 = vadd.f32 %v3757, 0.5
        %v3822 = vadd.f32 %v3758, 0.5
        %v3823 = vadd.f32 %v3759, 0.5
        %v3824 = vadd.f32 %v3760, 0.5
        %v3825 = vadd.f32 %v3761, 0.5
        %v3826 = vadd.f32 %v3762, 0.5
        %v3827 = vadd.f32 %v3763, 0.5
        %v3828 = vadd.f32 %v3764, 0.5
        %v3829 = vadd.f32 %v3765, 0.5
        %v3830 = vadd.f32 %v3766, 0.5
        %v3831 = vadd.f32 %v3767, 0.5
        %v3832 = vadd.f32 %v3768, 0.5
        %v3833 = vadd.f32 %v3769, 0.5
        %v3834 = vadd.f32 %v3770, 0.5
        %v3835 = vadd.f32 %v3771, 0.5
        %v3836 = vadd.f32 %v3772, 0.5
        %v3837 = vadd.f32 %v3773, 0.5
        %v3838 = vadd.f32 %v3774, 0.5
        %v3839 = vadd.f32 %v3775, 0.5
        %v3840 = vadd.f32 %v3776, 0.5
        %v3841 = vadd.f32 %v3777, 0.5
        %v3842 = vadd.f32 %v3778, 0.5
        %v3843 = vadd.f32 %v3779, 0.5
        %v3844 = vadd.f32 %v3780, 0.5
        %v3845 = vadd.f32 %v3781, 0.5
        %v3846 = vadd.f32 %v3782, 0.5
        %v3847 = vadd.f32 %v3783, 0.5
        %v3848 = vadd.f32 %v3784, 0.5
        %v3849 = vadd.f32 %v3785, 0.5
        %v3850 = vadd.f32 %v3786, 0.5
        %v3851 = vadd.f32 %v3787, 0.5
        %v3852 = vadd.f32 %v3788, 0.5
        %v3853 = vadd.f32 %v3789, 0.5
        %v3854 = vadd.f32 %v3790, 0.5
        %v3855 = vadd.f32 %v3791, 0.5
        %v3856 = vadd.f32 %v3792, 0.5
        %v3857 = vadd.f32 %v3793, 0.5
        %v3858 = vadd.f32 %v3794, 0.5
        %v3859 = vadd.f32 %v3795, 0.5
        %v3860 = vadd.f32 %v3796, 0.5
        %v3861 = vadd.f32 %v3797, 0.5
        %v3862 = vmul.f32 %v3798, %v3542
        %v3863 = vmul.f32 %v3799, %v3543
        %v3864 = vmul.f32 %v3800, %v3544
        %v3865 = vmul.f32 %v3801, %v3545
        %v3866 = vmul.f32 %v3802, %v3546
        %v3867 = vmul.f32 %v3803, %v3547
        %v3868 = vmul.f32 %v3804, %v3548
        %v3869 = vmul.f32 %v3805, %v3549
        %v3870 = vmul.f32 %v3806, %v3550
        %v3871 = vmul.f32 %v3807, %v3551
        %v3872 = vmul.f32 %v3808, %v3552
        %v3873 = vmul.f32 %v3809, %v3553
        %v3874 = vmul.f32 %v3810, %v3554
        %v3875 = vmul.f32 %v3811, %v3555
        %v3876 = vmul.f32 %v3812, %v3556
        %v3877 = vmul.f32 %v3813, %v3557
        %v3878 = vmul.f32 %v3814, %v3558
        %v3879 = vmul.f32 %v3815, %v3559
        %v3880 = vmul.f32 %v3816, %v3560
        %v3881 = vmul.f32 %v3817, %v3561
        %v3882 = vmul.f32 %v3818, %v3562
        %v3883 = vmul.f32 %v3819, %v3563
        %v3884 = vmul.f32 %v3820, %v3564
        %v3885 = vmul.f32 %v3821, %v3565
        %v3886 = vmul.f32 %v3822, %v3566
        %v3887 = vmul.f32 %v3823, %v3567
        %v3888 = vmul.f32 %v3824, %v3568
        %v3889 = vmul.f32 %v3825, %v3569
        %v3890 = vmul.f32 %v3826, %v3570
        %v3891 = vmul.f32 %v3827, %v3571
        %v3892 = vmul.f32 %v3828, %v3572
        %v3893 = vmul.f32 %v3829, %v3573
        %v3894 = vmul.f32 %v3830, %v3574
        %v3895 = vmul.f32 %v3831, %v3575
        %v3896 = vmul.f32 %v3832, %v3576
        %v3897 = vmul.f32 %v3833, %v3577
        %v3898 = vmul.f32 %v3834, %v3578
        %v3899 = vmul.f32 %v3835, %v3579
        %v3900 = vmul.f32 %v3836, %v3580
        %v3901 = vmul.f32 %v3837, %v3581
        %v3902 = vmul.f32 %v3838, %v3582
        %v3903 = vmul.f32 %v3839, %v3583
        %v3904 = vmul.f32 %v3840, %v3584
        %v3905 = vmul.f32 %v3841, %v3585
        %v3906 = vmul.f32 %v3842, %v3586
        %v3907 = vmul.f32 %v3843, %v3587
        %v3908 = vmul.f32 %v3844, %v3588
        %v3909 = vmul.f32 %v3845, %v3589
        %v3910 = vmul.f32 %v3846, %v3590
        %v3911 = vmul.f32 %v3847, %v3591
        %v3912 = vmul.f32 %v3848, %v3592
        %v3913 = vmul.f32 %v3849, %v3593
        %v3914 = vmul.f32 %v3850, %v3594
        %v3915 = vmul.f32 %v3851, %v3595
        %v3916 = vmul.f32 %v3852, %v3596
        %v3917 = vmul.f32 %v3853, %v3597
        %v3918 = vmul.f32 %v3854, %v3598
        %v3919 = vmul.f32 %v3855, %v3599
        %v3920 = vmul.f32 %v3856, %v3600
        %v3921 = vmul.f32 %v3857, %v3601
        %v3922 = vmul.f32 %v3858, %v3602
        %v3923 = vmul.f32 %v3859, %v3603
        %v3924 = vmul.f32 %v3860, %v3604
        %v3925 = vmul.f32 %v3861, %v3605
        %v3926 = vadd.f32 %v3862, %v3863
        %v3927 = vadd.f32 %v3926, %v3864
        %v3928 = vadd.f32 %v3927, %v3865
        %v3929 = vadd.f32 %v3928, %v3866
        %v3930 = vadd.f32 %v3929, %v3867
        %v3931 = vadd.f32 %v3930, %v3868
        %v3932 = vadd.f32 %v3931, %v3869
        %v3933 = vadd.f32 %v3932, %v3870
        %v3934 = vadd.f32 %v3933, %v3871
        %v3935 = vadd.f32 %v3934, %v3872
        %v3936 = vadd.f32 %v3935, %v3873
        %v3937 = vadd.f32 %v3936, %v3874
        %v3938 = vadd.f32 %v3937, %v3875
        %v3939 = vadd.f32 %v3938, %v3876
        %v3940 = vadd.f32 %v3939, %v3877
        %v3941 = vadd.f32 %v3940, %v3878
        %v3942 = vadd.f32 %v3941, %v3879
        %v3943 = vadd.f32 %v3942, %v3880
        %v3944 = vadd.f32 %v3943, %v3881
        %v3945 = vadd.f32 %v3944, %v3882
        %v3946 = vadd.f32 %v3945, %v3883
        %v3947 = vadd.f32 %v3946, %v3884
        %v3948 = vadd.f32 %v3947, %v3885
        %v3949 = vadd.f32 %v3948, %v3886
        %v3950 = vadd.f32 %v3949, %v3887
        %v3951 = vadd.f32 %v3950, %v3888
        %v3952 = vadd.f32 %v3951, %v3889
        %v3953 = vadd.f32 %v3952, %v3890
        %v3954 = vadd.f32 %v3953, %v3891
        %v3955 = vadd.f32 %v3954, %v3892
        %v3956 = vadd.f32 %v3955, %v3893
        %v3957 = vadd.f32 %v3956, %v3894
        %v3958 = vadd.f32 %v3957, %v3895
        %v3959 = vadd.f32 %v3958, %v3896
        %v3960 = vadd.f32 %v3959, %v3897
        %v3961 = vadd.f32 %v3960, %v3898
        %v3962 = vadd.f32 %v3961, %v3899
        %v3963 = vadd.f32 %v3962, %v3900
        %v3964 = vadd.f32 %v3963, %v3901
        %v3965 = vadd.f32 %v3964, %v3902
        %v3966 = vadd.f32 %v3965, %v3903
        %v3967 = vadd.f32 %v3966, %v3904
        %v3968 = vadd.f32 %v3967, %v3905
        %v3969 = vadd.f32 %v3968, %v3906
        %v3970 = vadd.f32 %v3969, %v3907
        %v3971 = vadd.f32 %v3970, %v3908
        %v3972 = vadd.f32 %v3971, %v3909
        %v3973 = vadd.f32 %v3972, %v3910
        %v3974 = vadd.f32 %v3973, %v3911
        %v3975 = vadd.f32 %v3974, %v3912
        %v3976 = vadd.f32 %v3975, %v3913
        %v3977 = vadd.f32 %v3976, %v3914
        %v3978 = vadd.f32 %v3977, %v3915
        %v3979 = vadd.f32 %v3978, %v3916
        %v3980 = vadd.f32 %v3979, %v3917
        %v3981 = vadd.f32 %v3980, %v3918
        %v3982 = vadd.f32 %v3981, %v3919
        %v3983 = vadd.f32 %v3982, %v3920
        %v3984 = vadd.f32 %v3983, %v3921
        %v3985 = vadd.f32 %v3984, %v3922
        %v3986 = vadd.f32 %v3985, %v3923
        %v3987 = vadd.f32 %v3986, %v3924
        %v3988 = vadd.f32 %v3987, %v3925
        %v3989 = vadd.f32 %v3347, %v3988
        %v3990 = vadd.f32 %v3798, %v3542
        %v3991 = vadd.f32 %v3799, %v3543
        %v3992 = vadd.f32 %v3800, %v3544
        %v3993 = vadd.f32 %v3801, %v3545
        %v3994 = vadd.f32 %v3802, %v3546
        %v3995 = vadd.f32 %v3803, %v3547
        %v3996 = vadd.f32 %v3804, %v3548
        %v3997 = vadd.f32 %v3805, %v3549
        %v3998 = vadd.f32 %v3806, %v3550
        %v3999 = vadd.f32 %v3807, %v3551
        %v4000 = vadd.f32 %v3808, %v3552
        %v4001 = vadd.f32 %v3809, %v3553
        %v4002 = vadd.f32 %v3810, %v3554
        %v4003 = vadd.f32 %v3811, %v3555
        %v4004 = vadd.f32 %v3812, %v3556
        %v4005 = vadd.f32 %v3813, %v3557
        %v4006 = vadd.f32 %v3814, %v3558
        %v4007 = vadd.f32 %v3815, %v3559
        %v4008 = vadd.f32 %v3816, %v3560
        %v4009 = vadd.f32 %v3817, %v3561
        %v4010 = vadd.f32 %v3818, %v3562
        %v4011 = vadd.f32 %v3819, %v3563
        %v4012 = vadd.f32 %v3820, %v3564
        %v4013 = vadd.f32 %v3821, %v3565
        %v4014 = vadd.f32 %v3822, %v3566
        %v4015 = vadd.f32 %v3823, %v3567
        %v4016 = vadd.f32 %v3824, %v3568
        %v4017 = vadd.f32 %v3825, %v3569
        %v4018 = vadd.f32 %v3826, %v3570
        %v4019 = vadd.f32 %v3827, %v3571
        %v4020 = vadd.f32 %v3828, %v3572
        %v4021 = vadd.f32 %v3829, %v3573
        %v4022 = vadd.f32 %v3830, %v3574
        %v4023 = vadd.f32 %v3831, %v3575
        %v4024 = vadd.f32 %v3832, %v3576
        %v4025 = vadd.f32 %v3833, %v3577
        %v4026 = vadd.f32 %v3834, %v3578
        %v4027 = vadd.f32 %v3835, %v3579
        %v4028 = vadd.f32 %v3836, %v3580
        %v4029 = vadd.f32 %v3837, %v3581
        %v4030 = vadd.f32 %v3838, %v3582
        %v4031 = vadd.f32 %v3839, %v3583
        %v4032 = vadd.f32 %v3840, %v3584
        %v4033 = vadd.f32 %v3841, %v3585
        %v4034 = vadd.f32 %v3842, %v3586
        %v4035 = vadd.f32 %v3843, %v3587
        %v4036 = vadd.f32 %v3844, %v3588
        %v4037 = vadd.f32 %v3845, %v3589
        %v4038 = vadd.f32 %v3846, %v3590
        %v4039 = vadd.f32 %v3847, %v3591
        %v4040 = vadd.f32 %v3848, %v3592
        %v4041 = vadd.f32 %v3849, %v3593
        %v4042 = vadd.f32 %v3850, %v3594
        %v4043 = vadd.f32 %v3851, %v3595
        %v4044 = vadd.f32 %v3852, %v3596
        %v4045 = vadd.f32 %v3853, %v3597
        %v4046 = vadd.f32 %v3854, %v3598
        %v4047 = vadd.f32 %v3855, %v3599
        %v4048 = vadd.f32 %v3856, %v3600
        %v4049 = vadd.f32 %v3857, %v3601
        %v4050 = vadd.f32 %v3858, %v3602
        %v4051 = vadd.f32 %v3859, %v3603
        %v4052 = vadd.f32 %v3860, %v3604
        %v4053 = vadd.f32 %v3861, %v3605
        %v4054 = vadd.f32 %v3990, %v3991
        %v4055 = vadd.f32 %v4054, %v3992
        %v4056 = vadd.f32 %v4055, %v3993
        %v4057 = vadd.f32 %v4056, %v3994
        %v4058 = vadd.f32 %v4057, %v3995
        %v4059 = vadd.f32 %v4058, %v3996
        %v4060 = vadd.f32 %v4059, %v3997
        %v4061 = vadd.f32 %v4060, %v3998
        %v4062 = vadd.f32 %v4061, %v3999
        %v4063 = vadd.f32 %v4062, %v4000
        %v4064 = vadd.f32 %v4063, %v4001
        %v4065 = vadd.f32 %v4064, %v4002
        %v4066 = vadd.f32 %v4065, %v4003
        %v4067 = vadd.f32 %v4066, %v4004
        %v4068 = vadd.f32 %v4067, %v4005
        %v4069 = vadd.f32 %v4068, %v4006
        %v4070 = vadd.f32 %v4069, %v4007
        %v4071 = vadd.f32 %v4070, %v4008
        %v4072 = vadd.f32 %v4071, %v4009
        %v4073 = vadd.f32 %v4072, %v4010
        %v4074 = vadd.f32 %v4073, %v4011
        %v4075 = vadd.f32 %v4074, %v4012
        %v4076 = vadd.f32 %v4075, %v4013
        %v4077 = vadd.f32 %v4076, %v4014
        %v4078 = vadd.f32 %v4077, %v4015
        %v4079 = vadd.f32 %v4078, %v4016
        %v4080 = vadd.f32 %v4079, %v4017
        %v4081 = vadd.f32 %v4080, %v4018
        %v4082 = vadd.f32 %v4081, %v4019
        %v4083 = vadd.f32 %v4082, %v4020
        %v4084 = vadd.f32 %v4083, %v4021
        %v4085 = vadd.f32 %v4084, %v4022
        %v4086 = vadd.f32 %v4085, %v4023
        %v4087 = vadd.f32 %v4086, %v4024
        %v4088 = vadd.f32 %v4087, %v4025
        %v4089 = vadd.f32 %v4088, %v4026
        %v4090 = vadd.f32 %v4089, %v4027
        %v4091 = vadd.f32 %v4090, %v4028
        %v4092 = vadd.f32 %v4091, %v4029
        %v4093 = vadd.f32 %v4092, %v4030
        %v4094 = vadd.f32 %v4093, %v4031
        %v4095 = vadd.f32 %v4094, %v4032
        %v4096 = vadd.f32 %v4095, %v4033
        %v4097 = vadd.f32 %v4096, %v4034
        %v4098 = vadd.f32 %v4097, %v4035
        %v4099 = vadd.f32 %v4098, %v4036
        %v4100 = vadd.f32 %v4099, %v4037
        %v4101 = vadd.f32 %v4100, %v4038
        %v4102 = vadd.f32 %v4101, %v4039
        %v4103 = vadd.f32 %v4102, %v4040
        %v4104 = vadd.f32 %v4103, %v4041
        %v4105 = vadd.f32 %v4104, %v4042
        %v4106 = vadd.f32 %v4105, %v4043
        %v4107 = vadd.f32 %v4106, %v4044
        %v4108 = vadd.f32 %v4107, %v4045
        %v4109 = vadd.f32 %v4108, %v4046
        %v4110 = vadd.f32 %v4109, %v4047
        %v4111 = vadd.f32 %v4110, %v4048
        %v4112 = vadd.f32 %v4111, %v4049
        %v4113 = vadd.f32 %v4112, %v4050
        %v4114 = vadd.f32 %v4113, %v4051
        %v4115 = vadd.f32 %v4114, %v4052
        %v4116 = vadd.f32 %v4115, %v4053
        %v4117 = vadd.f32 %v3475, %v4116
        %s4118 = scalar_lea.vmem %s216, 3072 [#allocation2]
        %v4119 = vld [vmem:[%s4118] sm:$0xff]
        %v4120 = vld [vmem:[%s4118 + $0x8] sm:$0xff]
        %v4121 = vld [vmem:[%s4118 + $0x10] sm:$0xff]
        %v4122 = vld [vmem:[%s4118 + $0x18] sm:$0xff]
        %v4123 = vld [vmem:[%s4118 + $0x20] sm:$0xff]
        %v4124 = vld [vmem:[%s4118 + $0x28] sm:$0xff]
        %v4125 = vld [vmem:[%s4118 + $0x30] sm:$0xff]
        %v4126 = vld [vmem:[%s4118 + $0x38] sm:$0xff]
        %v4127 = vld [vmem:[%s4118 + $0x40] sm:$0xff]
        %v4128 = vld [vmem:[%s4118 + $0x48] sm:$0xff]
        %v4129 = vld [vmem:[%s4118 + $0x50] sm:$0xff]
        %v4130 = vld [vmem:[%s4118 + $0x58] sm:$0xff]
        %v4131 = vld [vmem:[%s4118 + $0x60] sm:$0xff]
        %v4132 = vld [vmem:[%s4118 + $0x68] sm:$0xff]
        %v4133 = vld [vmem:[%s4118 + $0x70] sm:$0xff]
        %v4134 = vld [vmem:[%s4118 + $0x78] sm:$0xff]
        %v4135 = vld [vmem:[%s4118 + $0x80] sm:$0xff]
        %v4136 = vld [vmem:[%s4118 + $0x88] sm:$0xff]
        %v4137 = vld [vmem:[%s4118 + $0x90] sm:$0xff]
        %v4138 = vld [vmem:[%s4118 + $0x98] sm:$0xff]
        %v4139 = vld [vmem:[%s4118 + $0xa0] sm:$0xff]
        %v4140 = vld [vmem:[%s4118 + $0xa8] sm:$0xff]
        %v4141 = vld [vmem:[%s4118 + $0xb0] sm:$0xff]
        %v4142 = vld [vmem:[%s4118 + $0xb8] sm:$0xff]
        %v4143 = vld [vmem:[%s4118 + $0xc0] sm:$0xff]
        %v4144 = vld [vmem:[%s4118 + $0xc8] sm:$0xff]
        %v4145 = vld [vmem:[%s4118 + $0xd0] sm:$0xff]
        %v4146 = vld [vmem:[%s4118 + $0xd8] sm:$0xff]
        %v4147 = vld [vmem:[%s4118 + $0xe0] sm:$0xff]
        %v4148 = vld [vmem:[%s4118 + $0xe8] sm:$0xff]
        %v4149 = vld [vmem:[%s4118 + $0xf0] sm:$0xff]
        %v4150 = vld [vmem:[%s4118 + $0xf8] sm:$0xff]
        %v4151 = vld [vmem:[%s4118 + $0x100] sm:$0xff]
        %v4152 = vld [vmem:[%s4118 + $0x108] sm:$0xff]
        %v4153 = vld [vmem:[%s4118 + $0x110] sm:$0xff]
        %v4154 = vld [vmem:[%s4118 + $0x118] sm:$0xff]
        %v4155 = vld [vmem:[%s4118 + $0x120] sm:$0xff]
        %v4156 = vld [vmem:[%s4118 + $0x128] sm:$0xff]
        %v4157 = vld [vmem:[%s4118 + $0x130] sm:$0xff]
        %v4158 = vld [vmem:[%s4118 + $0x138] sm:$0xff]
        %v4159 = vld [vmem:[%s4118 + $0x140] sm:$0xff]
        %v4160 = vld [vmem:[%s4118 + $0x148] sm:$0xff]
        %v4161 = vld [vmem:[%s4118 + $0x150] sm:$0xff]
        %v4162 = vld [vmem:[%s4118 + $0x158] sm:$0xff]
        %v4163 = vld [vmem:[%s4118 + $0x160] sm:$0xff]
        %v4164 = vld [vmem:[%s4118 + $0x168] sm:$0xff]
        %v4165 = vld [vmem:[%s4118 + $0x170] sm:$0xff]
        %v4166 = vld [vmem:[%s4118 + $0x178] sm:$0xff]
        %v4167 = vld [vmem:[%s4118 + $0x180] sm:$0xff]
        %v4168 = vld [vmem:[%s4118 + $0x188] sm:$0xff]
        %v4169 = vld [vmem:[%s4118 + $0x190] sm:$0xff]
        %v4170 = vld [vmem:[%s4118 + $0x198] sm:$0xff]
        %v4171 = vld [vmem:[%s4118 + $0x1a0] sm:$0xff]
        %v4172 = vld [vmem:[%s4118 + $0x1a8] sm:$0xff]
        %v4173 = vld [vmem:[%s4118 + $0x1b0] sm:$0xff]
        %v4174 = vld [vmem:[%s4118 + $0x1b8] sm:$0xff]
        %v4175 = vld [vmem:[%s4118 + $0x1c0] sm:$0xff]
        %v4176 = vld [vmem:[%s4118 + $0x1c8] sm:$0xff]
        %v4177 = vld [vmem:[%s4118 + $0x1d0] sm:$0xff]
        %v4178 = vld [vmem:[%s4118 + $0x1d8] sm:$0xff]
        %v4179 = vld [vmem:[%s4118 + $0x1e0] sm:$0xff]
        %v4180 = vld [vmem:[%s4118 + $0x1e8] sm:$0xff]
        %v4181 = vld [vmem:[%s4118 + $0x1f0] sm:$0xff]
        %v4182 = vld [vmem:[%s4118 + $0x1f8] sm:$0xff]
        %s4183 = scalar_lea.vmem %s225, 3072 [#allocation5]
        %v4184 = vld [vmem:[%s4183] sm:$0xff]
        %v4185 = vld [vmem:[%s4183 + $0x8] sm:$0xff]
        %v4186 = vld [vmem:[%s4183 + $0x10] sm:$0xff]
        %v4187 = vld [vmem:[%s4183 + $0x18] sm:$0xff]
        %v4188 = vld [vmem:[%s4183 + $0x20] sm:$0xff]
        %v4189 = vld [vmem:[%s4183 + $0x28] sm:$0xff]
        %v4190 = vld [vmem:[%s4183 + $0x30] sm:$0xff]
        %v4191 = vld [vmem:[%s4183 + $0x38] sm:$0xff]
        %v4192 = vld [vmem:[%s4183 + $0x40] sm:$0xff]
        %v4193 = vld [vmem:[%s4183 + $0x48] sm:$0xff]
        %v4194 = vld [vmem:[%s4183 + $0x50] sm:$0xff]
        %v4195 = vld [vmem:[%s4183 + $0x58] sm:$0xff]
        %v4196 = vld [vmem:[%s4183 + $0x60] sm:$0xff]
        %v4197 = vld [vmem:[%s4183 + $0x68] sm:$0xff]
        %v4198 = vld [vmem:[%s4183 + $0x70] sm:$0xff]
        %v4199 = vld [vmem:[%s4183 + $0x78] sm:$0xff]
        %v4200 = vld [vmem:[%s4183 + $0x80] sm:$0xff]
        %v4201 = vld [vmem:[%s4183 + $0x88] sm:$0xff]
        %v4202 = vld [vmem:[%s4183 + $0x90] sm:$0xff]
        %v4203 = vld [vmem:[%s4183 + $0x98] sm:$0xff]
        %v4204 = vld [vmem:[%s4183 + $0xa0] sm:$0xff]
        %v4205 = vld [vmem:[%s4183 + $0xa8] sm:$0xff]
        %v4206 = vld [vmem:[%s4183 + $0xb0] sm:$0xff]
        %v4207 = vld [vmem:[%s4183 + $0xb8] sm:$0xff]
        %v4208 = vld [vmem:[%s4183 + $0xc0] sm:$0xff]
        %v4209 = vld [vmem:[%s4183 + $0xc8] sm:$0xff]
        %v4210 = vld [vmem:[%s4183 + $0xd0] sm:$0xff]
        %v4211 = vld [vmem:[%s4183 + $0xd8] sm:$0xff]
        %v4212 = vld [vmem:[%s4183 + $0xe0] sm:$0xff]
        %v4213 = vld [vmem:[%s4183 + $0xe8] sm:$0xff]
        %v4214 = vld [vmem:[%s4183 + $0xf0] sm:$0xff]
        %v4215 = vld [vmem:[%s4183 + $0xf8] sm:$0xff]
        %v4216 = vld [vmem:[%s4183 + $0x100] sm:$0xff]
        %v4217 = vld [vmem:[%s4183 + $0x108] sm:$0xff]
        %v4218 = vld [vmem:[%s4183 + $0x110] sm:$0xff]
        %v4219 = vld [vmem:[%s4183 + $0x118] sm:$0xff]
        %v4220 = vld [vmem:[%s4183 + $0x120] sm:$0xff]
        %v4221 = vld [vmem:[%s4183 + $0x128] sm:$0xff]
        %v4222 = vld [vmem:[%s4183 + $0x130] sm:$0xff]
        %v4223 = vld [vmem:[%s4183 + $0x138] sm:$0xff]
        %v4224 = vld [vmem:[%s4183 + $0x140] sm:$0xff]
        %v4225 = vld [vmem:[%s4183 + $0x148] sm:$0xff]
        %v4226 = vld [vmem:[%s4183 + $0x150] sm:$0xff]
        %v4227 = vld [vmem:[%s4183 + $0x158] sm:$0xff]
        %v4228 = vld [vmem:[%s4183 + $0x160] sm:$0xff]
        %v4229 = vld [vmem:[%s4183 + $0x168] sm:$0xff]
        %v4230 = vld [vmem:[%s4183 + $0x170] sm:$0xff]
        %v4231 = vld [vmem:[%s4183 + $0x178] sm:$0xff]
        %v4232 = vld [vmem:[%s4183 + $0x180] sm:$0xff]
        %v4233 = vld [vmem:[%s4183 + $0x188] sm:$0xff]
        %v4234 = vld [vmem:[%s4183 + $0x190] sm:$0xff]
        %v4235 = vld [vmem:[%s4183 + $0x198] sm:$0xff]
        %v4236 = vld [vmem:[%s4183 + $0x1a0] sm:$0xff]
        %v4237 = vld [vmem:[%s4183 + $0x1a8] sm:$0xff]
        %v4238 = vld [vmem:[%s4183 + $0x1b0] sm:$0xff]
        %v4239 = vld [vmem:[%s4183 + $0x1b8] sm:$0xff]
        %v4240 = vld [vmem:[%s4183 + $0x1c0] sm:$0xff]
        %v4241 = vld [vmem:[%s4183 + $0x1c8] sm:$0xff]
        %v4242 = vld [vmem:[%s4183 + $0x1d0] sm:$0xff]
        %v4243 = vld [vmem:[%s4183 + $0x1d8] sm:$0xff]
        %v4244 = vld [vmem:[%s4183 + $0x1e0] sm:$0xff]
        %v4245 = vld [vmem:[%s4183 + $0x1e8] sm:$0xff]
        %v4246 = vld [vmem:[%s4183 + $0x1f0] sm:$0xff]
        %v4247 = vld [vmem:[%s4183 + $0x1f8] sm:$0xff]
        %v4248 = vmul.f32 %v4119, 0.5
        %v4249 = vmul.f32 %v4120, 0.5
        %v4250 = vmul.f32 %v4121, 0.5
        %v4251 = vmul.f32 %v4122, 0.5
        %v4252 = vmul.f32 %v4123, 0.5
        %v4253 = vmul.f32 %v4124, 0.5
        %v4254 = vmul.f32 %v4125, 0.5
        %v4255 = vmul.f32 %v4126, 0.5
        %v4256 = vmul.f32 %v4127, 0.5
        %v4257 = vmul.f32 %v4128, 0.5
        %v4258 = vmul.f32 %v4129, 0.5
        %v4259 = vmul.f32 %v4130, 0.5
        %v4260 = vmul.f32 %v4131, 0.5
        %v4261 = vmul.f32 %v4132, 0.5
        %v4262 = vmul.f32 %v4133, 0.5
        %v4263 = vmul.f32 %v4134, 0.5
        %v4264 = vmul.f32 %v4135, 0.5
        %v4265 = vmul.f32 %v4136, 0.5
        %v4266 = vmul.f32 %v4137, 0.5
        %v4267 = vmul.f32 %v4138, 0.5
        %v4268 = vmul.f32 %v4139, 0.5
        %v4269 = vmul.f32 %v4140, 0.5
        %v4270 = vmul.f32 %v4141, 0.5
        %v4271 = vmul.f32 %v4142, 0.5
        %v4272 = vmul.f32 %v4143, 0.5
        %v4273 = vmul.f32 %v4144, 0.5
        %v4274 = vmul.f32 %v4145, 0.5
        %v4275 = vmul.f32 %v4146, 0.5
        %v4276 = vmul.f32 %v4147, 0.5
        %v4277 = vmul.f32 %v4148, 0.5
        %v4278 = vmul.f32 %v4149, 0.5
        %v4279 = vmul.f32 %v4150, 0.5
        %v4280 = vmul.f32 %v4151, 0.5
        %v4281 = vmul.f32 %v4152, 0.5
        %v4282 = vmul.f32 %v4153, 0.5
        %v4283 = vmul.f32 %v4154, 0.5
        %v4284 = vmul.f32 %v4155, 0.5
        %v4285 = vmul.f32 %v4156, 0.5
        %v4286 = vmul.f32 %v4157, 0.5
        %v4287 = vmul.f32 %v4158, 0.5
        %v4288 = vmul.f32 %v4159, 0.5
        %v4289 = vmul.f32 %v4160, 0.5
        %v4290 = vmul.f32 %v4161, 0.5
        %v4291 = vmul.f32 %v4162, 0.5
        %v4292 = vmul.f32 %v4163, 0.5
        %v4293 = vmul.f32 %v4164, 0.5
        %v4294 = vmul.f32 %v4165, 0.5
        %v4295 = vmul.f32 %v4166, 0.5
        %v4296 = vmul.f32 %v4167, 0.5
        %v4297 = vmul.f32 %v4168, 0.5
        %v4298 = vmul.f32 %v4169, 0.5
        %v4299 = vmul.f32 %v4170, 0.5
        %v4300 = vmul.f32 %v4171, 0.5
        %v4301 = vmul.f32 %v4172, 0.5
        %v4302 = vmul.f32 %v4173, 0.5
        %v4303 = vmul.f32 %v4174, 0.5
        %v4304 = vmul.f32 %v4175, 0.5
        %v4305 = vmul.f32 %v4176, 0.5
        %v4306 = vmul.f32 %v4177, 0.5
        %v4307 = vmul.f32 %v4178, 0.5
        %v4308 = vmul.f32 %v4179, 0.5
        %v4309 = vmul.f32 %v4180, 0.5
        %v4310 = vmul.f32 %v4181, 0.5
        %v4311 = vmul.f32 %v4182, 0.5
        %v4312 = vtanh.pop %v4248
        %v4313 = vtanh.pop %v4249
        %v4314 = vtanh.pop %v4250
        %v4315 = vtanh.pop %v4251
        %v4316 = vtanh.pop %v4252
        %v4317 = vtanh.pop %v4253
        %v4318 = vtanh.pop %v4254
        %v4319 = vtanh.pop %v4255
        %v4320 = vtanh.pop %v4256
        %v4321 = vtanh.pop %v4257
        %v4322 = vtanh.pop %v4258
        %v4323 = vtanh.pop %v4259
        %v4324 = vtanh.pop %v4260
        %v4325 = vtanh.pop %v4261
        %v4326 = vtanh.pop %v4262
        %v4327 = vtanh.pop %v4263
        %v4328 = vtanh.pop %v4264
        %v4329 = vtanh.pop %v4265
        %v4330 = vtanh.pop %v4266
        %v4331 = vtanh.pop %v4267
        %v4332 = vtanh.pop %v4268
        %v4333 = vtanh.pop %v4269
        %v4334 = vtanh.pop %v4270
        %v4335 = vtanh.pop %v4271
        %v4336 = vtanh.pop %v4272
        %v4337 = vtanh.pop %v4273
        %v4338 = vtanh.pop %v4274
        %v4339 = vtanh.pop %v4275
        %v4340 = vtanh.pop %v4276
        %v4341 = vtanh.pop %v4277
        %v4342 = vtanh.pop %v4278
        %v4343 = vtanh.pop %v4279
        %v4344 = vtanh.pop %v4280
        %v4345 = vtanh.pop %v4281
        %v4346 = vtanh.pop %v4282
        %v4347 = vtanh.pop %v4283
        %v4348 = vtanh.pop %v4284
        %v4349 = vtanh.pop %v4285
        %v4350 = vtanh.pop %v4286
        %v4351 = vtanh.pop %v4287
        %v4352 = vtanh.pop %v4288
        %v4353 = vtanh.pop %v4289
        %v4354 = vtanh.pop %v4290
        %v4355 = vtanh.pop %v4291
        %v4356 = vtanh.pop %v4292
        %v4357 = vtanh.pop %v4293
        %v4358 = vtanh.pop %v4294
        %v4359 = vtanh.pop %v4295
        %v4360 = vtanh.pop %v4296
        %v4361 = vtanh.pop %v4297
        %v4362 = vtanh.pop %v4298
        %v4363 = vtanh.pop %v4299
        %v4364 = vtanh.pop %v4300
        %v4365 = vtanh.pop %v4301
        %v4366 = vtanh.pop %v4302
        %v4367 = vtanh.pop %v4303
        %v4368 = vtanh.pop %v4304
        %v4369 = vtanh.pop %v4305
        %v4370 = vtanh.pop %v4306
        %v4371 = vtanh.pop %v4307
        %v4372 = vtanh.pop %v4308
        %v4373 = vtanh.pop %v4309
        %v4374 = vtanh.pop %v4310
        %v4375 = vtanh.pop %v4311
        %v4376 = vmul.f32 %v4312, 0.5
        %v4377 = vmul.f32 %v4313, 0.5
        %v4378 = vmul.f32 %v4314, 0.5
        %v4379 = vmul.f32 %v4315, 0.5
        %v4380 = vmul.f32 %v4316, 0.5
        %v4381 = vmul.f32 %v4317, 0.5
        %v4382 = vmul.f32 %v4318, 0.5
        %v4383 = vmul.f32 %v4319, 0.5
        %v4384 = vmul.f32 %v4320, 0.5
        %v4385 = vmul.f32 %v4321, 0.5
        %v4386 = vmul.f32 %v4322, 0.5
        %v4387 = vmul.f32 %v4323, 0.5
        %v4388 = vmul.f32 %v4324, 0.5
        %v4389 = vmul.f32 %v4325, 0.5
        %v4390 = vmul.f32 %v4326, 0.5
        %v4391 = vmul.f32 %v4327, 0.5
        %v4392 = vmul.f32 %v4328, 0.5
        %v4393 = vmul.f32 %v4329, 0.5
        %v4394 = vmul.f32 %v4330, 0.5
        %v4395 = vmul.f32 %v4331, 0.5
        %v4396 = vmul.f32 %v4332, 0.5
        %v4397 = vmul.f32 %v4333, 0.5
        %v4398 = vmul.f32 %v4334, 0.5
        %v4399 = vmul.f32 %v4335, 0.5
        %v4400 = vmul.f32 %v4336, 0.5
        %v4401 = vmul.f32 %v4337, 0.5
        %v4402 = vmul.f32 %v4338, 0.5
        %v4403 = vmul.f32 %v4339, 0.5
        %v4404 = vmul.f32 %v4340, 0.5
        %v4405 = vmul.f32 %v4341, 0.5
        %v4406 = vmul.f32 %v4342, 0.5
        %v4407 = vmul.f32 %v4343, 0.5
        %v4408 = vmul.f32 %v4344, 0.5
        %v4409 = vmul.f32 %v4345, 0.5
        %v4410 = vmul.f32 %v4346, 0.5
        %v4411 = vmul.f32 %v4347, 0.5
        %v4412 = vmul.f32 %v4348, 0.5
        %v4413 = vmul.f32 %v4349, 0.5
        %v4414 = vmul.f32 %v4350, 0.5
        %v4415 = vmul.f32 %v4351, 0.5
        %v4416 = vmul.f32 %v4352, 0.5
        %v4417 = vmul.f32 %v4353, 0.5
        %v4418 = vmul.f32 %v4354, 0.5
        %v4419 = vmul.f32 %v4355, 0.5
        %v4420 = vmul.f32 %v4356, 0.5
        %v4421 = vmul.f32 %v4357, 0.5
        %v4422 = vmul.f32 %v4358, 0.5
        %v4423 = vmul.f32 %v4359, 0.5
        %v4424 = vmul.f32 %v4360, 0.5
        %v4425 = vmul.f32 %v4361, 0.5
        %v4426 = vmul.f32 %v4362, 0.5
        %v4427 = vmul.f32 %v4363, 0.5
        %v4428 = vmul.f32 %v4364, 0.5
        %v4429 = vmul.f32 %v4365, 0.5
        %v4430 = vmul.f32 %v4366, 0.5
        %v4431 = vmul.f32 %v4367, 0.5
        %v4432 = vmul.f32 %v4368, 0.5
        %v4433 = vmul.f32 %v4369, 0.5
        %v4434 = vmul.f32 %v4370, 0.5
        %v4435 = vmul.f32 %v4371, 0.5
        %v4436 = vmul.f32 %v4372, 0.5
        %v4437 = vmul.f32 %v4373, 0.5
        %v4438 = vmul.f32 %v4374, 0.5
        %v4439 = vmul.f32 %v4375, 0.5
        %v4440 = vadd.f32 %v4376, 0.5
        %v4441 = vadd.f32 %v4377, 0.5
        %v4442 = vadd.f32 %v4378, 0.5
        %v4443 = vadd.f32 %v4379, 0.5
        %v4444 = vadd.f32 %v4380, 0.5
        %v4445 = vadd.f32 %v4381, 0.5
        %v4446 = vadd.f32 %v4382, 0.5
        %v4447 = vadd.f32 %v4383, 0.5
        %v4448 = vadd.f32 %v4384, 0.5
        %v4449 = vadd.f32 %v4385, 0.5
        %v4450 = vadd.f32 %v4386, 0.5
        %v4451 = vadd.f32 %v4387, 0.5
        %v4452 = vadd.f32 %v4388, 0.5
        %v4453 = vadd.f32 %v4389, 0.5
        %v4454 = vadd.f32 %v4390, 0.5
        %v4455 = vadd.f32 %v4391, 0.5
        %v4456 = vadd.f32 %v4392, 0.5
        %v4457 = vadd.f32 %v4393, 0.5
        %v4458 = vadd.f32 %v4394, 0.5
        %v4459 = vadd.f32 %v4395, 0.5
        %v4460 = vadd.f32 %v4396, 0.5
        %v4461 = vadd.f32 %v4397, 0.5
        %v4462 = vadd.f32 %v4398, 0.5
        %v4463 = vadd.f32 %v4399, 0.5
        %v4464 = vadd.f32 %v4400, 0.5
        %v4465 = vadd.f32 %v4401, 0.5
        %v4466 = vadd.f32 %v4402, 0.5
        %v4467 = vadd.f32 %v4403, 0.5
        %v4468 = vadd.f32 %v4404, 0.5
        %v4469 = vadd.f32 %v4405, 0.5
        %v4470 = vadd.f32 %v4406, 0.5
        %v4471 = vadd.f32 %v4407, 0.5
        %v4472 = vadd.f32 %v4408, 0.5
        %v4473 = vadd.f32 %v4409, 0.5
        %v4474 = vadd.f32 %v4410, 0.5
        %v4475 = vadd.f32 %v4411, 0.5
        %v4476 = vadd.f32 %v4412, 0.5
        %v4477 = vadd.f32 %v4413, 0.5
        %v4478 = vadd.f32 %v4414, 0.5
        %v4479 = vadd.f32 %v4415, 0.5
        %v4480 = vadd.f32 %v4416, 0.5
        %v4481 = vadd.f32 %v4417, 0.5
        %v4482 = vadd.f32 %v4418, 0.5
        %v4483 = vadd.f32 %v4419, 0.5
        %v4484 = vadd.f32 %v4420, 0.5
        %v4485 = vadd.f32 %v4421, 0.5
        %v4486 = vadd.f32 %v4422, 0.5
        %v4487 = vadd.f32 %v4423, 0.5
        %v4488 = vadd.f32 %v4424, 0.5
        %v4489 = vadd.f32 %v4425, 0.5
        %v4490 = vadd.f32 %v4426, 0.5
        %v4491 = vadd.f32 %v4427, 0.5
        %v4492 = vadd.f32 %v4428, 0.5
        %v4493 = vadd.f32 %v4429, 0.5
        %v4494 = vadd.f32 %v4430, 0.5
        %v4495 = vadd.f32 %v4431, 0.5
        %v4496 = vadd.f32 %v4432, 0.5
        %v4497 = vadd.f32 %v4433, 0.5
        %v4498 = vadd.f32 %v4434, 0.5
        %v4499 = vadd.f32 %v4435, 0.5
        %v4500 = vadd.f32 %v4436, 0.5
        %v4501 = vadd.f32 %v4437, 0.5
        %v4502 = vadd.f32 %v4438, 0.5
        %v4503 = vadd.f32 %v4439, 0.5
        %v4504 = vmul.f32 %v4440, %v4184
        %v4505 = vmul.f32 %v4441, %v4185
        %v4506 = vmul.f32 %v4442, %v4186
        %v4507 = vmul.f32 %v4443, %v4187
        %v4508 = vmul.f32 %v4444, %v4188
        %v4509 = vmul.f32 %v4445, %v4189
        %v4510 = vmul.f32 %v4446, %v4190
        %v4511 = vmul.f32 %v4447, %v4191
        %v4512 = vmul.f32 %v4448, %v4192
        %v4513 = vmul.f32 %v4449, %v4193
        %v4514 = vmul.f32 %v4450, %v4194
        %v4515 = vmul.f32 %v4451, %v4195
        %v4516 = vmul.f32 %v4452, %v4196
        %v4517 = vmul.f32 %v4453, %v4197
        %v4518 = vmul.f32 %v4454, %v4198
        %v4519 = vmul.f32 %v4455, %v4199
        %v4520 = vmul.f32 %v4456, %v4200
        %v4521 = vmul.f32 %v4457, %v4201
        %v4522 = vmul.f32 %v4458, %v4202
        %v4523 = vmul.f32 %v4459, %v4203
        %v4524 = vmul.f32 %v4460, %v4204
        %v4525 = vmul.f32 %v4461, %v4205
        %v4526 = vmul.f32 %v4462, %v4206
        %v4527 = vmul.f32 %v4463, %v4207
        %v4528 = vmul.f32 %v4464, %v4208
        %v4529 = vmul.f32 %v4465, %v4209
        %v4530 = vmul.f32 %v4466, %v4210
        %v4531 = vmul.f32 %v4467, %v4211
        %v4532 = vmul.f32 %v4468, %v4212
        %v4533 = vmul.f32 %v4469, %v4213
        %v4534 = vmul.f32 %v4470, %v4214
        %v4535 = vmul.f32 %v4471, %v4215
        %v4536 = vmul.f32 %v4472, %v4216
        %v4537 = vmul.f32 %v4473, %v4217
        %v4538 = vmul.f32 %v4474, %v4218
        %v4539 = vmul.f32 %v4475, %v4219
        %v4540 = vmul.f32 %v4476, %v4220
        %v4541 = vmul.f32 %v4477, %v4221
        %v4542 = vmul.f32 %v4478, %v4222
        %v4543 = vmul.f32 %v4479, %v4223
        %v4544 = vmul.f32 %v4480, %v4224
        %v4545 = vmul.f32 %v4481, %v4225
        %v4546 = vmul.f32 %v4482, %v4226
        %v4547 = vmul.f32 %v4483, %v4227
        %v4548 = vmul.f32 %v4484, %v4228
        %v4549 = vmul.f32 %v4485, %v4229
        %v4550 = vmul.f32 %v4486, %v4230
        %v4551 = vmul.f32 %v4487, %v4231
        %v4552 = vmul.f32 %v4488, %v4232
        %v4553 = vmul.f32 %v4489, %v4233
        %v4554 = vmul.f32 %v4490, %v4234
        %v4555 = vmul.f32 %v4491, %v4235
        %v4556 = vmul.f32 %v4492, %v4236
        %v4557 = vmul.f32 %v4493, %v4237
        %v4558 = vmul.f32 %v4494, %v4238
        %v4559 = vmul.f32 %v4495, %v4239
        %v4560 = vmul.f32 %v4496, %v4240
        %v4561 = vmul.f32 %v4497, %v4241
        %v4562 = vmul.f32 %v4498, %v4242
        %v4563 = vmul.f32 %v4499, %v4243
        %v4564 = vmul.f32 %v4500, %v4244
        %v4565 = vmul.f32 %v4501, %v4245
        %v4566 = vmul.f32 %v4502, %v4246
        %v4567 = vmul.f32 %v4503, %v4247
        %v4568 = vadd.f32 %v4504, %v4505
        %v4569 = vadd.f32 %v4568, %v4506
        %v4570 = vadd.f32 %v4569, %v4507
        %v4571 = vadd.f32 %v4570, %v4508
        %v4572 = vadd.f32 %v4571, %v4509
        %v4573 = vadd.f32 %v4572, %v4510
        %v4574 = vadd.f32 %v4573, %v4511
        %v4575 = vadd.f32 %v4574, %v4512
        %v4576 = vadd.f32 %v4575, %v4513
        %v4577 = vadd.f32 %v4576, %v4514
        %v4578 = vadd.f32 %v4577, %v4515
        %v4579 = vadd.f32 %v4578, %v4516
        %v4580 = vadd.f32 %v4579, %v4517
        %v4581 = vadd.f32 %v4580, %v4518
        %v4582 = vadd.f32 %v4581, %v4519
        %v4583 = vadd.f32 %v4582, %v4520
        %v4584 = vadd.f32 %v4583, %v4521
        %v4585 = vadd.f32 %v4584, %v4522
        %v4586 = vadd.f32 %v4585, %v4523
        %v4587 = vadd.f32 %v4586, %v4524
        %v4588 = vadd.f32 %v4587, %v4525
        %v4589 = vadd.f32 %v4588, %v4526
        %v4590 = vadd.f32 %v4589, %v4527
        %v4591 = vadd.f32 %v4590, %v4528
        %v4592 = vadd.f32 %v4591, %v4529
        %v4593 = vadd.f32 %v4592, %v4530
        %v4594 = vadd.f32 %v4593, %v4531
        %v4595 = vadd.f32 %v4594, %v4532
        %v4596 = vadd.f32 %v4595, %v4533
        %v4597 = vadd.f32 %v4596, %v4534
        %v4598 = vadd.f32 %v4597, %v4535
        %v4599 = vadd.f32 %v4598, %v4536
        %v4600 = vadd.f32 %v4599, %v4537
        %v4601 = vadd.f32 %v4600, %v4538
        %v4602 = vadd.f32 %v4601, %v4539
        %v4603 = vadd.f32 %v4602, %v4540
        %v4604 = vadd.f32 %v4603, %v4541
        %v4605 = vadd.f32 %v4604, %v4542
        %v4606 = vadd.f32 %v4605, %v4543
        %v4607 = vadd.f32 %v4606, %v4544
        %v4608 = vadd.f32 %v4607, %v4545
        %v4609 = vadd.f32 %v4608, %v4546
        %v4610 = vadd.f32 %v4609, %v4547
        %v4611 = vadd.f32 %v4610, %v4548
        %v4612 = vadd.f32 %v4611, %v4549
        %v4613 = vadd.f32 %v4612, %v4550
        %v4614 = vadd.f32 %v4613, %v4551
        %v4615 = vadd.f32 %v4614, %v4552
        %v4616 = vadd.f32 %v4615, %v4553
        %v4617 = vadd.f32 %v4616, %v4554
        %v4618 = vadd.f32 %v4617, %v4555
        %v4619 = vadd.f32 %v4618, %v4556
        %v4620 = vadd.f32 %v4619, %v4557
        %v4621 = vadd.f32 %v4620, %v4558
        %v4622 = vadd.f32 %v4621, %v4559
        %v4623 = vadd.f32 %v4622, %v4560
        %v4624 = vadd.f32 %v4623, %v4561
        %v4625 = vadd.f32 %v4624, %v4562
        %v4626 = vadd.f32 %v4625, %v4563
        %v4627 = vadd.f32 %v4626, %v4564
        %v4628 = vadd.f32 %v4627, %v4565
        %v4629 = vadd.f32 %v4628, %v4566
        %v4630 = vadd.f32 %v4629, %v4567
        %v4631 = vadd.f32 %v3989, %v4630
        %v4632 = vadd.f32 %v4440, %v4184
        %v4633 = vadd.f32 %v4441, %v4185
        %v4634 = vadd.f32 %v4442, %v4186
        %v4635 = vadd.f32 %v4443, %v4187
        %v4636 = vadd.f32 %v4444, %v4188
        %v4637 = vadd.f32 %v4445, %v4189
        %v4638 = vadd.f32 %v4446, %v4190
        %v4639 = vadd.f32 %v4447, %v4191
        %v4640 = vadd.f32 %v4448, %v4192
        %v4641 = vadd.f32 %v4449, %v4193
        %v4642 = vadd.f32 %v4450, %v4194
        %v4643 = vadd.f32 %v4451, %v4195
        %v4644 = vadd.f32 %v4452, %v4196
        %v4645 = vadd.f32 %v4453, %v4197
        %v4646 = vadd.f32 %v4454, %v4198
        %v4647 = vadd.f32 %v4455, %v4199
        %v4648 = vadd.f32 %v4456, %v4200
        %v4649 = vadd.f32 %v4457, %v4201
        %v4650 = vadd.f32 %v4458, %v4202
        %v4651 = vadd.f32 %v4459, %v4203
        %v4652 = vadd.f32 %v4460, %v4204
        %v4653 = vadd.f32 %v4461, %v4205
        %v4654 = vadd.f32 %v4462, %v4206
        %v4655 = vadd.f32 %v4463, %v4207
        %v4656 = vadd.f32 %v4464, %v4208
        %v4657 = vadd.f32 %v4465, %v4209
        %v4658 = vadd.f32 %v4466, %v4210
        %v4659 = vadd.f32 %v4467, %v4211
        %v4660 = vadd.f32 %v4468, %v4212
        %v4661 = vadd.f32 %v4469, %v4213
        %v4662 = vadd.f32 %v4470, %v4214
        %v4663 = vadd.f32 %v4471, %v4215
        %v4664 = vadd.f32 %v4472, %v4216
        %v4665 = vadd.f32 %v4473, %v4217
        %v4666 = vadd.f32 %v4474, %v4218
        %v4667 = vadd.f32 %v4475, %v4219
        %v4668 = vadd.f32 %v4476, %v4220
        %v4669 = vadd.f32 %v4477, %v4221
        %v4670 = vadd.f32 %v4478, %v4222
        %v4671 = vadd.f32 %v4479, %v4223
        %v4672 = vadd.f32 %v4480, %v4224
        %v4673 = vadd.f32 %v4481, %v4225
        %v4674 = vadd.f32 %v4482, %v4226
        %v4675 = vadd.f32 %v4483, %v4227
        %v4676 = vadd.f32 %v4484, %v4228
        %v4677 = vadd.f32 %v4485, %v4229
        %v4678 = vadd.f32 %v4486, %v4230
        %v4679 = vadd.f32 %v4487, %v4231
        %v4680 = vadd.f32 %v4488, %v4232
        %v4681 = vadd.f32 %v4489, %v4233
        %v4682 = vadd.f32 %v4490, %v4234
        %v4683 = vadd.f32 %v4491, %v4235
        %v4684 = vadd.f32 %v4492, %v4236
        %v4685 = vadd.f32 %v4493, %v4237
        %v4686 = vadd.f32 %v4494, %v4238
        %v4687 = vadd.f32 %v4495, %v4239
        %v4688 = vadd.f32 %v4496, %v4240
        %v4689 = vadd.f32 %v4497, %v4241
        %v4690 = vadd.f32 %v4498, %v4242
        %v4691 = vadd.f32 %v4499, %v4243
        %v4692 = vadd.f32 %v4500, %v4244
        %v4693 = vadd.f32 %v4501, %v4245
        %v4694 = vadd.f32 %v4502, %v4246
        %v4695 = vadd.f32 %v4503, %v4247
        %v4696 = vadd.f32 %v4632, %v4633
        %v4697 = vadd.f32 %v4696, %v4634
        %v4698 = vadd.f32 %v4697, %v4635
        %v4699 = vadd.f32 %v4698, %v4636
        %v4700 = vadd.f32 %v4699, %v4637
        %v4701 = vadd.f32 %v4700, %v4638
        %v4702 = vadd.f32 %v4701, %v4639
        %v4703 = vadd.f32 %v4702, %v4640
        %v4704 = vadd.f32 %v4703, %v4641
        %v4705 = vadd.f32 %v4704, %v4642
        %v4706 = vadd.f32 %v4705, %v4643
        %v4707 = vadd.f32 %v4706, %v4644
        %v4708 = vadd.f32 %v4707, %v4645
        %v4709 = vadd.f32 %v4708, %v4646
        %v4710 = vadd.f32 %v4709, %v4647
        %v4711 = vadd.f32 %v4710, %v4648
        %v4712 = vadd.f32 %v4711, %v4649
        %v4713 = vadd.f32 %v4712, %v4650
        %v4714 = vadd.f32 %v4713, %v4651
        %v4715 = vadd.f32 %v4714, %v4652
        %v4716 = vadd.f32 %v4715, %v4653
        %v4717 = vadd.f32 %v4716, %v4654
        %v4718 = vadd.f32 %v4717, %v4655
        %v4719 = vadd.f32 %v4718, %v4656
        %v4720 = vadd.f32 %v4719, %v4657
        %v4721 = vadd.f32 %v4720, %v4658
        %v4722 = vadd.f32 %v4721, %v4659
        %v4723 = vadd.f32 %v4722, %v4660
        %v4724 = vadd.f32 %v4723, %v4661
        %v4725 = vadd.f32 %v4724, %v4662
        %v4726 = vadd.f32 %v4725, %v4663
        %v4727 = vadd.f32 %v4726, %v4664
        %v4728 = vadd.f32 %v4727, %v4665
        %v4729 = vadd.f32 %v4728, %v4666
        %v4730 = vadd.f32 %v4729, %v4667
        %v4731 = vadd.f32 %v4730, %v4668
        %v4732 = vadd.f32 %v4731, %v4669
        %v4733 = vadd.f32 %v4732, %v4670
        %v4734 = vadd.f32 %v4733, %v4671
        %v4735 = vadd.f32 %v4734, %v4672
        %v4736 = vadd.f32 %v4735, %v4673
        %v4737 = vadd.f32 %v4736, %v4674
        %v4738 = vadd.f32 %v4737, %v4675
        %v4739 = vadd.f32 %v4738, %v4676
        %v4740 = vadd.f32 %v4739, %v4677
        %v4741 = vadd.f32 %v4740, %v4678
        %v4742 = vadd.f32 %v4741, %v4679
        %v4743 = vadd.f32 %v4742, %v4680
        %v4744 = vadd.f32 %v4743, %v4681
        %v4745 = vadd.f32 %v4744, %v4682
        %v4746 = vadd.f32 %v4745, %v4683
        %v4747 = vadd.f32 %v4746, %v4684
        %v4748 = vadd.f32 %v4747, %v4685
        %v4749 = vadd.f32 %v4748, %v4686
        %v4750 = vadd.f32 %v4749, %v4687
        %v4751 = vadd.f32 %v4750, %v4688
        %v4752 = vadd.f32 %v4751, %v4689
        %v4753 = vadd.f32 %v4752, %v4690
        %v4754 = vadd.f32 %v4753, %v4691
        %v4755 = vadd.f32 %v4754, %v4692
        %v4756 = vadd.f32 %v4755, %v4693
        %v4757 = vadd.f32 %v4756, %v4694
        %v4758 = vadd.f32 %v4757, %v4695
        %v4759 = vadd.f32 %v4117, %v4758
        %s4760 = scalar_lea.vmem %s216, 3584 [#allocation2]
        %v4761 = vld [vmem:[%s4760] sm:$0xff]
        %v4762 = vld [vmem:[%s4760 + $0x8] sm:$0xff]
        %v4763 = vld [vmem:[%s4760 + $0x10] sm:$0xff]
        %v4764 = vld [vmem:[%s4760 + $0x18] sm:$0xff]
        %v4765 = vld [vmem:[%s4760 + $0x20] sm:$0xff]
        %v4766 = vld [vmem:[%s4760 + $0x28] sm:$0xff]
        %v4767 = vld [vmem:[%s4760 + $0x30] sm:$0xff]
        %v4768 = vld [vmem:[%s4760 + $0x38] sm:$0xff]
        %v4769 = vld [vmem:[%s4760 + $0x40] sm:$0xff]
        %v4770 = vld [vmem:[%s4760 + $0x48] sm:$0xff]
        %v4771 = vld [vmem:[%s4760 + $0x50] sm:$0xff]
        %v4772 = vld [vmem:[%s4760 + $0x58] sm:$0xff]
        %v4773 = vld [vmem:[%s4760 + $0x60] sm:$0xff]
        %v4774 = vld [vmem:[%s4760 + $0x68] sm:$0xff]
        %v4775 = vld [vmem:[%s4760 + $0x70] sm:$0xff]
        %v4776 = vld [vmem:[%s4760 + $0x78] sm:$0xff]
        %v4777 = vld [vmem:[%s4760 + $0x80] sm:$0xff]
        %v4778 = vld [vmem:[%s4760 + $0x88] sm:$0xff]
        %v4779 = vld [vmem:[%s4760 + $0x90] sm:$0xff]
        %v4780 = vld [vmem:[%s4760 + $0x98] sm:$0xff]
        %v4781 = vld [vmem:[%s4760 + $0xa0] sm:$0xff]
        %v4782 = vld [vmem:[%s4760 + $0xa8] sm:$0xff]
        %v4783 = vld [vmem:[%s4760 + $0xb0] sm:$0xff]
        %v4784 = vld [vmem:[%s4760 + $0xb8] sm:$0xff]
        %v4785 = vld [vmem:[%s4760 + $0xc0] sm:$0xff]
        %v4786 = vld [vmem:[%s4760 + $0xc8] sm:$0xff]
        %v4787 = vld [vmem:[%s4760 + $0xd0] sm:$0xff]
        %v4788 = vld [vmem:[%s4760 + $0xd8] sm:$0xff]
        %v4789 = vld [vmem:[%s4760 + $0xe0] sm:$0xff]
        %v4790 = vld [vmem:[%s4760 + $0xe8] sm:$0xff]
        %v4791 = vld [vmem:[%s4760 + $0xf0] sm:$0xff]
        %v4792 = vld [vmem:[%s4760 + $0xf8] sm:$0xff]
        %v4793 = vld [vmem:[%s4760 + $0x100] sm:$0xff]
        %v4794 = vld [vmem:[%s4760 + $0x108] sm:$0xff]
        %v4795 = vld [vmem:[%s4760 + $0x110] sm:$0xff]
        %v4796 = vld [vmem:[%s4760 + $0x118] sm:$0xff]
        %v4797 = vld [vmem:[%s4760 + $0x120] sm:$0xff]
        %v4798 = vld [vmem:[%s4760 + $0x128] sm:$0xff]
        %v4799 = vld [vmem:[%s4760 + $0x130] sm:$0xff]
        %v4800 = vld [vmem:[%s4760 + $0x138] sm:$0xff]
        %v4801 = vld [vmem:[%s4760 + $0x140] sm:$0xff]
        %v4802 = vld [vmem:[%s4760 + $0x148] sm:$0xff]
        %v4803 = vld [vmem:[%s4760 + $0x150] sm:$0xff]
        %v4804 = vld [vmem:[%s4760 + $0x158] sm:$0xff]
        %v4805 = vld [vmem:[%s4760 + $0x160] sm:$0xff]
        %v4806 = vld [vmem:[%s4760 + $0x168] sm:$0xff]
        %v4807 = vld [vmem:[%s4760 + $0x170] sm:$0xff]
        %v4808 = vld [vmem:[%s4760 + $0x178] sm:$0xff]
        %v4809 = vld [vmem:[%s4760 + $0x180] sm:$0xff]
        %v4810 = vld [vmem:[%s4760 + $0x188] sm:$0xff]
        %v4811 = vld [vmem:[%s4760 + $0x190] sm:$0xff]
        %v4812 = vld [vmem:[%s4760 + $0x198] sm:$0xff]
        %v4813 = vld [vmem:[%s4760 + $0x1a0] sm:$0xff]
        %v4814 = vld [vmem:[%s4760 + $0x1a8] sm:$0xff]
        %v4815 = vld [vmem:[%s4760 + $0x1b0] sm:$0xff]
        %v4816 = vld [vmem:[%s4760 + $0x1b8] sm:$0xff]
        %v4817 = vld [vmem:[%s4760 + $0x1c0] sm:$0xff]
        %v4818 = vld [vmem:[%s4760 + $0x1c8] sm:$0xff]
        %v4819 = vld [vmem:[%s4760 + $0x1d0] sm:$0xff]
        %v4820 = vld [vmem:[%s4760 + $0x1d8] sm:$0xff]
        %v4821 = vld [vmem:[%s4760 + $0x1e0] sm:$0xff]
        %v4822 = vld [vmem:[%s4760 + $0x1e8] sm:$0xff]
        %v4823 = vld [vmem:[%s4760 + $0x1f0] sm:$0xff]
        %v4824 = vld [vmem:[%s4760 + $0x1f8] sm:$0xff]
        %s4825 = scalar_lea.vmem %s225, 3584 [#allocation5]
        %v4826 = vld [vmem:[%s4825] sm:$0xff]
        %v4827 = vld [vmem:[%s4825 + $0x8] sm:$0xff]
        %v4828 = vld [vmem:[%s4825 + $0x10] sm:$0xff]
        %v4829 = vld [vmem:[%s4825 + $0x18] sm:$0xff]
        %v4830 = vld [vmem:[%s4825 + $0x20] sm:$0xff]
        %v4831 = vld [vmem:[%s4825 + $0x28] sm:$0xff]
        %v4832 = vld [vmem:[%s4825 + $0x30] sm:$0xff]
        %v4833 = vld [vmem:[%s4825 + $0x38] sm:$0xff]
        %v4834 = vld [vmem:[%s4825 + $0x40] sm:$0xff]
        %v4835 = vld [vmem:[%s4825 + $0x48] sm:$0xff]
        %v4836 = vld [vmem:[%s4825 + $0x50] sm:$0xff]
        %v4837 = vld [vmem:[%s4825 + $0x58] sm:$0xff]
        %v4838 = vld [vmem:[%s4825 + $0x60] sm:$0xff]
        %v4839 = vld [vmem:[%s4825 + $0x68] sm:$0xff]
        %v4840 = vld [vmem:[%s4825 + $0x70] sm:$0xff]
        %v4841 = vld [vmem:[%s4825 + $0x78] sm:$0xff]
        %v4842 = vld [vmem:[%s4825 + $0x80] sm:$0xff]
        %v4843 = vld [vmem:[%s4825 + $0x88] sm:$0xff]
        %v4844 = vld [vmem:[%s4825 + $0x90] sm:$0xff]
        %v4845 = vld [vmem:[%s4825 + $0x98] sm:$0xff]
        %v4846 = vld [vmem:[%s4825 + $0xa0] sm:$0xff]
        %v4847 = vld [vmem:[%s4825 + $0xa8] sm:$0xff]
        %v4848 = vld [vmem:[%s4825 + $0xb0] sm:$0xff]
        %v4849 = vld [vmem:[%s4825 + $0xb8] sm:$0xff]
        %v4850 = vld [vmem:[%s4825 + $0xc0] sm:$0xff]
        %v4851 = vld [vmem:[%s4825 + $0xc8] sm:$0xff]
        %v4852 = vld [vmem:[%s4825 + $0xd0] sm:$0xff]
        %v4853 = vld [vmem:[%s4825 + $0xd8] sm:$0xff]
        %v4854 = vld [vmem:[%s4825 + $0xe0] sm:$0xff]
        %v4855 = vld [vmem:[%s4825 + $0xe8] sm:$0xff]
        %v4856 = vld [vmem:[%s4825 + $0xf0] sm:$0xff]
        %v4857 = vld [vmem:[%s4825 + $0xf8] sm:$0xff]
        %v4858 = vld [vmem:[%s4825 + $0x100] sm:$0xff]
        %v4859 = vld [vmem:[%s4825 + $0x108] sm:$0xff]
        %v4860 = vld [vmem:[%s4825 + $0x110] sm:$0xff]
        %v4861 = vld [vmem:[%s4825 + $0x118] sm:$0xff]
        %v4862 = vld [vmem:[%s4825 + $0x120] sm:$0xff]
        %v4863 = vld [vmem:[%s4825 + $0x128] sm:$0xff]
        %v4864 = vld [vmem:[%s4825 + $0x130] sm:$0xff]
        %v4865 = vld [vmem:[%s4825 + $0x138] sm:$0xff]
        %v4866 = vld [vmem:[%s4825 + $0x140] sm:$0xff]
        %v4867 = vld [vmem:[%s4825 + $0x148] sm:$0xff]
        %v4868 = vld [vmem:[%s4825 + $0x150] sm:$0xff]
        %v4869 = vld [vmem:[%s4825 + $0x158] sm:$0xff]
        %v4870 = vld [vmem:[%s4825 + $0x160] sm:$0xff]
        %v4871 = vld [vmem:[%s4825 + $0x168] sm:$0xff]
        %v4872 = vld [vmem:[%s4825 + $0x170] sm:$0xff]
        %v4873 = vld [vmem:[%s4825 + $0x178] sm:$0xff]
        %v4874 = vld [vmem:[%s4825 + $0x180] sm:$0xff]
        %v4875 = vld [vmem:[%s4825 + $0x188] sm:$0xff]
        %v4876 = vld [vmem:[%s4825 + $0x190] sm:$0xff]
        %v4877 = vld [vmem:[%s4825 + $0x198] sm:$0xff]
        %v4878 = vld [vmem:[%s4825 + $0x1a0] sm:$0xff]
        %v4879 = vld [vmem:[%s4825 + $0x1a8] sm:$0xff]
        %v4880 = vld [vmem:[%s4825 + $0x1b0] sm:$0xff]
        %v4881 = vld [vmem:[%s4825 + $0x1b8] sm:$0xff]
        %v4882 = vld [vmem:[%s4825 + $0x1c0] sm:$0xff]
        %v4883 = vld [vmem:[%s4825 + $0x1c8] sm:$0xff]
        %v4884 = vld [vmem:[%s4825 + $0x1d0] sm:$0xff]
        %v4885 = vld [vmem:[%s4825 + $0x1d8] sm:$0xff]
        %v4886 = vld [vmem:[%s4825 + $0x1e0] sm:$0xff]
        %v4887 = vld [vmem:[%s4825 + $0x1e8] sm:$0xff]
        %v4888 = vld [vmem:[%s4825 + $0x1f0] sm:$0xff]
        %v4889 = vld [vmem:[%s4825 + $0x1f8] sm:$0xff]
        %v4890 = vmul.f32 %v4761, 0.5
        %v4891 = vmul.f32 %v4762, 0.5
        %v4892 = vmul.f32 %v4763, 0.5
        %v4893 = vmul.f32 %v4764, 0.5
        %v4894 = vmul.f32 %v4765, 0.5
        %v4895 = vmul.f32 %v4766, 0.5
        %v4896 = vmul.f32 %v4767, 0.5
        %v4897 = vmul.f32 %v4768, 0.5
        %v4898 = vmul.f32 %v4769, 0.5
        %v4899 = vmul.f32 %v4770, 0.5
        %v4900 = vmul.f32 %v4771, 0.5
        %v4901 = vmul.f32 %v4772, 0.5
        %v4902 = vmul.f32 %v4773, 0.5
        %v4903 = vmul.f32 %v4774, 0.5
        %v4904 = vmul.f32 %v4775, 0.5
        %v4905 = vmul.f32 %v4776, 0.5
        %v4906 = vmul.f32 %v4777, 0.5
        %v4907 = vmul.f32 %v4778, 0.5
        %v4908 = vmul.f32 %v4779, 0.5
        %v4909 = vmul.f32 %v4780, 0.5
        %v4910 = vmul.f32 %v4781, 0.5
        %v4911 = vmul.f32 %v4782, 0.5
        %v4912 = vmul.f32 %v4783, 0.5
        %v4913 = vmul.f32 %v4784, 0.5
        %v4914 = vmul.f32 %v4785, 0.5
        %v4915 = vmul.f32 %v4786, 0.5
        %v4916 = vmul.f32 %v4787, 0.5
        %v4917 = vmul.f32 %v4788, 0.5
        %v4918 = vmul.f32 %v4789, 0.5
        %v4919 = vmul.f32 %v4790, 0.5
        %v4920 = vmul.f32 %v4791, 0.5
        %v4921 = vmul.f32 %v4792, 0.5
        %v4922 = vmul.f32 %v4793, 0.5
        %v4923 = vmul.f32 %v4794, 0.5
        %v4924 = vmul.f32 %v4795, 0.5
        %v4925 = vmul.f32 %v4796, 0.5
        %v4926 = vmul.f32 %v4797, 0.5
        %v4927 = vmul.f32 %v4798, 0.5
        %v4928 = vmul.f32 %v4799, 0.5
        %v4929 = vmul.f32 %v4800, 0.5
        %v4930 = vmul.f32 %v4801, 0.5
        %v4931 = vmul.f32 %v4802, 0.5
        %v4932 = vmul.f32 %v4803, 0.5
        %v4933 = vmul.f32 %v4804, 0.5
        %v4934 = vmul.f32 %v4805, 0.5
        %v4935 = vmul.f32 %v4806, 0.5
        %v4936 = vmul.f32 %v4807, 0.5
        %v4937 = vmul.f32 %v4808, 0.5
        %v4938 = vmul.f32 %v4809, 0.5
        %v4939 = vmul.f32 %v4810, 0.5
        %v4940 = vmul.f32 %v4811, 0.5
        %v4941 = vmul.f32 %v4812, 0.5
        %v4942 = vmul.f32 %v4813, 0.5
        %v4943 = vmul.f32 %v4814, 0.5
        %v4944 = vmul.f32 %v4815, 0.5
        %v4945 = vmul.f32 %v4816, 0.5
        %v4946 = vmul.f32 %v4817, 0.5
        %v4947 = vmul.f32 %v4818, 0.5
        %v4948 = vmul.f32 %v4819, 0.5
        %v4949 = vmul.f32 %v4820, 0.5
        %v4950 = vmul.f32 %v4821, 0.5
        %v4951 = vmul.f32 %v4822, 0.5
        %v4952 = vmul.f32 %v4823, 0.5
        %v4953 = vmul.f32 %v4824, 0.5
        %v4954 = vtanh.pop %v4890
        %v4955 = vtanh.pop %v4891
        %v4956 = vtanh.pop %v4892
        %v4957 = vtanh.pop %v4893
        %v4958 = vtanh.pop %v4894
        %v4959 = vtanh.pop %v4895
        %v4960 = vtanh.pop %v4896
        %v4961 = vtanh.pop %v4897
        %v4962 = vtanh.pop %v4898
        %v4963 = vtanh.pop %v4899
        %v4964 = vtanh.pop %v4900
        %v4965 = vtanh.pop %v4901
        %v4966 = vtanh.pop %v4902
        %v4967 = vtanh.pop %v4903
        %v4968 = vtanh.pop %v4904
        %v4969 = vtanh.pop %v4905
        %v4970 = vtanh.pop %v4906
        %v4971 = vtanh.pop %v4907
        %v4972 = vtanh.pop %v4908
        %v4973 = vtanh.pop %v4909
        %v4974 = vtanh.pop %v4910
        %v4975 = vtanh.pop %v4911
        %v4976 = vtanh.pop %v4912
        %v4977 = vtanh.pop %v4913
        %v4978 = vtanh.pop %v4914
        %v4979 = vtanh.pop %v4915
        %v4980 = vtanh.pop %v4916
        %v4981 = vtanh.pop %v4917
        %v4982 = vtanh.pop %v4918
        %v4983 = vtanh.pop %v4919
        %v4984 = vtanh.pop %v4920
        %v4985 = vtanh.pop %v4921
        %v4986 = vtanh.pop %v4922
        %v4987 = vtanh.pop %v4923
        %v4988 = vtanh.pop %v4924
        %v4989 = vtanh.pop %v4925
        %v4990 = vtanh.pop %v4926
        %v4991 = vtanh.pop %v4927
        %v4992 = vtanh.pop %v4928
        %v4993 = vtanh.pop %v4929
        %v4994 = vtanh.pop %v4930
        %v4995 = vtanh.pop %v4931
        %v4996 = vtanh.pop %v4932
        %v4997 = vtanh.pop %v4933
        %v4998 = vtanh.pop %v4934
        %v4999 = vtanh.pop %v4935
        %v5000 = vtanh.pop %v4936
        %v5001 = vtanh.pop %v4937
        %v5002 = vtanh.pop %v4938
        %v5003 = vtanh.pop %v4939
        %v5004 = vtanh.pop %v4940
        %v5005 = vtanh.pop %v4941
        %v5006 = vtanh.pop %v4942
        %v5007 = vtanh.pop %v4943
        %v5008 = vtanh.pop %v4944
        %v5009 = vtanh.pop %v4945
        %v5010 = vtanh.pop %v4946
        %v5011 = vtanh.pop %v4947
        %v5012 = vtanh.pop %v4948
        %v5013 = vtanh.pop %v4949
        %v5014 = vtanh.pop %v4950
        %v5015 = vtanh.pop %v4951
        %v5016 = vtanh.pop %v4952
        %v5017 = vtanh.pop %v4953
        %v5018 = vmul.f32 %v4954, 0.5
        %v5019 = vmul.f32 %v4955, 0.5
        %v5020 = vmul.f32 %v4956, 0.5
        %v5021 = vmul.f32 %v4957, 0.5
        %v5022 = vmul.f32 %v4958, 0.5
        %v5023 = vmul.f32 %v4959, 0.5
        %v5024 = vmul.f32 %v4960, 0.5
        %v5025 = vmul.f32 %v4961, 0.5
        %v5026 = vmul.f32 %v4962, 0.5
        %v5027 = vmul.f32 %v4963, 0.5
        %v5028 = vmul.f32 %v4964, 0.5
        %v5029 = vmul.f32 %v4965, 0.5
        %v5030 = vmul.f32 %v4966, 0.5
        %v5031 = vmul.f32 %v4967, 0.5
        %v5032 = vmul.f32 %v4968, 0.5
        %v5033 = vmul.f32 %v4969, 0.5
        %v5034 = vmul.f32 %v4970, 0.5
        %v5035 = vmul.f32 %v4971, 0.5
        %v5036 = vmul.f32 %v4972, 0.5
        %v5037 = vmul.f32 %v4973, 0.5
        %v5038 = vmul.f32 %v4974, 0.5
        %v5039 = vmul.f32 %v4975, 0.5
        %v5040 = vmul.f32 %v4976, 0.5
        %v5041 = vmul.f32 %v4977, 0.5
        %v5042 = vmul.f32 %v4978, 0.5
        %v5043 = vmul.f32 %v4979, 0.5
        %v5044 = vmul.f32 %v4980, 0.5
        %v5045 = vmul.f32 %v4981, 0.5
        %v5046 = vmul.f32 %v4982, 0.5
        %v5047 = vmul.f32 %v4983, 0.5
        %v5048 = vmul.f32 %v4984, 0.5
        %v5049 = vmul.f32 %v4985, 0.5
        %v5050 = vmul.f32 %v4986, 0.5
        %v5051 = vmul.f32 %v4987, 0.5
        %v5052 = vmul.f32 %v4988, 0.5
        %v5053 = vmul.f32 %v4989, 0.5
        %v5054 = vmul.f32 %v4990, 0.5
        %v5055 = vmul.f32 %v4991, 0.5
        %v5056 = vmul.f32 %v4992, 0.5
        %v5057 = vmul.f32 %v4993, 0.5
        %v5058 = vmul.f32 %v4994, 0.5
        %v5059 = vmul.f32 %v4995, 0.5
        %v5060 = vmul.f32 %v4996, 0.5
        %v5061 = vmul.f32 %v4997, 0.5
        %v5062 = vmul.f32 %v4998, 0.5
        %v5063 = vmul.f32 %v4999, 0.5
        %v5064 = vmul.f32 %v5000, 0.5
        %v5065 = vmul.f32 %v5001, 0.5
        %v5066 = vmul.f32 %v5002, 0.5
        %v5067 = vmul.f32 %v5003, 0.5
        %v5068 = vmul.f32 %v5004, 0.5
        %v5069 = vmul.f32 %v5005, 0.5
        %v5070 = vmul.f32 %v5006, 0.5
        %v5071 = vmul.f32 %v5007, 0.5
        %v5072 = vmul.f32 %v5008, 0.5
        %v5073 = vmul.f32 %v5009, 0.5
        %v5074 = vmul.f32 %v5010, 0.5
        %v5075 = vmul.f32 %v5011, 0.5
        %v5076 = vmul.f32 %v5012, 0.5
        %v5077 = vmul.f32 %v5013, 0.5
        %v5078 = vmul.f32 %v5014, 0.5
        %v5079 = vmul.f32 %v5015, 0.5
        %v5080 = vmul.f32 %v5016, 0.5
        %v5081 = vmul.f32 %v5017, 0.5
        %v5082 = vadd.f32 %v5018, 0.5
        %v5083 = vadd.f32 %v5019, 0.5
        %v5084 = vadd.f32 %v5020, 0.5
        %v5085 = vadd.f32 %v5021, 0.5
        %v5086 = vadd.f32 %v5022, 0.5
        %v5087 = vadd.f32 %v5023, 0.5
        %v5088 = vadd.f32 %v5024, 0.5
        %v5089 = vadd.f32 %v5025, 0.5
        %v5090 = vadd.f32 %v5026, 0.5
        %v5091 = vadd.f32 %v5027, 0.5
        %v5092 = vadd.f32 %v5028, 0.5
        %v5093 = vadd.f32 %v5029, 0.5
        %v5094 = vadd.f32 %v5030, 0.5
        %v5095 = vadd.f32 %v5031, 0.5
        %v5096 = vadd.f32 %v5032, 0.5
        %v5097 = vadd.f32 %v5033, 0.5
        %v5098 = vadd.f32 %v5034, 0.5
        %v5099 = vadd.f32 %v5035, 0.5
        %v5100 = vadd.f32 %v5036, 0.5
        %v5101 = vadd.f32 %v5037, 0.5
        %v5102 = vadd.f32 %v5038, 0.5
        %v5103 = vadd.f32 %v5039, 0.5
        %v5104 = vadd.f32 %v5040, 0.5
        %v5105 = vadd.f32 %v5041, 0.5
        %v5106 = vadd.f32 %v5042, 0.5
        %v5107 = vadd.f32 %v5043, 0.5
        %v5108 = vadd.f32 %v5044, 0.5
        %v5109 = vadd.f32 %v5045, 0.5
        %v5110 = vadd.f32 %v5046, 0.5
        %v5111 = vadd.f32 %v5047, 0.5
        %v5112 = vadd.f32 %v5048, 0.5
        %v5113 = vadd.f32 %v5049, 0.5
        %v5114 = vadd.f32 %v5050, 0.5
        %v5115 = vadd.f32 %v5051, 0.5
        %v5116 = vadd.f32 %v5052, 0.5
        %v5117 = vadd.f32 %v5053, 0.5
        %v5118 = vadd.f32 %v5054, 0.5
        %v5119 = vadd.f32 %v5055, 0.5
        %v5120 = vadd.f32 %v5056, 0.5
        %v5121 = vadd.f32 %v5057, 0.5
        %v5122 = vadd.f32 %v5058, 0.5
        %v5123 = vadd.f32 %v5059, 0.5
        %v5124 = vadd.f32 %v5060, 0.5
        %v5125 = vadd.f32 %v5061, 0.5
        %v5126 = vadd.f32 %v5062, 0.5
        %v5127 = vadd.f32 %v5063, 0.5
        %v5128 = vadd.f32 %v5064, 0.5
        %v5129 = vadd.f32 %v5065, 0.5
        %v5130 = vadd.f32 %v5066, 0.5
        %v5131 = vadd.f32 %v5067, 0.5
        %v5132 = vadd.f32 %v5068, 0.5
        %v5133 = vadd.f32 %v5069, 0.5
        %v5134 = vadd.f32 %v5070, 0.5
        %v5135 = vadd.f32 %v5071, 0.5
        %v5136 = vadd.f32 %v5072, 0.5
        %v5137 = vadd.f32 %v5073, 0.5
        %v5138 = vadd.f32 %v5074, 0.5
        %v5139 = vadd.f32 %v5075, 0.5
        %v5140 = vadd.f32 %v5076, 0.5
        %v5141 = vadd.f32 %v5077, 0.5
        %v5142 = vadd.f32 %v5078, 0.5
        %v5143 = vadd.f32 %v5079, 0.5
        %v5144 = vadd.f32 %v5080, 0.5
        %v5145 = vadd.f32 %v5081, 0.5
        %v5146 = vmul.f32 %v5082, %v4826
        %v5147 = vmul.f32 %v5083, %v4827
        %v5148 = vmul.f32 %v5084, %v4828
        %v5149 = vmul.f32 %v5085, %v4829
        %v5150 = vmul.f32 %v5086, %v4830
        %v5151 = vmul.f32 %v5087, %v4831
        %v5152 = vmul.f32 %v5088, %v4832
        %v5153 = vmul.f32 %v5089, %v4833
        %v5154 = vmul.f32 %v5090, %v4834
        %v5155 = vmul.f32 %v5091, %v4835
        %v5156 = vmul.f32 %v5092, %v4836
        %v5157 = vmul.f32 %v5093, %v4837
        %v5158 = vmul.f32 %v5094, %v4838
        %v5159 = vmul.f32 %v5095, %v4839
        %v5160 = vmul.f32 %v5096, %v4840
        %v5161 = vmul.f32 %v5097, %v4841
        %v5162 = vmul.f32 %v5098, %v4842
        %v5163 = vmul.f32 %v5099, %v4843
        %v5164 = vmul.f32 %v5100, %v4844
        %v5165 = vmul.f32 %v5101, %v4845
        %v5166 = vmul.f32 %v5102, %v4846
        %v5167 = vmul.f32 %v5103, %v4847
        %v5168 = vmul.f32 %v5104, %v4848
        %v5169 = vmul.f32 %v5105, %v4849
        %v5170 = vmul.f32 %v5106, %v4850
        %v5171 = vmul.f32 %v5107, %v4851
        %v5172 = vmul.f32 %v5108, %v4852
        %v5173 = vmul.f32 %v5109, %v4853
        %v5174 = vmul.f32 %v5110, %v4854
        %v5175 = vmul.f32 %v5111, %v4855
        %v5176 = vmul.f32 %v5112, %v4856
        %v5177 = vmul.f32 %v5113, %v4857
        %v5178 = vmul.f32 %v5114, %v4858
        %v5179 = vmul.f32 %v5115, %v4859
        %v5180 = vmul.f32 %v5116, %v4860
        %v5181 = vmul.f32 %v5117, %v4861
        %v5182 = vmul.f32 %v5118, %v4862
        %v5183 = vmul.f32 %v5119, %v4863
        %v5184 = vmul.f32 %v5120, %v4864
        %v5185 = vmul.f32 %v5121, %v4865
        %v5186 = vmul.f32 %v5122, %v4866
        %v5187 = vmul.f32 %v5123, %v4867
        %v5188 = vmul.f32 %v5124, %v4868
        %v5189 = vmul.f32 %v5125, %v4869
        %v5190 = vmul.f32 %v5126, %v4870
        %v5191 = vmul.f32 %v5127, %v4871
        %v5192 = vmul.f32 %v5128, %v4872
        %v5193 = vmul.f32 %v5129, %v4873
        %v5194 = vmul.f32 %v5130, %v4874
        %v5195 = vmul.f32 %v5131, %v4875
        %v5196 = vmul.f32 %v5132, %v4876
        %v5197 = vmul.f32 %v5133, %v4877
        %v5198 = vmul.f32 %v5134, %v4878
        %v5199 = vmul.f32 %v5135, %v4879
        %v5200 = vmul.f32 %v5136, %v4880
        %v5201 = vmul.f32 %v5137, %v4881
        %v5202 = vmul.f32 %v5138, %v4882
        %v5203 = vmul.f32 %v5139, %v4883
        %v5204 = vmul.f32 %v5140, %v4884
        %v5205 = vmul.f32 %v5141, %v4885
        %v5206 = vmul.f32 %v5142, %v4886
        %v5207 = vmul.f32 %v5143, %v4887
        %v5208 = vmul.f32 %v5144, %v4888
        %v5209 = vmul.f32 %v5145, %v4889
        %v5210 = vadd.f32 %v5146, %v5147
        %v5211 = vadd.f32 %v5210, %v5148
        %v5212 = vadd.f32 %v5211, %v5149
        %v5213 = vadd.f32 %v5212, %v5150
        %v5214 = vadd.f32 %v5213, %v5151
        %v5215 = vadd.f32 %v5214, %v5152
        %v5216 = vadd.f32 %v5215, %v5153
        %v5217 = vadd.f32 %v5216, %v5154
        %v5218 = vadd.f32 %v5217, %v5155
        %v5219 = vadd.f32 %v5218, %v5156
        %v5220 = vadd.f32 %v5219, %v5157
        %v5221 = vadd.f32 %v5220, %v5158
        %v5222 = vadd.f32 %v5221, %v5159
        %v5223 = vadd.f32 %v5222, %v5160
        %v5224 = vadd.f32 %v5223, %v5161
        %v5225 = vadd.f32 %v5224, %v5162
        %v5226 = vadd.f32 %v5225, %v5163
        %v5227 = vadd.f32 %v5226, %v5164
        %v5228 = vadd.f32 %v5227, %v5165
        %v5229 = vadd.f32 %v5228, %v5166
        %v5230 = vadd.f32 %v5229, %v5167
        %v5231 = vadd.f32 %v5230, %v5168
        %v5232 = vadd.f32 %v5231, %v5169
        %v5233 = vadd.f32 %v5232, %v5170
        %v5234 = vadd.f32 %v5233, %v5171
        %v5235 = vadd.f32 %v5234, %v5172
        %v5236 = vadd.f32 %v5235, %v5173
        %v5237 = vadd.f32 %v5236, %v5174
        %v5238 = vadd.f32 %v5237, %v5175
        %v5239 = vadd.f32 %v5238, %v5176
        %v5240 = vadd.f32 %v5239, %v5177
        %v5241 = vadd.f32 %v5240, %v5178
        %v5242 = vadd.f32 %v5241, %v5179
        %v5243 = vadd.f32 %v5242, %v5180
        %v5244 = vadd.f32 %v5243, %v5181
        %v5245 = vadd.f32 %v5244, %v5182
        %v5246 = vadd.f32 %v5245, %v5183
        %v5247 = vadd.f32 %v5246, %v5184
        %v5248 = vadd.f32 %v5247, %v5185
        %v5249 = vadd.f32 %v5248, %v5186
        %v5250 = vadd.f32 %v5249, %v5187
        %v5251 = vadd.f32 %v5250, %v5188
        %v5252 = vadd.f32 %v5251, %v5189
        %v5253 = vadd.f32 %v5252, %v5190
        %v5254 = vadd.f32 %v5253, %v5191
        %v5255 = vadd.f32 %v5254, %v5192
        %v5256 = vadd.f32 %v5255, %v5193
        %v5257 = vadd.f32 %v5256, %v5194
        %v5258 = vadd.f32 %v5257, %v5195
        %v5259 = vadd.f32 %v5258, %v5196
        %v5260 = vadd.f32 %v5259, %v5197
        %v5261 = vadd.f32 %v5260, %v5198
        %v5262 = vadd.f32 %v5261, %v5199
        %v5263 = vadd.f32 %v5262, %v5200
        %v5264 = vadd.f32 %v5263, %v5201
        %v5265 = vadd.f32 %v5264, %v5202
        %v5266 = vadd.f32 %v5265, %v5203
        %v5267 = vadd.f32 %v5266, %v5204
        %v5268 = vadd.f32 %v5267, %v5205
        %v5269 = vadd.f32 %v5268, %v5206
        %v5270 = vadd.f32 %v5269, %v5207
        %v5271 = vadd.f32 %v5270, %v5208
        %v5272 = vadd.f32 %v5271, %v5209
        %v5273 = vadd.f32 %v4631, %v5272
        %v5274 = vadd.f32 %v5082, %v4826
        %v5275 = vadd.f32 %v5083, %v4827
        %v5276 = vadd.f32 %v5084, %v4828
        %v5277 = vadd.f32 %v5085, %v4829
        %v5278 = vadd.f32 %v5086, %v4830
        %v5279 = vadd.f32 %v5087, %v4831
        %v5280 = vadd.f32 %v5088, %v4832
        %v5281 = vadd.f32 %v5089, %v4833
        %v5282 = vadd.f32 %v5090, %v4834
        %v5283 = vadd.f32 %v5091, %v4835
        %v5284 = vadd.f32 %v5092, %v4836
        %v5285 = vadd.f32 %v5093, %v4837
        %v5286 = vadd.f32 %v5094, %v4838
        %v5287 = vadd.f32 %v5095, %v4839
        %v5288 = vadd.f32 %v5096, %v4840
        %v5289 = vadd.f32 %v5097, %v4841
        %v5290 = vadd.f32 %v5098, %v4842
        %v5291 = vadd.f32 %v5099, %v4843
        %v5292 = vadd.f32 %v5100, %v4844
        %v5293 = vadd.f32 %v5101, %v4845
        %v5294 = vadd.f32 %v5102, %v4846
        %v5295 = vadd.f32 %v5103, %v4847
        %v5296 = vadd.f32 %v5104, %v4848
        %v5297 = vadd.f32 %v5105, %v4849
        %v5298 = vadd.f32 %v5106, %v4850
        %v5299 = vadd.f32 %v5107, %v4851
        %v5300 = vadd.f32 %v5108, %v4852
        %v5301 = vadd.f32 %v5109, %v4853
        %v5302 = vadd.f32 %v5110, %v4854
        %v5303 = vadd.f32 %v5111, %v4855
        %v5304 = vadd.f32 %v5112, %v4856
        %v5305 = vadd.f32 %v5113, %v4857
        %v5306 = vadd.f32 %v5114, %v4858
        %v5307 = vadd.f32 %v5115, %v4859
        %v5308 = vadd.f32 %v5116, %v4860
        %v5309 = vadd.f32 %v5117, %v4861
        %v5310 = vadd.f32 %v5118, %v4862
        %v5311 = vadd.f32 %v5119, %v4863
        %v5312 = vadd.f32 %v5120, %v4864
        %v5313 = vadd.f32 %v5121, %v4865
        %v5314 = vadd.f32 %v5122, %v4866
        %v5315 = vadd.f32 %v5123, %v4867
        %v5316 = vadd.f32 %v5124, %v4868
        %v5317 = vadd.f32 %v5125, %v4869
        %v5318 = vadd.f32 %v5126, %v4870
        %v5319 = vadd.f32 %v5127, %v4871
        %v5320 = vadd.f32 %v5128, %v4872
        %v5321 = vadd.f32 %v5129, %v4873
        %v5322 = vadd.f32 %v5130, %v4874
        %v5323 = vadd.f32 %v5131, %v4875
        %v5324 = vadd.f32 %v5132, %v4876
        %v5325 = vadd.f32 %v5133, %v4877
        %v5326 = vadd.f32 %v5134, %v4878
        %v5327 = vadd.f32 %v5135, %v4879
        %v5328 = vadd.f32 %v5136, %v4880
        %v5329 = vadd.f32 %v5137, %v4881
        %v5330 = vadd.f32 %v5138, %v4882
        %v5331 = vadd.f32 %v5139, %v4883
        %v5332 = vadd.f32 %v5140, %v4884
        %v5333 = vadd.f32 %v5141, %v4885
        %v5334 = vadd.f32 %v5142, %v4886
        %v5335 = vadd.f32 %v5143, %v4887
        %v5336 = vadd.f32 %v5144, %v4888
        %v5337 = vadd.f32 %v5145, %v4889
        %v5338 = vadd.f32 %v5274, %v5275
        %v5339 = vadd.f32 %v5338, %v5276
        %v5340 = vadd.f32 %v5339, %v5277
        %v5341 = vadd.f32 %v5340, %v5278
        %v5342 = vadd.f32 %v5341, %v5279
        %v5343 = vadd.f32 %v5342, %v5280
        %v5344 = vadd.f32 %v5343, %v5281
        %v5345 = vadd.f32 %v5344, %v5282
        %v5346 = vadd.f32 %v5345, %v5283
        %v5347 = vadd.f32 %v5346, %v5284
        %v5348 = vadd.f32 %v5347, %v5285
        %v5349 = vadd.f32 %v5348, %v5286
        %v5350 = vadd.f32 %v5349, %v5287
        %v5351 = vadd.f32 %v5350, %v5288
        %v5352 = vadd.f32 %v5351, %v5289
        %v5353 = vadd.f32 %v5352, %v5290
        %v5354 = vadd.f32 %v5353, %v5291
        %v5355 = vadd.f32 %v5354, %v5292
        %v5356 = vadd.f32 %v5355, %v5293
        %v5357 = vadd.f32 %v5356, %v5294
        %v5358 = vadd.f32 %v5357, %v5295
        %v5359 = vadd.f32 %v5358, %v5296
        %v5360 = vadd.f32 %v5359, %v5297
        %v5361 = vadd.f32 %v5360, %v5298
        %v5362 = vadd.f32 %v5361, %v5299
        %v5363 = vadd.f32 %v5362, %v5300
        %v5364 = vadd.f32 %v5363, %v5301
        %v5365 = vadd.f32 %v5364, %v5302
        %v5366 = vadd.f32 %v5365, %v5303
        %v5367 = vadd.f32 %v5366, %v5304
        %v5368 = vadd.f32 %v5367, %v5305
        %v5369 = vadd.f32 %v5368, %v5306
        %v5370 = vadd.f32 %v5369, %v5307
        %v5371 = vadd.f32 %v5370, %v5308
        %v5372 = vadd.f32 %v5371, %v5309
        %v5373 = vadd.f32 %v5372, %v5310
        %v5374 = vadd.f32 %v5373, %v5311
        %v5375 = vadd.f32 %v5374, %v5312
        %v5376 = vadd.f32 %v5375, %v5313
        %v5377 = vadd.f32 %v5376, %v5314
        %v5378 = vadd.f32 %v5377, %v5315
        %v5379 = vadd.f32 %v5378, %v5316
        %v5380 = vadd.f32 %v5379, %v5317
        %v5381 = vadd.f32 %v5380, %v5318
        %v5382 = vadd.f32 %v5381, %v5319
        %v5383 = vadd.f32 %v5382, %v5320
        %v5384 = vadd.f32 %v5383, %v5321
        %v5385 = vadd.f32 %v5384, %v5322
        %v5386 = vadd.f32 %v5385, %v5323
        %v5387 = vadd.f32 %v5386, %v5324
        %v5388 = vadd.f32 %v5387, %v5325
        %v5389 = vadd.f32 %v5388, %v5326
        %v5390 = vadd.f32 %v5389, %v5327
        %v5391 = vadd.f32 %v5390, %v5328
        %v5392 = vadd.f32 %v5391, %v5329
        %v5393 = vadd.f32 %v5392, %v5330
        %v5394 = vadd.f32 %v5393, %v5331
        %v5395 = vadd.f32 %v5394, %v5332
        %v5396 = vadd.f32 %v5395, %v5333
        %v5397 = vadd.f32 %v5396, %v5334
        %v5398 = vadd.f32 %v5397, %v5335
        %v5399 = vadd.f32 %v5398, %v5336
        %v5400 = vadd.f32 %v5399, %v5337
        %v5401 = vadd.f32 %v4759, %v5400
        %v5402 = vld [vmem:[%s250] sm:$0xff]
        %v5403 = vadd.f32 %v5402, %v5273
        %5404 = vst [vmem:[%s250] sm:$0xff] %v5403
        %v5405 = vld [vmem:[%s257] sm:$0xff]
        %v5406 = vadd.f32 %v5405, %v5401
        %5407 = vst [vmem:[%s257] sm:$0xff] %v5406
        %s5408 = sand.u32 %s103, 1
        %s5409 = scalar_lea.sflag [#allocation4], %s5408
        %s5410 = sand.u32 %s103, 1
        %s5411 = smul.addr %s5410, 8
        %s5412 = scalar_lea.vmem [#allocation7], %s5411
        %s5413 = sand.u32 %s129, 1
        %s5414 = scalar_lea.sflag [#allocation9], %s5413
        %s5415 = sand.u32 %s129, 1
        %s5416 = smul.addr %s5415, 8
        %s5417 = scalar_lea.vmem [#allocation8], %s5416
        // Predicated region
        $region41: #{tpu_custom_call.1} parent=27 // pred_check
          %p5418 = pneg %p113
        $region42: #{tpu_custom_call.1} parent=27 // pred_check_branch
          %5420 = sbr.rel (%p5418) target = $region44
        $region43: #{tpu_custom_call.1} parent=27 // pred_region
          %s5422 = ssub.s32 128, 128
          %5423 = vsyncadd %s5409, %s5422
          %s5424 = smul.addr %s31, 128
          %s5425 = scalar_lea.hbm %s2, %s5424
          %s5427 = sshll.u32 %s5412, 4
          %s5428 = int_to_ptr.vmem [resolvable:$true] %s5427
          %5430 = dma.vmem_to_hbm [thread:$0]  %s5428, 128, %s5425, %s5409
        $region44: #{tpu_custom_call.1} parent=27 // pred_fallthru
          _
        // Predicated region
        $region45: #{tpu_custom_call.1} parent=27 // pred_check
          %p5431 = pneg %p139
        $region46: #{tpu_custom_call.1} parent=27 // pred_check_branch
          %5433 = sbr.rel (%p5431) target = $region48
        $region47: #{tpu_custom_call.1} parent=27 // pred_region
          %s5435 = ssub.s32 128, 128
          %5436 = vsyncadd %s5414, %s5435
          %s5437 = smul.addr %s31, 128
          %s5438 = scalar_lea.hbm %s3, %s5437
          %s5440 = sshll.u32 %s5417, 4
          %s5441 = int_to_ptr.vmem [resolvable:$true] %s5440
          %5443 = dma.vmem_to_hbm [thread:$0]  %s5441, 128, %s5438, %s5414
        $region48: #{tpu_custom_call.1} parent=27 // pred_fallthru
          _
      $region28: #{tpu_custom_call.1} parent=5 // pred_fallthru
        _
      %p5444 = scmp.le.s32.totalorder 2, %s22
      // Predicated region
      $region49: #{tpu_custom_call.1} parent=5 // pred_check
        %p5445 = pneg %p5444
      $region50: #{tpu_custom_call.1} parent=5 // pred_check_branch
        %5447 = sbr.rel (%p5445) target = $region52
      $region51: #{tpu_custom_call.1} parent=5 // pred_region
        %s5448 = ssub.s32 %s22, 2
        // Predicated region
        $region53: #{tpu_custom_call.1} parent=51 // pred_check
          %p5449 = pneg %p119
        $region54: #{tpu_custom_call.1} parent=51 // pred_check_branch
          %5451 = sbr.rel (%p5449) target = $region56
        $region55: #{tpu_custom_call.1} parent=51 // pred_region
          %s5452 = sand.u32 %s104, 1
          %s5453 = scalar_lea.sflag [#allocation4], %s5452
          %s5454 = sand.u32 %s104, 1
          %s5455 = smul.addr %s5454, 8
          %s5456 = scalar_lea.vmem [#allocation7], %s5455
          %5457 = dma.done %s5453, 128
        $region56: #{tpu_custom_call.1} parent=51 // pred_fallthru
          _
        // Predicated region
        $region57: #{tpu_custom_call.1} parent=51 // pred_check
          %p5458 = pneg %p145
        $region58: #{tpu_custom_call.1} parent=51 // pred_check_branch
          %5460 = sbr.rel (%p5458) target = $region60
        $region59: #{tpu_custom_call.1} parent=51 // pred_region
          %s5461 = sand.u32 %s130, 1
          %s5462 = scalar_lea.sflag [#allocation9], %s5461
          %s5463 = sand.u32 %s130, 1
          %s5464 = smul.addr %s5463, 8
          %s5465 = scalar_lea.vmem [#allocation8], %s5464
          %5466 = dma.done %s5462, 128
        $region60: #{tpu_custom_call.1} parent=51 // pred_fallthru
          _
      $region52: #{tpu_custom_call.1} parent=5 // pred_fallthru
        _
    $region6: #{tpu_custom_call.1} parent=1 // loop_footer
      %s26 = sadd.s32 1, %s22
    $region7: #{tpu_custom_call.1} parent=1 // loop_footer_branch
      %21 = sbr.rel target = $region3
    $region8: #{tpu_custom_call.1} parent=1 // loop_exit
      _
    %5467 = vsyncpa [#allocation3], 1
    %s5468 = scalar_lea.sflag [#allocation3], 1
    %5469 = vsyncpa %s5468, 1
    %5470 = vsyncpa [#allocation6], 1
    %s5471 = scalar_lea.sflag [#allocation6], 1
    %5472 = vsyncpa %s5471, 1
    %5473 = vsyncpa [#allocation4], 1
    %s5474 = scalar_lea.sflag [#allocation4], 1
    %5475 = vsyncpa %s5474, 1
    %5476 = vsyncpa [#allocation9], 1
    %s5477 = scalar_lea.sflag [#allocation9], 1
    %5478 = vsyncpa %s5477, 1

</llo_original>
